<compile_context>
chip_gen: v7x
topology: tpu7x:2x2x1
jax: 0.10.0
libtpu: 0.0.40
codegen_flags: <defaults>
</compile_context>

<pallas_src>
import functools

import jax
import jax.numpy as jnp
from jax import lax
from jax.experimental import pallas as pl
from jax.experimental.pallas import tpu as pltpu

EPS = 1e-5
NEG_SLOPE = 0.1


def _leaky(h):
    return jnp.where(h >= 0, h, NEG_SLOPE * h)


def _round_up(x, m):
    return (x + m - 1) // m * m


# --------------------------------- kernels ---------------------------------
# Packed per-feature constants sb_ref: (8, F_pad) f32
#   row 0: bias1   row 1: bias2   row 2: bias_res
#   row 4: scale1  row 5: scale2  row 6: scale_res

def _resblock_proj_kernel(x_ref, wa_ref, w2_ref, sb_ref, o_ref, *, precision):
    """Projection shortcut. wa = [W1 | Wr] fused along N (both consume x)."""
    f = o_ref.shape[-1]
    x = x_ref[...]
    # one MXU call: first-layer pre-activation AND residual projection
    hx = jnp.dot(x, wa_ref[...], preferred_element_type=jnp.float32,
                 precision=precision)
    h = _leaky(hx[:, :f] * sb_ref[4:5, :] + sb_ref[0:1, :])   # Lin1+BN1 -> LeakyReLU (dropout=id)
    r = hx[:, f:] * sb_ref[6:7, :] + sb_ref[2:3, :]           # residual Lin+BN
    h2 = jnp.dot(h.astype(w2_ref.dtype), w2_ref[...],
                 preferred_element_type=jnp.float32, precision=precision)
    h2 = _leaky(h2 * sb_ref[5:6, :] + sb_ref[1:2, :])         # Lin2+BN2 -> LeakyReLU (dropout=id)
    o_ref[...] = (h2 + r).astype(o_ref.dtype)


def _resblock_ident_kernel(x_ref, w1_ref, w2_ref, sb_ref, o_ref, *, precision):
    """Identity shortcut (in_features == out_features). x arrives in f32 so the
    skip connection keeps full precision even on the bf16 compute path."""
    x = x_ref[...]
    h = jnp.dot(x.astype(w1_ref.dtype), w1_ref[...],
                preferred_element_type=jnp.float32, precision=precision)
    h = _leaky(h * sb_ref[4:5, :] + sb_ref[0:1, :])
    h2 = jnp.dot(h.astype(w2_ref.dtype), w2_ref[...],
                 preferred_element_type=jnp.float32, precision=precision)
    h2 = _leaky(h2 * sb_ref[5:6, :] + sb_ref[1:2, :])
    o_ref[...] = (h2 + x.astype(jnp.float32)).astype(o_ref.dtype)


# --------------------------------- wrapper ---------------------------------

def _fold_bn(w, b, g, be, m, v):
    """Eval-mode BN folding. PyTorch Linear weight is [out, in].
    Returns (W.T unscaled, per-feature scale, per-feature bias)."""
    s = g * lax.rsqrt(v + EPS)                       # [out]
    return w.astype(jnp.float32).T, s, (b - m) * s + be


def _vmem_capacity_bytes():
    try:
        return int(pltpu.get_tpu_info().vmem_capacity_bytes)
    except Exception:
        return 64 << 20                              # conservative: v7x per-TC VMEM


def residual_block(x, params, in_features, out_features, *,
                   compute_dtype=jnp.bfloat16, out_dtype=jnp.float32,
                   block_batch=None):
    """x: [batch, in_features] f32 -> [batch, out_features] out_dtype.

    compute_dtype=bf16 is the throughput path (single-pass MXU, halved weight/x DMA);
    compute_dtype=f32 uses Precision.HIGHEST (multi-pass MXU, accuracy path).
    """
    n = x.shape[0]
    cdt = jnp.dtype(compute_dtype)
    odt = jnp.dtype(out_dtype)
    f32 = jnp.float32
    prec = lax.Precision.HIGHEST if cdt == f32 else lax.Precision.DEFAULT

    # ---- fold BNs (wrapper-side, zero kernel cost) ----
    w1t, s1, b1 = _fold_bn(params["w1"], params["b1"], params["g1"], params["be1"],
                           params["m1"], params["v1"])
    w2t, s2, b2 = _fold_bn(params["w2"], params["b2"], params["g2"], params["be2"],
                           params["m2"], params["v2"])
    proj = in_features != out_features
    if proj:
        wrt, sr, br = _fold_bn(params["wr"], params["br"], params["gr"], params["ber"],
                               params["mr"], params["vr"])

    # ---- tile shaping ----
    i_pad = _round_up(in_features, 128)
    f_pad = _round_up(out_features, 128)
    # batch rows must stay sublane-tile aligned: 8 for f32, 16 when any block is bf16
    row_mult = 16 if (cdt.itemsize < 4 or odt.itemsize < 4) else 8
    n_r = _round_up(n, row_mult)
    if block_batch is None:
        # big tiles, but >= 4 grid steps when the batch allows it
        # (v7x megacore sharding of the batch axis + DMA/compute overlap)
        tb_cand = min(512, max(row_mult, _round_up(pl.cdiv(n, 4), row_mult)))
    else:
        tb_cand = max(row_mult, _round_up(int(block_batch), row_mult))
    tb_cand = min(tb_cand, n_r)
    g = pl.cdiv(n_r, tb_cand)
    tb = _round_up(pl.cdiv(n_r, g), row_mult)   # rebalance -> padding waste < g*row_mult rows
    n_pad = g * tb

    def pad2(a, rows, cols):
        return jnp.pad(a, ((0, rows - a.shape[0]), (0, cols - a.shape[1])))

    # identity path keeps x in f32 so the skip add is exact; proj path streams x in cdt
    x_dtype = cdt if proj else f32
    x_p = pad2(x.astype(f32), n_pad, i_pad).astype(x_dtype)

    w1p = pad2(w1t, i_pad, f_pad)
    w2p = pad2(w2t, f_pad, f_pad).astype(cdt)

    # pack all per-feature scales & biases into one (8, F_pad) f32 array -> single small DMA
    sb = jnp.zeros((8, f_pad), f32)
    sb = sb.at[0, :out_features].set(b1)
    sb = sb.at[1, :out_features].set(b2)
    sb = sb.at[4, :out_features].set(s1)
    sb = sb.at[5, :out_features].set(s2)

    if proj:
        wrp = pad2(wrt, i_pad, f_pad)
        wa = jnp.concatenate([w1p, wrp], axis=1).astype(cdt)   # [i_pad, 2*f_pad]
        sb = sb.at[2, :out_features].set(br)
        sb = sb.at[6, :out_features].set(sr)
        kernel = functools.partial(_resblock_proj_kernel, precision=prec)
    else:
        wa = w1p.astype(cdt)                                   # [i_pad, f_pad]
        kernel = functools.partial(_resblock_ident_kernel, precision=prec)
    wa_n = wa.shape[1]
    cb = cdt.itemsize

    # VMEM budget (upper bound: weights counted double-buffered even when we manage to
    # single-buffer them below), clamped to this generation's physical capacity.
    est = (2 * tb * i_pad * jnp.dtype(x_dtype).itemsize        # pipelined x tiles
           + 2 * tb * f_pad * odt.itemsize                     # pipelined out tiles
           + 2 * (i_pad * wa_n + f_pad * f_pad) * cb           # resident weights
           + 2 * 8 * f_pad * 4)                                # packed scales/biases
    vmem_cap = _vmem_capacity_bytes()
    vmem_limit = int(min(max(est + (8 << 20), 32 << 20), int(vmem_cap * 0.9)))

    def build(single_buffer_weights):
        wspec = {"pipeline_mode": pl.Buffered(1)} if single_buffer_weights else {}
        return pl.pallas_call(
            kernel,
            out_shape=jax.ShapeDtypeStruct((n_pad, f_pad), odt),
            grid_spec=pltpu.PrefetchScalarGridSpec(
                num_scalar_prefetch=0,
                grid=(g,),
                in_specs=[
                    pl.BlockSpec((tb, i_pad), lambda i: (i, 0)),              # x (pipelined)
                    pl.BlockSpec((i_pad, wa_n), lambda i: (0, 0), **wspec),   # W1|Wr (resident)
                    pl.BlockSpec((f_pad, f_pad), lambda i: (0, 0), **wspec),  # W2 (resident)
                    pl.BlockSpec((8, f_pad), lambda i: (0, 0), **wspec),      # scales + biases
                ],
                out_specs=pl.BlockSpec((tb, f_pad), lambda i: (i, 0)),
            ),
            compiler_params=pltpu.CompilerParams(
                dimension_semantics=("parallel",),
                vmem_limit_bytes=vmem_limit,
            ),
        )

    try:
        # constant-index operands single-buffered: halves resident-weight VMEM
        out = build(True)(x_p, wa, w2p, sb)
    except Exception:
        # TODO(synk): drop this fallback once pl.Buffered(1) on top-level BlockSpecs is
        #             supported on every deployed jax/jaxlib version.
        out = build(False)(x_p, wa, w2p, sb)

    return out[:n, :out_features]


# ------------------------------- pure-JAX ref -------------------------------

def residual_block_ref(x, params, in_features, out_features):
    """Eval-mode PyTorch semantics, un-fused (Linear -> BN -> LeakyReLU -> ...)."""
    def lin(h, w, b):
        return h @ w.T + b

    def bn(h, g, be, m, v):
        return (h - m) * lax.rsqrt(v + EPS) * g + be

    with jax.default_matmul_precision("highest"):
        h = _leaky(bn(lin(x, params["w1"], params["b1"]),
                      params["g1"], params["be1"], params["m1"], params["v1"]))
        h = _leaky(bn(lin(h, params["w2"], params["b2"]),
                      params["g2"], params["be2"], params["m2"], params["v2"]))
        if in_features != out_features:
            r = bn(lin(x, params["wr"], params["br"]),
                   params["gr"], params["ber"], params["mr"], params["vr"])
        else:
            r = x
        return h + r


def init_params(key, in_features, out_features):
    """Deterministic synthetic parameters (PyTorch Linear weight layout: [out, in])."""
    ks = jax.random.split(key, 12)
    p = {
        "w1": 0.1 * jax.random.normal(ks[0], (out_features, in_features), jnp.float32),
        "b1": 0.1 * jax.random.normal(ks[1], (out_features,), jnp.float32),
        "g1": 1.0 + 0.1 * jax.random.normal(ks[2], (out_features,), jnp.float32),
        "be1": 0.1 * jax.random.normal(ks[3], (out_features,), jnp.float32),
        "m1": 0.1 * jax.random.normal(ks[4], (out_features,), jnp.float32),
        "v1": jax.random.uniform(ks[5], (out_features,), jnp.float32, 0.5, 1.5),
        "w2": 0.1 * jax.random.normal(ks[6], (out_features, out_features), jnp.float32),
        "b2": 0.1 * jax.random.normal(ks[7], (out_features,), jnp.float32),
        "g2": 1.0 + 0.1 * jax.random.normal(ks[8], (out_features,), jnp.float32),
        "be2": 0.1 * jax.random.normal(ks[9], (out_features,), jnp.float32),
        "m2": 0.1 * jax.random.normal(ks[10], (out_features,), jnp.float32),
        "v2": jax.random.uniform(ks[11], (out_features,), jnp.float32, 0.5, 1.5),
    }
    if in_features != out_features:
        kr = jax.random.split(jax.random.fold_in(key, 123), 6)
        p.update({
            "wr": 0.1 * jax.random.normal(kr[0], (out_features, in_features), jnp.float32),
            "br": 0.1 * jax.random.normal(kr[1], (out_features,), jnp.float32),
            "gr": 1.0 + 0.1 * jax.random.normal(kr[2], (out_features,), jnp.float32),
            "ber": 0.1 * jax.random.normal(kr[3], (out_features,), jnp.float32),
            "mr": 0.1 * jax.random.normal(kr[4], (out_features,), jnp.float32),
            "vr": jax.random.uniform(kr[5], (out_features,), jnp.float32, 0.5, 1.5),
        })
    return p


if __name__ == "__main__":
    key = jax.random.PRNGKey(0)
    batch, in_features, out_features = 20, 48, 64     # non-multiples: exercises padding

    kx, kp = jax.random.split(key)
    x = jax.random.normal(kx, (batch, in_features), jnp.float32)
    params = init_params(kp, in_features, out_features)
    ref = residual_block_ref(x, params, in_features, out_features)

    # 1) projection shortcut, f32 accuracy path, auto tiling (multi-step batch grid)
    out = jax.block_until_ready(residual_block(
        x, params, in_features, out_features, compute_dtype=jnp.float32))
    assert out.shape == (batch, out_features)
    assert jnp.allclose(out, ref, atol=1e-4, rtol=1e-4), "projection (f32) mismatch"

    # 2) identity shortcut, f32, odd user block_batch (exercises tb rounding / robustness)
    params_id = init_params(jax.random.fold_in(kp, 7), out_features, out_features)
    x_id = jax.random.normal(jax.random.fold_in(kx, 7), (batch, out_features), jnp.float32)
    out_id = jax.block_until_ready(residual_block(
        x_id, params_id, out_features, out_features,
        compute_dtype=jnp.float32, block_batch=7))
    ref_id = residual_block_ref(x_id, params_id, out_features, out_features)
    assert jnp.allclose(out_id, ref_id, atol=1e-4, rtol=1e-4), "identity (f32) mismatch"

    # 3) bf16 MXU throughput path, f32 output (BN scale applied post-matmul in f32)
    out_bf = jax.block_until_ready(residual_block(
        x, params, in_features, out_features, compute_dtype=jnp.bfloat16))
    assert jnp.allclose(out_bf, ref, atol=5e-2, rtol=5e-2), "projection (bf16) mismatch"

    # 4) bf16 compute + bf16 output (halves output writeback / VMEM)
    out_bb = jax.block_until_ready(residual_block(
        x, params, in_features, out_features,
        compute_dtype=jnp.bfloat16, out_dtype=jnp.bfloat16))
    assert jnp.allclose(out_bb.astype(jnp.float32), ref, atol=1e-1, rtol=1e-1), \
        "projection (bf16-out) mismatch"

    print("KERNEL_OK")
</pallas_src>

<mosaic_0001>
module attributes {stable_mosaic.version = 11 : i64} {
  func.func @_resblock_proj_kernel(%arg0: i32, %arg1: memref<8x128xf32, #tpu.memory_space<vmem>>, %arg2: memref<128x256xf32, #tpu.memory_space<vmem>>, %arg3: memref<128x128xf32, #tpu.memory_space<vmem>>, %arg4: memref<8x128xf32, #tpu.memory_space<vmem>>, %arg5: memref<8x128xf32, #tpu.memory_space<vmem>>) attributes {dimension_semantics = [#tpu.dimension_semantics<parallel>], iteration_bounds = array<i64: 3>, scalar_prefetch = 0 : i64, scratch_operands = 0 : i64, tpu.core_type = #tpu.core_type<tc>, window_params = [{transform_indices = @transform_0, window_bounds = array<i64: 8, 128>}, {pipeline_mode = #tpu.pipeline_mode<synchronous>, transform_indices = @transform_1, window_bounds = array<i64: 128, 256>}, {pipeline_mode = #tpu.pipeline_mode<synchronous>, transform_indices = @transform_2, window_bounds = array<i64: 128, 128>}, {pipeline_mode = #tpu.pipeline_mode<synchronous>, transform_indices = @transform_3, window_bounds = array<i64: 8, 128>}, {transform_indices = @transform_4, window_bounds = array<i64: 8, 128>}]} {
    %c0 = arith.constant 0 : index
    %c0_0 = arith.constant 0 : index
    %0 = vector.load %arg1[%c0, %c0_0] : memref<8x128xf32, #tpu.memory_space<vmem>>, vector<8x128xf32>
    %c0_1 = arith.constant 0 : index
    %c0_2 = arith.constant 0 : index
    %1 = vector.load %arg2[%c0_1, %c0_2] : memref<128x256xf32, #tpu.memory_space<vmem>>, vector<128x256xf32>
    %cst = arith.constant dense<0.000000e+00> : vector<8x256xf32>
    %2 = tpu.matmul %0, %1, %cst {dimension_numbers = #tpu.dot_dimension_numbers<[1], [0], [0], [1], [0, 0, 1, 1], [], []>, precision = #tpu.contract_precision<fp32>} : vector<8x128xf32>, vector<128x256xf32>, vector<8x256xf32> -> vector<8x256xf32>
    %3 = vector.extract_strided_slice %2 {offsets = [0, 0], sizes = [8, 128], strides = [1, 1]} : vector<8x256xf32> to vector<8x128xf32>
    %c4 = arith.constant 4 : index
    %c0_3 = arith.constant 0 : index
    %4 = vector.load %arg4[%c4, %c0_3] : memref<8x128xf32, #tpu.memory_space<vmem>>, vector<1x128xf32>
    %5 = vector.broadcast %4 : vector<1x128xf32> to vector<8x128xf32>
    %6 = arith.mulf %3, %5 : vector<8x128xf32>
    %c0_4 = arith.constant 0 : index
    %c0_5 = arith.constant 0 : index
    %7 = vector.load %arg4[%c0_4, %c0_5] : memref<8x128xf32, #tpu.memory_space<vmem>>, vector<1x128xf32>
    %8 = vector.broadcast %7 : vector<1x128xf32> to vector<8x128xf32>
    %9 = arith.addf %6, %8 : vector<8x128xf32>
    %cst_6 = arith.constant 0.000000e+00 : f32
    %10 = vector.broadcast %cst_6 : f32 to vector<8x128xf32>
    %11 = arith.cmpf oge, %9, %10 : vector<8x128xf32>
    %cst_7 = arith.constant 1.000000e-01 : f32
    %12 = vector.broadcast %cst_7 : f32 to vector<8x128xf32>
    %13 = arith.mulf %12, %9 : vector<8x128xf32>
    %14 = arith.select %11, %9, %13 : vector<8x128xi1>, vector<8x128xf32>
    %15 = vector.extract_strided_slice %2 {offsets = [0, 128], sizes = [8, 128], strides = [1, 1]} : vector<8x256xf32> to vector<8x128xf32>
    %c6 = arith.constant 6 : index
    %c0_8 = arith.constant 0 : index
    %16 = vector.load %arg4[%c6, %c0_8] : memref<8x128xf32, #tpu.memory_space<vmem>>, vector<1x128xf32>
    %17 = vector.broadcast %16 : vector<1x128xf32> to vector<8x128xf32>
    %18 = arith.mulf %15, %17 : vector<8x128xf32>
    %c2 = arith.constant 2 : index
    %c0_9 = arith.constant 0 : index
    %19 = vector.load %arg4[%c2, %c0_9] : memref<8x128xf32, #tpu.memory_space<vmem>>, vector<1x128xf32>
    %20 = vector.broadcast %19 : vector<1x128xf32> to vector<8x128xf32>
    %21 = arith.addf %18, %20 : vector<8x128xf32>
    %c0_10 = arith.constant 0 : index
    %c0_11 = arith.constant 0 : index
    %22 = vector.load %arg3[%c0_10, %c0_11] : memref<128x128xf32, #tpu.memory_space<vmem>>, vector<128x128xf32>
    %cst_12 = arith.constant dense<0.000000e+00> : vector<8x128xf32>
    %23 = tpu.matmul %14, %22, %cst_12 {dimension_numbers = #tpu.dot_dimension_numbers<[1], [0], [0], [1], [0, 0, 1, 1], [], []>, precision = #tpu.contract_precision<fp32>} : vector<8x128xf32>, vector<128x128xf32>, vector<8x128xf32> -> vector<8x128xf32>
    %c5 = arith.constant 5 : index
    %c0_13 = arith.constant 0 : index
    %24 = vector.load %arg4[%c5, %c0_13] : memref<8x128xf32, #tpu.memory_space<vmem>>, vector<1x128xf32>
    %25 = vector.broadcast %24 : vector<1x128xf32> to vector<8x128xf32>
    %26 = arith.mulf %23, %25 : vector<8x128xf32>
    %c1 = arith.constant 1 : index
    %c0_14 = arith.constant 0 : index
    %27 = vector.load %arg4[%c1, %c0_14] : memref<8x128xf32, #tpu.memory_space<vmem>>, vector<1x128xf32>
    %28 = vector.broadcast %27 : vector<1x128xf32> to vector<8x128xf32>
    %29 = arith.addf %26, %28 : vector<8x128xf32>
    %cst_15 = arith.constant 0.000000e+00 : f32
    %30 = vector.broadcast %cst_15 : f32 to vector<8x128xf32>
    %31 = arith.cmpf oge, %29, %30 : vector<8x128xf32>
    %cst_16 = arith.constant 1.000000e-01 : f32
    %32 = vector.broadcast %cst_16 : f32 to vector<8x128xf32>
    %33 = arith.mulf %32, %29 : vector<8x128xf32>
    %34 = arith.select %31, %29, %33 : vector<8x128xi1>, vector<8x128xf32>
    %35 = arith.addf %34, %21 : vector<8x128xf32>
    %c0_17 = arith.constant 0 : index
    %c0_18 = arith.constant 0 : index
    %36 = vector.load %arg5[%c0_17, %c0_18] : memref<8x128xf32, #tpu.memory_space<vmem>>, vector<8x128xf32>
    tpu.vector_store %arg5[%c0_17, %c0_18], %35 {strides = array<i32>} : memref<8x128xf32, #tpu.memory_space<vmem>>, vector<8x128xf32>,
    return
  }
  func.func @transform_0(%arg0: i32) -> (i32, i32) {
    %c0_i32 = arith.constant 0 : i32
    %c0_i32_0 = arith.constant 0 : i32
    return %arg0, %c0_i32 : i32, i32
  }
  func.func @transform_1(%arg0: i32) -> (i32, i32) {
    %c0_i32 = arith.constant 0 : i32
    %c0_i32_0 = arith.constant 0 : i32
    %c0_i32_1 = arith.constant 0 : i32
    return %c0_i32, %c0_i32_0 : i32, i32
  }
  func.func @transform_2(%arg0: i32) -> (i32, i32) {
    %c0_i32 = arith.constant 0 : i32
    %c0_i32_0 = arith.constant 0 : i32
    %c0_i32_1 = arith.constant 0 : i32
    return %c0_i32, %c0_i32_0 : i32, i32
  }
  func.func @transform_3(%arg0: i32) -> (i32, i32) {
    %c0_i32 = arith.constant 0 : i32
    %c0_i32_0 = arith.constant 0 : i32
    %c0_i32_1 = arith.constant 0 : i32
    return %c0_i32, %c0_i32_0 : i32, i32
  }
  func.func @transform_4(%arg0: i32) -> (i32, i32) {
    %c0_i32 = arith.constant 0 : i32
    %c0_i32_0 = arith.constant 0 : i32
    return %arg0, %c0_i32 : i32, i32
  }
}

module attributes {stable_mosaic.version = 11 : i64} {
  func.func @_resblock_proj_kernel(%arg0: i32, %arg1: memref<8x128xf32, #tpu.memory_space<vmem>>, %arg2: memref<128x256xf32, #tpu.memory_space<vmem>>, %arg3: memref<128x128xf32, #tpu.memory_space<vmem>>, %arg4: memref<8x128xf32, #tpu.memory_space<vmem>>, %arg5: memref<8x128xf32, #tpu.memory_space<vmem>>) attributes {dimension_semantics = [#tpu.dimension_semantics<parallel>], iteration_bounds = array<i64: 3>, scalar_prefetch = 0 : i64, scratch_operands = 0 : i64, tpu.core_type = #tpu.core_type<tc>, window_params = [{transform_indices = @transform_0, window_bounds = array<i64: 8, 128>}, {pipeline_mode = #tpu.pipeline_mode<synchronous>, transform_indices = @transform_1, window_bounds = array<i64: 128, 256>}, {pipeline_mode = #tpu.pipeline_mode<synchronous>, transform_indices = @transform_2, window_bounds = array<i64: 128, 128>}, {pipeline_mode = #tpu.pipeline_mode<synchronous>, transform_indices = @transform_3, window_bounds = array<i64: 8, 128>}, {transform_indices = @transform_4, window_bounds = array<i64: 8, 128>}]} {
    %c0 = arith.constant 0 : index
    %c0_0 = arith.constant 0 : index
    %0 = vector.load %arg1[%c0, %c0_0] : memref<8x128xf32, #tpu.memory_space<vmem>>, vector<8x128xf32>
    %c0_1 = arith.constant 0 : index
    %c0_2 = arith.constant 0 : index
    %1 = vector.load %arg2[%c0_1, %c0_2] : memref<128x256xf32, #tpu.memory_space<vmem>>, vector<128x256xf32>
    %cst = arith.constant dense<0.000000e+00> : vector<8x256xf32>
    %2 = tpu.matmul %0, %1, %cst {dimension_numbers = #tpu.dot_dimension_numbers<[1], [0], [0], [1], [0, 0, 1, 1], [], []>, precision = #tpu.contract_precision<fp32>} : vector<8x128xf32>, vector<128x256xf32>, vector<8x256xf32> -> vector<8x256xf32>
    %3 = vector.extract_strided_slice %2 {offsets = [0, 0], sizes = [8, 128], strides = [1, 1]} : vector<8x256xf32> to vector<8x128xf32>
    %c4 = arith.constant 4 : index
    %c0_3 = arith.constant 0 : index
    %4 = vector.load %arg4[%c4, %c0_3] : memref<8x128xf32, #tpu.memory_space<vmem>>, vector<1x128xf32>
    %5 = vector.broadcast %4 : vector<1x128xf32> to vector<8x128xf32>
    %6 = arith.mulf %3, %5 : vector<8x128xf32>
    %c0_4 = arith.constant 0 : index
    %c0_5 = arith.constant 0 : index
    %7 = vector.load %arg4[%c0_4, %c0_5] : memref<8x128xf32, #tpu.memory_space<vmem>>, vector<1x128xf32>
    %8 = vector.broadcast %7 : vector<1x128xf32> to vector<8x128xf32>
    %9 = arith.addf %6, %8 : vector<8x128xf32>
    %cst_6 = arith.constant 0.000000e+00 : f32
    %10 = vector.broadcast %cst_6 : f32 to vector<8x128xf32>
    %11 = arith.cmpf oge, %9, %10 : vector<8x128xf32>
    %cst_7 = arith.constant 1.000000e-01 : f32
    %12 = vector.broadcast %cst_7 : f32 to vector<8x128xf32>
    %13 = arith.mulf %12, %9 : vector<8x128xf32>
    %14 = arith.select %11, %9, %13 : vector<8x128xi1>, vector<8x128xf32>
    %15 = vector.extract_strided_slice %2 {offsets = [0, 128], sizes = [8, 128], strides = [1, 1]} : vector<8x256xf32> to vector<8x128xf32>
    %c6 = arith.constant 6 : index
    %c0_8 = arith.constant 0 : index
    %16 = vector.load %arg4[%c6, %c0_8] : memref<8x128xf32, #tpu.memory_space<vmem>>, vector<1x128xf32>
    %17 = vector.broadcast %16 : vector<1x128xf32> to vector<8x128xf32>
    %18 = arith.mulf %15, %17 : vector<8x128xf32>
    %c2 = arith.constant 2 : index
    %c0_9 = arith.constant 0 : index
    %19 = vector.load %arg4[%c2, %c0_9] : memref<8x128xf32, #tpu.memory_space<vmem>>, vector<1x128xf32>
    %20 = vector.broadcast %19 : vector<1x128xf32> to vector<8x128xf32>
    %21 = arith.addf %18, %20 : vector<8x128xf32>
    %c0_10 = arith.constant 0 : index
    %c0_11 = arith.constant 0 : index
    %22 = vector.load %arg3[%c0_10, %c0_11] : memref<128x128xf32, #tpu.memory_space<vmem>>, vector<128x128xf32>
    %cst_12 = arith.constant dense<0.000000e+00> : vector<8x128xf32>
    %23 = tpu.matmul %14, %22, %cst_12 {dimension_numbers = #tpu.dot_dimension_numbers<[1], [0], [0], [1], [0, 0, 1, 1], [], []>, precision = #tpu.contract_precision<fp32>} : vector<8x128xf32>, vector<128x128xf32>, vector<8x128xf32> -> vector<8x128xf32>
    %c5 = arith.constant 5 : index
    %c0_13 = arith.constant 0 : index
    %24 = vector.load %arg4[%c5, %c0_13] : memref<8x128xf32, #tpu.memory_space<vmem>>, vector<1x128xf32>
    %25 = vector.broadcast %24 : vector<1x128xf32> to vector<8x128xf32>
    %26 = arith.mulf %23, %25 : vector<8x128xf32>
    %c1 = arith.constant 1 : index
    %c0_14 = arith.constant 0 : index
    %27 = vector.load %arg4[%c1, %c0_14] : memref<8x128xf32, #tpu.memory_space<vmem>>, vector<1x128xf32>
    %28 = vector.broadcast %27 : vector<1x128xf32> to vector<8x128xf32>
    %29 = arith.addf %26, %28 : vector<8x128xf32>
    %cst_15 = arith.constant 0.000000e+00 : f32
    %30 = vector.broadcast %cst_15 : f32 to vector<8x128xf32>
    %31 = arith.cmpf oge, %29, %30 : vector<8x128xf32>
    %cst_16 = arith.constant 1.000000e-01 : f32
    %32 = vector.broadcast %cst_16 : f32 to vector<8x128xf32>
    %33 = arith.mulf %32, %29 : vector<8x128xf32>
    %34 = arith.select %31, %29, %33 : vector<8x128xi1>, vector<8x128xf32>
    %35 = arith.addf %34, %21 : vector<8x128xf32>
    %c0_17 = arith.constant 0 : index
    %c0_18 = arith.constant 0 : index
    %36 = vector.load %arg5[%c0_17, %c0_18] : memref<8x128xf32, #tpu.memory_space<vmem>>, vector<8x128xf32>
    tpu.vector_store %arg5[%c0_17, %c0_18], %35 {strides = array<i32>} : memref<8x128xf32, #tpu.memory_space<vmem>>, vector<8x128xf32>,
    return
  }
  func.func @transform_0(%arg0: i32) -> (i32, i32) {
    %c0_i32 = arith.constant 0 : i32
    %c0_i32_0 = arith.constant 0 : i32
    return %arg0, %c0_i32 : i32, i32
  }
  func.func @transform_1(%arg0: i32) -> (i32, i32) {
    %c0_i32 = arith.constant 0 : i32
    %c0_i32_0 = arith.constant 0 : i32
    %c0_i32_1 = arith.constant 0 : i32
    return %c0_i32, %c0_i32_0 : i32, i32
  }
  func.func @transform_2(%arg0: i32) -> (i32, i32) {
    %c0_i32 = arith.constant 0 : i32
    %c0_i32_0 = arith.constant 0 : i32
    %c0_i32_1 = arith.constant 0 : i32
    return %c0_i32, %c0_i32_0 : i32, i32
  }
  func.func @transform_3(%arg0: i32) -> (i32, i32) {
    %c0_i32 = arith.constant 0 : i32
    %c0_i32_0 = arith.constant 0 : i32
    %c0_i32_1 = arith.constant 0 : i32
    return %c0_i32, %c0_i32_0 : i32, i32
  }
  func.func @transform_4(%arg0: i32) -> (i32, i32) {
    %c0_i32 = arith.constant 0 : i32
    %c0_i32_0 = arith.constant 0 : i32
    return %arg0, %c0_i32 : i32, i32
  }
}

</mosaic_0001>

<llo_original>
// kernel: tpu_custom_call.1
$region0: #{tpu_custom_call.1}
  #allocation0 [shape = 'u32[]', space=smem, size = 0x4, offset = 0x4, fixed_abs, tag = 'smem constant byte address 0x4 - core index']
  #allocation1 [shape = 'u32[144,128]{1,0:T(1,128)}', space=vmem, size = 0x12000, scoped, tag = 'internal scratch']
  %s0 = inlined_call_operand.hbm [shape: f32[24,128], index: 0, kind: input, shape index: {}]
  %s1 = inlined_call_operand.hbm [shape: f32[128,256], index: 1, kind: input, shape index: {}]
  %s2 = inlined_call_operand.hbm [shape: f32[128,128], index: 2, kind: input, shape index: {}]
  %s3 = inlined_call_operand.vmem [shape: f32[8,128], index: 3, kind: input, shape index: {}]
  %s4 = inlined_call_operand.hbm [shape: f32[24,128], index: 4, kind: output, shape index: {}]
  %s5 = sld [smem:[#allocation0]]
  $region61: #{tpu_custom_call.1} parent=0
    _
  %s7 = ssub.s32 1, %s5
  %s8 = scalar_select 0, %s7, %s5
  $region1: #{tpu_custom_call.1} parent=0
    #allocation2 [shape = 'u8[8192]{0}', space=vmem, size = 0x2000, scoped, tag = 'input window, operand 0']
    #allocation3 [shape = 's32[2]{0}', space=sflag, size = 0x8, scoped, tag = 'scoped memory for tpu_custom_call.1']
    #allocation4 [shape = 's32[2]{0}', space=sflag, size = 0x8, scoped, tag = 'scoped memory for tpu_custom_call.1']
    #allocation5 [shape = 'u8[131072]{0}', space=vmem, size = 0x20000, scoped, tag = 'input window, operand 1, single buffered']
    #allocation6 [shape = 's32[1]{0}', space=sflag, size = 0x4, scoped, tag = 'scoped memory for tpu_custom_call.1']
    #allocation7 [shape = 'u8[65536]{0}', space=vmem, size = 0x10000, scoped, tag = 'input window, operand 2, single buffered']
    #allocation8 [shape = 'u8[8192]{0}', space=vmem, size = 0x2000, scoped, tag = 'output window, operand 0']
    %9 = vsyncpa [#allocation3], 0
    %s10 = scalar_lea.sflag [#allocation3], 1
    %11 = vsyncpa %s10, 0
    %12 = vsyncpa [#allocation6], 0
    %13 = vsyncpa [#allocation4], 0
    %s14 = scalar_lea.sflag [#allocation4], 1
    %15 = vsyncpa %s14, 0
    loop: start=0, step=1, limit=5
    $region2: #{tpu_custom_call.1} parent=1 // loop_pre_header
      _
    $region3: #{tpu_custom_call.1} parent=1 // loop_header
      %s17 = sphi 0, %s21
      %p18 = scmp.ge.s32.totalorder %s17, 5
      %s27 = sphi 0, %s29
      %s30 = sphi 0, %s27
      %s31 = sphi 0, %s30
      %s47 = sphi 0, %s31
      %s51 = sphi 0, %s51
      %s53 = sphi 0, %s51
      %s54 = sphi 0, %s53
      %s68 = sphi 0, %s54
      %s72 = sphi 0, %s72
      %s74 = sphi 0, %s72
      %s75 = sphi 0, %s74
      %s89 = sphi 0, %s75
      %s93 = sphi 0, %s93
      %s95 = sphi 0, %s93
      %s96 = sphi 0, %s95
      %s110 = sphi 0, %s96
      %s116 = sphi 0, %s118
      %s119 = sphi 0, %s116
      %s120 = sphi 0, %s119
      %s136 = sphi 0, %s120
    $region4: #{tpu_custom_call.1} parent=1 // loop_header_branch
      %20 = sbr.rel (%p18) target = $region8
    $region5: #{tpu_custom_call.1} parent=1 // loop_body
      %s22 = ssub.s32 %s17, 1
      %s23 = ssub.s32 %s17, 2
      %s24 = sadd.s32 %s17, 1
      %s25 = ssub.s32 %s17, %s24
      %p26 = scmp.eq.s32.totalorder %s25, 0
      %s28 = sadd.s32 %s27, 1
      %s29 = scalar_select %p26, %s27, %s28
      %p32 = pneg %p26
      %p33 = scmp.eq.s32.totalorder %s17, 2
      %p34 = por %p32, %p33
      %p35 = scmp.ne.s32.totalorder %s27, %s30
      %p36 = scmp.eq.s32.totalorder %s17, 0
      %p37 = por %p35, %p36
      %p38 = scmp.ne.s32.totalorder %s27, %s30
      %p39 = scmp.eq.s32.totalorder %s22, 2
      %p40 = por %p38, %p39
      %p41 = scmp.ne.s32.totalorder %s30, %s31
      %p42 = scmp.eq.s32.totalorder %s22, 0
      %p43 = por %p41, %p42
      %p44 = scmp.ne.s32.totalorder %s30, %s31
      %p45 = scmp.eq.s32.totalorder %s23, 2
      %p46 = por %p44, %p45
      %p48 = scmp.ne.s32.totalorder %s31, %s47
      %p49 = scmp.eq.s32.totalorder %s23, 0
      %p50 = por %p48, %p49
      %s52 = sadd.s32 %s51, 1
      %p55 = scmp.eq.s32.totalorder %s17, 2
      %p56 = scmp.ne.s32.totalorder %s51, %s53
      %p57 = scmp.eq.s32.totalorder %s17, 0
      %p58 = por %p56, %p57
      %p59 = scmp.ne.s32.totalorder %s51, %s53
      %p60 = scmp.eq.s32.totalorder %s22, 2
      %p61 = por %p59, %p60
      %p62 = scmp.ne.s32.totalorder %s53, %s54
      %p63 = scmp.eq.s32.totalorder %s22, 0
      %p64 = por %p62, %p63
      %p65 = scmp.ne.s32.totalorder %s53, %s54
      %p66 = scmp.eq.s32.totalorder %s23, 2
      %p67 = por %p65, %p66
      %p69 = scmp.ne.s32.totalorder %s54, %s68
      %p70 = scmp.eq.s32.totalorder %s23, 0
      %p71 = por %p69, %p70
      %s73 = sadd.s32 %s72, 1
      %p76 = scmp.eq.s32.totalorder %s17, 2
      %p77 = scmp.ne.s32.totalorder %s72, %s74
      %p78 = scmp.eq.s32.totalorder %s17, 0
      %p79 = por %p77, %p78
      %p80 = scmp.ne.s32.totalorder %s72, %s74
      %p81 = scmp.eq.s32.totalorder %s22, 2
      %p82 = por %p80, %p81
      %p83 = scmp.ne.s32.totalorder %s74, %s75
      %p84 = scmp.eq.s32.totalorder %s22, 0
      %p85 = por %p83, %p84
      %p86 = scmp.ne.s32.totalorder %s74, %s75
      %p87 = scmp.eq.s32.totalorder %s23, 2
      %p88 = por %p86, %p87
      %p90 = scmp.ne.s32.totalorder %s75, %s89
      %p91 = scmp.eq.s32.totalorder %s23, 0
      %p92 = por %p90, %p91
      %s94 = sadd.s32 %s93, 1
      %p97 = scmp.eq.s32.totalorder %s17, 2
      %p98 = scmp.ne.s32.totalorder %s93, %s95
      %p99 = scmp.eq.s32.totalorder %s17, 0
      %p100 = por %p98, %p99
      %p101 = scmp.ne.s32.totalorder %s93, %s95
      %p102 = scmp.eq.s32.totalorder %s22, 2
      %p103 = por %p101, %p102
      %p104 = scmp.ne.s32.totalorder %s95, %s96
      %p105 = scmp.eq.s32.totalorder %s22, 0
      %p106 = por %p104, %p105
      %p107 = scmp.ne.s32.totalorder %s95, %s96
      %p108 = scmp.eq.s32.totalorder %s23, 2
      %p109 = por %p107, %p108
      %p111 = scmp.ne.s32.totalorder %s96, %s110
      %p112 = scmp.eq.s32.totalorder %s23, 0
      %p113 = por %p111, %p112
      %s114 = ssub.s32 %s17, %s24
      %p115 = scmp.eq.s32.totalorder %s114, 0
      %s117 = sadd.s32 %s116, 1
      %s118 = scalar_select %p115, %s116, %s117
      %p121 = pneg %p115
      %p122 = scmp.eq.s32.totalorder %s17, 2
      %p123 = por %p121, %p122
      %p124 = scmp.ne.s32.totalorder %s116, %s119
      %p125 = scmp.eq.s32.totalorder %s17, 0
      %p126 = por %p124, %p125
      %p127 = scmp.ne.s32.totalorder %s116, %s119
      %p128 = scmp.eq.s32.totalorder %s22, 2
      %p129 = por %p127, %p128
      %p130 = scmp.ne.s32.totalorder %s119, %s120
      %p131 = scmp.eq.s32.totalorder %s22, 0
      %p132 = por %p130, %p131
      %p133 = scmp.ne.s32.totalorder %s119, %s120
      %p134 = scmp.eq.s32.totalorder %s23, 2
      %p135 = por %p133, %p134
      %p137 = scmp.ne.s32.totalorder %s120, %s136
      %p138 = scmp.eq.s32.totalorder %s23, 0
      %p139 = por %p137, %p138
      %p140 = scmp.le.s32.totalorder 1, %s17
      %p141 = scmp.lt.s32.totalorder %s17, 4
      %p142 = pnand %p140, %p141
      %p143 = pneg %p142
      // Predicated region
      $region9: #{tpu_custom_call.1} parent=5 // pred_check
        _
      $region10: #{tpu_custom_call.1} parent=5 // pred_check_branch
        %145 = sbr.rel (%p142) target = $region12
      $region11: #{tpu_custom_call.1} parent=5 // pred_region
        %s146 = ssub.s32 %s17, 1
        // Predicated region
        $region13: #{tpu_custom_call.1} parent=11 // pred_check
          %p147 = pneg %p64
        $region14: #{tpu_custom_call.1} parent=11 // pred_check_branch
          %149 = sbr.rel (%p147) target = $region16
        $region15: #{tpu_custom_call.1} parent=11 // pred_region
          %s151 = ssub.s32 4096, 4096
          %152 = vsyncadd [#allocation6], %s151
          %s153 = sshll.u32 [#allocation5], 4
          %s154 = int_to_ptr.vmem [resolvable:$true] %s153
          %159 = dma.hbm_to_vmem [thread:$0]  %s1, 4096, %s154, [#allocation6], 256, 256, 16
        $region16: #{tpu_custom_call.1} parent=11 // pred_fallthru
          _
        // Predicated region
        $region17: #{tpu_custom_call.1} parent=11 // pred_check
          %p160 = pneg %p85
        $region18: #{tpu_custom_call.1} parent=11 // pred_check_branch
          %162 = sbr.rel (%p160) target = $region20
        $region19: #{tpu_custom_call.1} parent=11 // pred_region
          %s164 = ssub.s32 2048, 2048
          %165 = vsyncadd [#allocation6], %s164
          %s166 = sshll.u32 [#allocation7], 4
          %s167 = int_to_ptr.vmem [resolvable:$true] %s166
          %172 = dma.hbm_to_vmem [thread:$0]  %s2, 2048, %s167, [#allocation6], 128, 128, 8
        $region20: #{tpu_custom_call.1} parent=11 // pred_fallthru
          _
        // Predicated region
        $region21: #{tpu_custom_call.1} parent=11 // pred_check
          %p173 = pneg %p106
        $region22: #{tpu_custom_call.1} parent=11 // pred_check_branch
          %175 = sbr.rel (%p173) target = $region24
        $region23: #{tpu_custom_call.1} parent=11 // pred_region
          _
        $region24: #{tpu_custom_call.1} parent=11 // pred_fallthru
          _
      $region12: #{tpu_custom_call.1} parent=5 // pred_fallthru
        _
      %p176 = scmp.lt.s32.totalorder %s17, 3
      // Predicated region
      $region25: #{tpu_custom_call.1} parent=5 // pred_check
        %p177 = pneg %p176
      $region26: #{tpu_custom_call.1} parent=5 // pred_check_branch
        %179 = sbr.rel (%p177) target = $region28
      $region27: #{tpu_custom_call.1} parent=5 // pred_region
        // Predicated region
        $region29: #{tpu_custom_call.1} parent=27 // pred_check
          %p180 = pneg %p37
        $region30: #{tpu_custom_call.1} parent=27 // pred_check_branch
          %182 = sbr.rel (%p180) target = $region32
        $region31: #{tpu_custom_call.1} parent=27 // pred_region
          %s183 = sand.u32 %s27, 1
          %s184 = scalar_lea.sflag [#allocation3], %s183
          %s185 = sand.u32 %s27, 1
          %s186 = smul.addr %s185, 8
          %s187 = scalar_lea.vmem [#allocation2], %s186
          %s189 = ssub.s32 128, 128
          %190 = vsyncadd %s184, %s189
          %s191 = smul.addr %s17, 128
          %s192 = scalar_lea.hbm %s0, %s191
          %s194 = sshll.u32 %s187, 4
          %s195 = int_to_ptr.vmem [resolvable:$true] %s194
          %197 = dma.hbm_to_vmem [thread:$0]  %s192, 128, %s195, %s184
        $region32: #{tpu_custom_call.1} parent=27 // pred_fallthru
          _
      $region28: #{tpu_custom_call.1} parent=5 // pred_fallthru
        _
      %p198 = scmp.le.s32.totalorder 1, %s17
      %p199 = scmp.lt.s32.totalorder %s17, 4
      %p200 = pnand %p198, %p199
      %p201 = pneg %p200
      // Predicated region
      $region33: #{tpu_custom_call.1} parent=5 // pred_check
        _
      $region34: #{tpu_custom_call.1} parent=5 // pred_check_branch
        %203 = sbr.rel (%p200) target = $region36
      $region35: #{tpu_custom_call.1} parent=5 // pred_region
        %s204 = ssub.s32 %s17, 1
        %s205 = sand.u32 %s30, 1
        %s206 = scalar_lea.sflag [#allocation3], %s205
        %s207 = sand.u32 %s30, 1
        %s208 = smul.addr %s207, 8
        %s209 = scalar_lea.vmem [#allocation2], %s208
        // Predicated region
        $region37: #{tpu_custom_call.1} parent=35 // pred_check
          %p210 = pneg %p43
        $region38: #{tpu_custom_call.1} parent=35 // pred_check_branch
          %212 = sbr.rel (%p210) target = $region40
        $region39: #{tpu_custom_call.1} parent=35 // pred_region
          %213 = dma.done %s206, 128
        $region40: #{tpu_custom_call.1} parent=35 // pred_fallthru
          _
        // Predicated region
        $region41: #{tpu_custom_call.1} parent=35 // pred_check
          %p214 = pneg %p64
        $region42: #{tpu_custom_call.1} parent=35 // pred_check_branch
          %216 = sbr.rel (%p214) target = $region44
        $region43: #{tpu_custom_call.1} parent=35 // pred_region
          %217 = dma.done [#allocation6], 4096
        $region44: #{tpu_custom_call.1} parent=35 // pred_fallthru
          _
        // Predicated region
        $region45: #{tpu_custom_call.1} parent=35 // pred_check
          %p218 = pneg %p85
        $region46: #{tpu_custom_call.1} parent=35 // pred_check_branch
          %220 = sbr.rel (%p218) target = $region48
        $region47: #{tpu_custom_call.1} parent=35 // pred_region
          %221 = dma.done [#allocation6], 2048
        $region48: #{tpu_custom_call.1} parent=35 // pred_fallthru
          _
        %s222 = sand.u32 %s30, 1
        %s223 = scalar_lea.sflag [#allocation3], %s222
        %s224 = sand.u32 %s30, 1
        %s225 = smul.addr %s224, 8
        %s226 = scalar_lea.vmem [#allocation2], %s225
        %p227 = pneg %p43
        %p228 = pneg %p40
        %p229 = pneg %p64
        %p230 = pneg %p61
        %p231 = pneg %p85
        %p232 = pneg %p82
        %p233 = pneg %p106
        %p234 = pneg %p103
        %p235 = pneg %p132
        %p236 = pneg %p129
        %s237 = sand.u32 %s119, 1
        %s238 = scalar_lea.sflag [#allocation4], %s237
        %s239 = sand.u32 %s119, 1
        %s240 = smul.addr %s239, 8
        %s241 = scalar_lea.vmem [#allocation8], %s240
        %v242 = vld [vmem:[%s209] sm:$0xff]
        %v243 = vld [vmem:[#allocation5] sm:$0xff]
        %v244 = vld [vmem:[#allocation5 + $0x8] sm:$0xff]
        %v245 = vld [vmem:[#allocation5 + $0x10] sm:$0xff]
        %v246 = vld [vmem:[#allocation5 + $0x18] sm:$0xff]
        %v247 = vld [vmem:[#allocation5 + $0x20] sm:$0xff]
        %v248 = vld [vmem:[#allocation5 + $0x28] sm:$0xff]
        %v249 = vld [vmem:[#allocation5 + $0x30] sm:$0xff]
        %v250 = vld [vmem:[#allocation5 + $0x38] sm:$0xff]
        %v251 = vld [vmem:[#allocation5 + $0x40] sm:$0xff]
        %v252 = vld [vmem:[#allocation5 + $0x48] sm:$0xff]
        %v253 = vld [vmem:[#allocation5 + $0x50] sm:$0xff]
        %v254 = vld [vmem:[#allocation5 + $0x58] sm:$0xff]
        %v255 = vld [vmem:[#allocation5 + $0x60] sm:$0xff]
        %v256 = vld [vmem:[#allocation5 + $0x68] sm:$0xff]
        %v257 = vld [vmem:[#allocation5 + $0x70] sm:$0xff]
        %v258 = vld [vmem:[#allocation5 + $0x78] sm:$0xff]
        %v259 = vld [vmem:[#allocation5 + $0x80] sm:$0xff]
        %v260 = vld [vmem:[#allocation5 + $0x88] sm:$0xff]
        %v261 = vld [vmem:[#allocation5 + $0x90] sm:$0xff]
        %v262 = vld [vmem:[#allocation5 + $0x98] sm:$0xff]
        %v263 = vld [vmem:[#allocation5 + $0xa0] sm:$0xff]
        %v264 = vld [vmem:[#allocation5 + $0xa8] sm:$0xff]
        %v265 = vld [vmem:[#allocation5 + $0xb0] sm:$0xff]
        %v266 = vld [vmem:[#allocation5 + $0xb8] sm:$0xff]
        %v267 = vld [vmem:[#allocation5 + $0xc0] sm:$0xff]
        %v268 = vld [vmem:[#allocation5 + $0xc8] sm:$0xff]
        %v269 = vld [vmem:[#allocation5 + $0xd0] sm:$0xff]
        %v270 = vld [vmem:[#allocation5 + $0xd8] sm:$0xff]
        %v271 = vld [vmem:[#allocation5 + $0xe0] sm:$0xff]
        %v272 = vld [vmem:[#allocation5 + $0xe8] sm:$0xff]
        %v273 = vld [vmem:[#allocation5 + $0xf0] sm:$0xff]
        %v274 = vld [vmem:[#allocation5 + $0xf8] sm:$0xff]
        %v275 = vand.u32 %v244, 4294901760
        %276 = vmatprep.subr.mxu0 %v275
        %v277 = vand.u32 %v243, 4294901760
        %278 = vmatpush1.msra.mxu0 %v277
        %v279 = vand.u32 %v246, 4294901760
        %280 = vmatprep.subr.mxu0 %v279
        %v281 = vand.u32 %v245, 4294901760
        %282 = vmatpush1.msra.mxu0 %v281
        %v283 = vand.u32 %v248, 4294901760
        %284 = vmatprep.subr.mxu0 %v283
        %v285 = vand.u32 %v247, 4294901760
        %286 = vmatpush1.msra.mxu0 %v285
        %v287 = vand.u32 %v250, 4294901760
        %288 = vmatprep.subr.mxu0 %v287
        %v289 = vand.u32 %v249, 4294901760
        %290 = vmatpush1.msra.mxu0 %v289
        %v291 = vand.u32 %v252, 4294901760
        %292 = vmatprep.subr.mxu0 %v291
        %v293 = vand.u32 %v251, 4294901760
        %294 = vmatpush1.msra.mxu0 %v293
        %v295 = vand.u32 %v254, 4294901760
        %296 = vmatprep.subr.mxu0 %v295
        %v297 = vand.u32 %v253, 4294901760
        %298 = vmatpush1.msra.mxu0 %v297
        %v299 = vand.u32 %v256, 4294901760
        %300 = vmatprep.subr.mxu0 %v299
        %v301 = vand.u32 %v255, 4294901760
        %302 = vmatpush1.msra.mxu0 %v301
        %v303 = vand.u32 %v258, 4294901760
        %304 = vmatprep.subr.mxu0 %v303
        %v305 = vand.u32 %v257, 4294901760
        %306 = vmatpush1.msra.mxu0 %v305
        %v307 = vand.u32 %v260, 4294901760
        %308 = vmatprep.subr.mxu0 %v307
        %v309 = vand.u32 %v259, 4294901760
        %310 = vmatpush1.msra.mxu0 %v309
        %v311 = vand.u32 %v262, 4294901760
        %312 = vmatprep.subr.mxu0 %v311
        %v313 = vand.u32 %v261, 4294901760
        %314 = vmatpush1.msra.mxu0 %v313
        %v315 = vand.u32 %v264, 4294901760
        %316 = vmatprep.subr.mxu0 %v315
        %v317 = vand.u32 %v263, 4294901760
        %318 = vmatpush1.msra.mxu0 %v317
        %v319 = vand.u32 %v266, 4294901760
        %320 = vmatprep.subr.mxu0 %v319
        %v321 = vand.u32 %v265, 4294901760
        %322 = vmatpush1.msra.mxu0 %v321
        %v323 = vand.u32 %v268, 4294901760
        %324 = vmatprep.subr.mxu0 %v323
        %v325 = vand.u32 %v267, 4294901760
        %326 = vmatpush1.msra.mxu0 %v325
        %v327 = vand.u32 %v270, 4294901760
        %328 = vmatprep.subr.mxu0 %v327
        %v329 = vand.u32 %v269, 4294901760
        %330 = vmatpush1.msra.mxu0 %v329
        %v331 = vand.u32 %v272, 4294901760
        %332 = vmatprep.subr.mxu0 %v331
        %v333 = vand.u32 %v271, 4294901760
        %334 = vmatpush1.msra.mxu0 %v333
        %v335 = vand.u32 %v274, 4294901760
        %336 = vmatprep.subr.mxu0 %v335
        %v337 = vand.u32 %v273, 4294901760
        %338 = vmatpush1.msra.mxu0 %v337
        %339 = vmatprep.subr.mxu0 0.0
        %340 = vmatpush1.msra.mxu0 0.0
        %341 = vmatprep.subr.mxu0 0.0
        %342 = vmatpush1.msra.mxu0 0.0
        %343 = vmatprep.subr.mxu0 0.0
        %344 = vmatpush1.msra.mxu0 0.0
        %345 = vmatprep.subr.mxu0 0.0
        %346 = vmatpush1.msra.mxu0 0.0
        %347 = vmatprep.subr.mxu0 0.0
        %348 = vmatpush1.msra.mxu0 0.0
        %349 = vmatprep.subr.mxu0 0.0
        %350 = vmatpush1.msra.mxu0 0.0
        %351 = vmatprep.subr.mxu0 0.0
        %352 = vmatpush1.msra.mxu0 0.0
        %353 = vmatprep.subr.mxu0 0.0
        %354 = vmatpush1.msra.mxu0 0.0
        %355 = vmatprep.subr.mxu0 0.0
        %356 = vmatpush1.msra.mxu0 0.0
        %357 = vmatprep.subr.mxu0 0.0
        %358 = vmatpush1.msra.mxu0 0.0
        %359 = vmatprep.subr.mxu0 0.0
        %360 = vmatpush1.msra.mxu0 0.0
        %361 = vmatprep.subr.mxu0 0.0
        %362 = vmatpush1.msra.mxu0 0.0
        %363 = vmatprep.subr.mxu0 0.0
        %364 = vmatpush1.msra.mxu0 0.0
        %365 = vmatprep.subr.mxu0 0.0
        %366 = vmatpush1.msra.mxu0 0.0
        %367 = vmatprep.subr.mxu0 0.0
        %368 = vmatpush1.msra.mxu0 0.0
        %369 = vmatprep.subr.mxu0 0.0
        %370 = vmatpush1.msra.mxu0 0.0
        %371 = vmatprep.mubr.f32.mxu0 0.0
        %v372 = vand.u32 %v242, 4294901760
        %v373 = vsub.f32 %v242, %v372
        %v374 = vand.u32 %v373, 4294901760
        %v375 = vsub.f32 %v373, %v374
        %v376 = vand.u32 %v375, 4294901760
        %377 = vmatmul.mubr.f32.gmra.mrb[0].mxu0 %v376
        %v378 = vpop.f32.mrb[0].mxu0
        %v379 = vadd.f32 0.0, %v378
        %v380 = vpop.f32.mrb[0].mxu0
        %v381 = vadd.f32 0.0, %v380
        %382 = vdwg.mxu0
        %v383 = vand.u32 %v244, 4294901760
        %v384 = vsub.f32 %v244, %v383
        %v385 = vand.u32 %v384, 4294901760
        %v386 = vsub.f32 %v384, %v385
        %v387 = vand.u32 %v386, 4294901760
        %388 = vmatprep.subr.mxu0 %v387
        %v389 = vand.u32 %v243, 4294901760
        %v390 = vsub.f32 %v243, %v389
        %v391 = vand.u32 %v390, 4294901760
        %v392 = vsub.f32 %v390, %v391
        %v393 = vand.u32 %v392, 4294901760
        %394 = vmatpush1.msra.mxu0 %v393
        %v395 = vand.u32 %v246, 4294901760
        %v396 = vsub.f32 %v246, %v395
        %v397 = vand.u32 %v396, 4294901760
        %v398 = vsub.f32 %v396, %v397
        %v399 = vand.u32 %v398, 4294901760
        %400 = vmatprep.subr.mxu0 %v399
        %v401 = vand.u32 %v245, 4294901760
        %v402 = vsub.f32 %v245, %v401
        %v403 = vand.u32 %v402, 4294901760
        %v404 = vsub.f32 %v402, %v403
        %v405 = vand.u32 %v404, 4294901760
        %406 = vmatpush1.msra.mxu0 %v405
        %v407 = vand.u32 %v248, 4294901760
        %v408 = vsub.f32 %v248, %v407
        %v409 = vand.u32 %v408, 4294901760
        %v410 = vsub.f32 %v408, %v409
        %v411 = vand.u32 %v410, 4294901760
        %412 = vmatprep.subr.mxu0 %v411
        %v413 = vand.u32 %v247, 4294901760
        %v414 = vsub.f32 %v247, %v413
        %v415 = vand.u32 %v414, 4294901760
        %v416 = vsub.f32 %v414, %v415
        %v417 = vand.u32 %v416, 4294901760
        %418 = vmatpush1.msra.mxu0 %v417
        %v419 = vand.u32 %v250, 4294901760
        %v420 = vsub.f32 %v250, %v419
        %v421 = vand.u32 %v420, 4294901760
        %v422 = vsub.f32 %v420, %v421
        %v423 = vand.u32 %v422, 4294901760
        %424 = vmatprep.subr.mxu0 %v423
        %v425 = vand.u32 %v249, 4294901760
        %v426 = vsub.f32 %v249, %v425
        %v427 = vand.u32 %v426, 4294901760
        %v428 = vsub.f32 %v426, %v427
        %v429 = vand.u32 %v428, 4294901760
        %430 = vmatpush1.msra.mxu0 %v429
        %v431 = vand.u32 %v252, 4294901760
        %v432 = vsub.f32 %v252, %v431
        %v433 = vand.u32 %v432, 4294901760
        %v434 = vsub.f32 %v432, %v433
        %v435 = vand.u32 %v434, 4294901760
        %436 = vmatprep.subr.mxu0 %v435
        %v437 = vand.u32 %v251, 4294901760
        %v438 = vsub.f32 %v251, %v437
        %v439 = vand.u32 %v438, 4294901760
        %v440 = vsub.f32 %v438, %v439
        %v441 = vand.u32 %v440, 4294901760
        %442 = vmatpush1.msra.mxu0 %v441
        %v443 = vand.u32 %v254, 4294901760
        %v444 = vsub.f32 %v254, %v443
        %v445 = vand.u32 %v444, 4294901760
        %v446 = vsub.f32 %v444, %v445
        %v447 = vand.u32 %v446, 4294901760
        %448 = vmatprep.subr.mxu0 %v447
        %v449 = vand.u32 %v253, 4294901760
        %v450 = vsub.f32 %v253, %v449
        %v451 = vand.u32 %v450, 4294901760
        %v452 = vsub.f32 %v450, %v451
        %v453 = vand.u32 %v452, 4294901760
        %454 = vmatpush1.msra.mxu0 %v453
        %v455 = vand.u32 %v256, 4294901760
        %v456 = vsub.f32 %v256, %v455
        %v457 = vand.u32 %v456, 4294901760
        %v458 = vsub.f32 %v456, %v457
        %v459 = vand.u32 %v458, 4294901760
        %460 = vmatprep.subr.mxu0 %v459
        %v461 = vand.u32 %v255, 4294901760
        %v462 = vsub.f32 %v255, %v461
        %v463 = vand.u32 %v462, 4294901760
        %v464 = vsub.f32 %v462, %v463
        %v465 = vand.u32 %v464, 4294901760
        %466 = vmatpush1.msra.mxu0 %v465
        %v467 = vand.u32 %v258, 4294901760
        %v468 = vsub.f32 %v258, %v467
        %v469 = vand.u32 %v468, 4294901760
        %v470 = vsub.f32 %v468, %v469
        %v471 = vand.u32 %v470, 4294901760
        %472 = vmatprep.subr.mxu0 %v471
        %v473 = vand.u32 %v257, 4294901760
        %v474 = vsub.f32 %v257, %v473
        %v475 = vand.u32 %v474, 4294901760
        %v476 = vsub.f32 %v474, %v475
        %v477 = vand.u32 %v476, 4294901760
        %478 = vmatpush1.msra.mxu0 %v477
        %v479 = vand.u32 %v260, 4294901760
        %v480 = vsub.f32 %v260, %v479
        %v481 = vand.u32 %v480, 4294901760
        %v482 = vsub.f32 %v480, %v481
        %v483 = vand.u32 %v482, 4294901760
        %484 = vmatprep.subr.mxu0 %v483
        %v485 = vand.u32 %v259, 4294901760
        %v486 = vsub.f32 %v259, %v485
        %v487 = vand.u32 %v486, 4294901760
        %v488 = vsub.f32 %v486, %v487
        %v489 = vand.u32 %v488, 4294901760
        %490 = vmatpush1.msra.mxu0 %v489
        %v491 = vand.u32 %v262, 4294901760
        %v492 = vsub.f32 %v262, %v491
        %v493 = vand.u32 %v492, 4294901760
        %v494 = vsub.f32 %v492, %v493
        %v495 = vand.u32 %v494, 4294901760
        %496 = vmatprep.subr.mxu0 %v495
        %v497 = vand.u32 %v261, 4294901760
        %v498 = vsub.f32 %v261, %v497
        %v499 = vand.u32 %v498, 4294901760
        %v500 = vsub.f32 %v498, %v499
        %v501 = vand.u32 %v500, 4294901760
        %502 = vmatpush1.msra.mxu0 %v501
        %v503 = vand.u32 %v264, 4294901760
        %v504 = vsub.f32 %v264, %v503
        %v505 = vand.u32 %v504, 4294901760
        %v506 = vsub.f32 %v504, %v505
        %v507 = vand.u32 %v506, 4294901760
        %508 = vmatprep.subr.mxu0 %v507
        %v509 = vand.u32 %v263, 4294901760
        %v510 = vsub.f32 %v263, %v509
        %v511 = vand.u32 %v510, 4294901760
        %v512 = vsub.f32 %v510, %v511
        %v513 = vand.u32 %v512, 4294901760
        %514 = vmatpush1.msra.mxu0 %v513
        %v515 = vand.u32 %v266, 4294901760
        %v516 = vsub.f32 %v266, %v515
        %v517 = vand.u32 %v516, 4294901760
        %v518 = vsub.f32 %v516, %v517
        %v519 = vand.u32 %v518, 4294901760
        %520 = vmatprep.subr.mxu0 %v519
        %v521 = vand.u32 %v265, 4294901760
        %v522 = vsub.f32 %v265, %v521
        %v523 = vand.u32 %v522, 4294901760
        %v524 = vsub.f32 %v522, %v523
        %v525 = vand.u32 %v524, 4294901760
        %526 = vmatpush1.msra.mxu0 %v525
        %v527 = vand.u32 %v268, 4294901760
        %v528 = vsub.f32 %v268, %v527
        %v529 = vand.u32 %v528, 4294901760
        %v530 = vsub.f32 %v528, %v529
        %v531 = vand.u32 %v530, 4294901760
        %532 = vmatprep.subr.mxu0 %v531
        %v533 = vand.u32 %v267, 4294901760
        %v534 = vsub.f32 %v267, %v533
        %v535 = vand.u32 %v534, 4294901760
        %v536 = vsub.f32 %v534, %v535
        %v537 = vand.u32 %v536, 4294901760
        %538 = vmatpush1.msra.mxu0 %v537
        %v539 = vand.u32 %v270, 4294901760
        %v540 = vsub.f32 %v270, %v539
        %v541 = vand.u32 %v540, 4294901760
        %v542 = vsub.f32 %v540, %v541
        %v543 = vand.u32 %v542, 4294901760
        %544 = vmatprep.subr.mxu0 %v543
        %v545 = vand.u32 %v269, 4294901760
        %v546 = vsub.f32 %v269, %v545
        %v547 = vand.u32 %v546, 4294901760
        %v548 = vsub.f32 %v546, %v547
        %v549 = vand.u32 %v548, 4294901760
        %550 = vmatpush1.msra.mxu0 %v549
        %v551 = vand.u32 %v272, 4294901760
        %v552 = vsub.f32 %v272, %v551
        %v553 = vand.u32 %v552, 4294901760
        %v554 = vsub.f32 %v552, %v553
        %v555 = vand.u32 %v554, 4294901760
        %556 = vmatprep.subr.mxu0 %v555
        %v557 = vand.u32 %v271, 4294901760
        %v558 = vsub.f32 %v271, %v557
        %v559 = vand.u32 %v558, 4294901760
        %v560 = vsub.f32 %v558, %v559
        %v561 = vand.u32 %v560, 4294901760
        %562 = vmatpush1.msra.mxu0 %v561
        %v563 = vand.u32 %v274, 4294901760
        %v564 = vsub.f32 %v274, %v563
        %v565 = vand.u32 %v564, 4294901760
        %v566 = vsub.f32 %v564, %v565
        %v567 = vand.u32 %v566, 4294901760
        %568 = vmatprep.subr.mxu0 %v567
        %v569 = vand.u32 %v273, 4294901760
        %v570 = vsub.f32 %v273, %v569
        %v571 = vand.u32 %v570, 4294901760
        %v572 = vsub.f32 %v570, %v571
        %v573 = vand.u32 %v572, 4294901760
        %574 = vmatpush1.msra.mxu0 %v573
        %575 = vmatprep.subr.mxu0 0.0
        %576 = vmatpush1.msra.mxu0 0.0
        %577 = vmatprep.subr.mxu0 0.0
        %578 = vmatpush1.msra.mxu0 0.0
        %579 = vmatprep.subr.mxu0 0.0
        %580 = vmatpush1.msra.mxu0 0.0
        %581 = vmatprep.subr.mxu0 0.0
        %582 = vmatpush1.msra.mxu0 0.0
        %583 = vmatprep.subr.mxu0 0.0
        %584 = vmatpush1.msra.mxu0 0.0
        %585 = vmatprep.subr.mxu0 0.0
        %586 = vmatpush1.msra.mxu0 0.0
        %587 = vmatprep.subr.mxu0 0.0
        %588 = vmatpush1.msra.mxu0 0.0
        %589 = vmatprep.subr.mxu0 0.0
        %590 = vmatpush1.msra.mxu0 0.0
        %591 = vmatprep.subr.mxu0 0.0
        %592 = vmatpush1.msra.mxu0 0.0
        %593 = vmatprep.subr.mxu0 0.0
        %594 = vmatpush1.msra.mxu0 0.0
        %595 = vmatprep.subr.mxu0 0.0
        %596 = vmatpush1.msra.mxu0 0.0
        %597 = vmatprep.subr.mxu0 0.0
        %598 = vmatpush1.msra.mxu0 0.0
        %599 = vmatprep.subr.mxu0 0.0
        %600 = vmatpush1.msra.mxu0 0.0
        %601 = vmatprep.subr.mxu0 0.0
        %602 = vmatpush1.msra.mxu0 0.0
        %603 = vmatprep.subr.mxu0 0.0
        %604 = vmatpush1.msra.mxu0 0.0
        %605 = vmatprep.subr.mxu0 0.0
        %606 = vmatpush1.msra.mxu0 0.0
        %607 = vmatprep.mubr.f32.mxu0 0.0
        %v608 = vand.u32 %v242, 4294901760
        %609 = vmatmul.mubr.f32.gmra.mrb[0].mxu0 %v608
        %v610 = vpop.f32.mrb[0].mxu0
        %v611 = vadd.f32 %v379, %v610
        %v612 = vpop.f32.mrb[0].mxu0
        %v613 = vadd.f32 %v381, %v612
        %614 = vdwg.mxu0
        %v615 = vand.u32 %v244, 4294901760
        %v616 = vsub.f32 %v244, %v615
        %617 = vmatprep.subr.mxu0 %v616
        %v618 = vand.u32 %v243, 4294901760
        %v619 = vsub.f32 %v243, %v618
        %620 = vmatpush1.msra.mxu0 %v619
        %v621 = vand.u32 %v246, 4294901760
        %v622 = vsub.f32 %v246, %v621
        %623 = vmatprep.subr.mxu0 %v622
        %v624 = vand.u32 %v245, 4294901760
        %v625 = vsub.f32 %v245, %v624
        %626 = vmatpush1.msra.mxu0 %v625
        %v627 = vand.u32 %v248, 4294901760
        %v628 = vsub.f32 %v248, %v627
        %629 = vmatprep.subr.mxu0 %v628
        %v630 = vand.u32 %v247, 4294901760
        %v631 = vsub.f32 %v247, %v630
        %632 = vmatpush1.msra.mxu0 %v631
        %v633 = vand.u32 %v250, 4294901760
        %v634 = vsub.f32 %v250, %v633
        %635 = vmatprep.subr.mxu0 %v634
        %v636 = vand.u32 %v249, 4294901760
        %v637 = vsub.f32 %v249, %v636
        %638 = vmatpush1.msra.mxu0 %v637
        %v639 = vand.u32 %v252, 4294901760
        %v640 = vsub.f32 %v252, %v639
        %641 = vmatprep.subr.mxu0 %v640
        %v642 = vand.u32 %v251, 4294901760
        %v643 = vsub.f32 %v251, %v642
        %644 = vmatpush1.msra.mxu0 %v643
        %v645 = vand.u32 %v254, 4294901760
        %v646 = vsub.f32 %v254, %v645
        %647 = vmatprep.subr.mxu0 %v646
        %v648 = vand.u32 %v253, 4294901760
        %v649 = vsub.f32 %v253, %v648
        %650 = vmatpush1.msra.mxu0 %v649
        %v651 = vand.u32 %v256, 4294901760
        %v652 = vsub.f32 %v256, %v651
        %653 = vmatprep.subr.mxu0 %v652
        %v654 = vand.u32 %v255, 4294901760
        %v655 = vsub.f32 %v255, %v654
        %656 = vmatpush1.msra.mxu0 %v655
        %v657 = vand.u32 %v258, 4294901760
        %v658 = vsub.f32 %v258, %v657
        %659 = vmatprep.subr.mxu0 %v658
        %v660 = vand.u32 %v257, 4294901760
        %v661 = vsub.f32 %v257, %v660
        %662 = vmatpush1.msra.mxu0 %v661
        %v663 = vand.u32 %v260, 4294901760
        %v664 = vsub.f32 %v260, %v663
        %665 = vmatprep.subr.mxu0 %v664
        %v666 = vand.u32 %v259, 4294901760
        %v667 = vsub.f32 %v259, %v666
        %668 = vmatpush1.msra.mxu0 %v667
        %v669 = vand.u32 %v262, 4294901760
        %v670 = vsub.f32 %v262, %v669
        %671 = vmatprep.subr.mxu0 %v670
        %v672 = vand.u32 %v261, 4294901760
        %v673 = vsub.f32 %v261, %v672
        %674 = vmatpush1.msra.mxu0 %v673
        %v675 = vand.u32 %v264, 4294901760
        %v676 = vsub.f32 %v264, %v675
        %677 = vmatprep.subr.mxu0 %v676
        %v678 = vand.u32 %v263, 4294901760
        %v679 = vsub.f32 %v263, %v678
        %680 = vmatpush1.msra.mxu0 %v679
        %v681 = vand.u32 %v266, 4294901760
        %v682 = vsub.f32 %v266, %v681
        %683 = vmatprep.subr.mxu0 %v682
        %v684 = vand.u32 %v265, 4294901760
        %v685 = vsub.f32 %v265, %v684
        %686 = vmatpush1.msra.mxu0 %v685
        %v687 = vand.u32 %v268, 4294901760
        %v688 = vsub.f32 %v268, %v687
        %689 = vmatprep.subr.mxu0 %v688
        %v690 = vand.u32 %v267, 4294901760
        %v691 = vsub.f32 %v267, %v690
        %692 = vmatpush1.msra.mxu0 %v691
        %v693 = vand.u32 %v270, 4294901760
        %v694 = vsub.f32 %v270, %v693
        %695 = vmatprep.subr.mxu0 %v694
        %v696 = vand.u32 %v269, 4294901760
        %v697 = vsub.f32 %v269, %v696
        %698 = vmatpush1.msra.mxu0 %v697
        %v699 = vand.u32 %v272, 4294901760
        %v700 = vsub.f32 %v272, %v699
        %701 = vmatprep.subr.mxu0 %v700
        %v702 = vand.u32 %v271, 4294901760
        %v703 = vsub.f32 %v271, %v702
        %704 = vmatpush1.msra.mxu0 %v703
        %v705 = vand.u32 %v274, 4294901760
        %v706 = vsub.f32 %v274, %v705
        %707 = vmatprep.subr.mxu0 %v706
        %v708 = vand.u32 %v273, 4294901760
        %v709 = vsub.f32 %v273, %v708
        %710 = vmatpush1.msra.mxu0 %v709
        %711 = vmatprep.subr.mxu0 0.0
        %712 = vmatpush1.msra.mxu0 0.0
        %713 = vmatprep.subr.mxu0 0.0
        %714 = vmatpush1.msra.mxu0 0.0
        %715 = vmatprep.subr.mxu0 0.0
        %716 = vmatpush1.msra.mxu0 0.0
        %717 = vmatprep.subr.mxu0 0.0
        %718 = vmatpush1.msra.mxu0 0.0
        %719 = vmatprep.subr.mxu0 0.0
        %720 = vmatpush1.msra.mxu0 0.0
        %721 = vmatprep.subr.mxu0 0.0
        %722 = vmatpush1.msra.mxu0 0.0
        %723 = vmatprep.subr.mxu0 0.0
        %724 = vmatpush1.msra.mxu0 0.0
        %725 = vmatprep.subr.mxu0 0.0
        %726 = vmatpush1.msra.mxu0 0.0
        %727 = vmatprep.subr.mxu0 0.0
        %728 = vmatpush1.msra.mxu0 0.0
        %729 = vmatprep.subr.mxu0 0.0
        %730 = vmatpush1.msra.mxu0 0.0
        %731 = vmatprep.subr.mxu0 0.0
        %732 = vmatpush1.msra.mxu0 0.0
        %733 = vmatprep.subr.mxu0 0.0
        %734 = vmatpush1.msra.mxu0 0.0
        %735 = vmatprep.subr.mxu0 0.0
        %736 = vmatpush1.msra.mxu0 0.0
        %737 = vmatprep.subr.mxu0 0.0
        %738 = vmatpush1.msra.mxu0 0.0
        %739 = vmatprep.subr.mxu0 0.0
        %740 = vmatpush1.msra.mxu0 0.0
        %741 = vmatprep.subr.mxu0 0.0
        %742 = vmatpush1.msra.mxu0 0.0
        %743 = vmatprep.mubr.f32.mxu0 0.0
        %v744 = vand.u32 %v242, 4294901760
        %v745 = vsub.f32 %v242, %v744
        %746 = vmatmul.mubr.f32.gmra.mrb[0].mxu0 %v745
        %v747 = vpop.f32.mrb[0].mxu0
        %v748 = vadd.f32 %v611, %v747
        %v749 = vpop.f32.mrb[0].mxu0
        %v750 = vadd.f32 %v613, %v749
        %751 = vdwg.mxu0
        %v752 = vand.u32 %v244, 4294901760
        %753 = vmatprep.subr.mxu0 %v752
        %v754 = vand.u32 %v243, 4294901760
        %755 = vmatpush1.msra.mxu0 %v754
        %v756 = vand.u32 %v246, 4294901760
        %757 = vmatprep.subr.mxu0 %v756
        %v758 = vand.u32 %v245, 4294901760
        %759 = vmatpush1.msra.mxu0 %v758
        %v760 = vand.u32 %v248, 4294901760
        %761 = vmatprep.subr.mxu0 %v760
        %v762 = vand.u32 %v247, 4294901760
        %763 = vmatpush1.msra.mxu0 %v762
        %v764 = vand.u32 %v250, 4294901760
        %765 = vmatprep.subr.mxu0 %v764
        %v766 = vand.u32 %v249, 4294901760
        %767 = vmatpush1.msra.mxu0 %v766
        %v768 = vand.u32 %v252, 4294901760
        %769 = vmatprep.subr.mxu0 %v768
        %v770 = vand.u32 %v251, 4294901760
        %771 = vmatpush1.msra.mxu0 %v770
        %v772 = vand.u32 %v254, 4294901760
        %773 = vmatprep.subr.mxu0 %v772
        %v774 = vand.u32 %v253, 4294901760
        %775 = vmatpush1.msra.mxu0 %v774
        %v776 = vand.u32 %v256, 4294901760
        %777 = vmatprep.subr.mxu0 %v776
        %v778 = vand.u32 %v255, 4294901760
        %779 = vmatpush1.msra.mxu0 %v778
        %v780 = vand.u32 %v258, 4294901760
        %781 = vmatprep.subr.mxu0 %v780
        %v782 = vand.u32 %v257, 4294901760
        %783 = vmatpush1.msra.mxu0 %v782
        %v784 = vand.u32 %v260, 4294901760
        %785 = vmatprep.subr.mxu0 %v784
        %v786 = vand.u32 %v259, 4294901760
        %787 = vmatpush1.msra.mxu0 %v786
        %v788 = vand.u32 %v262, 4294901760
        %789 = vmatprep.subr.mxu0 %v788
        %v790 = vand.u32 %v261, 4294901760
        %791 = vmatpush1.msra.mxu0 %v790
        %v792 = vand.u32 %v264, 4294901760
        %793 = vmatprep.subr.mxu0 %v792
        %v794 = vand.u32 %v263, 4294901760
        %795 = vmatpush1.msra.mxu0 %v794
        %v796 = vand.u32 %v266, 4294901760
        %797 = vmatprep.subr.mxu0 %v796
        %v798 = vand.u32 %v265, 4294901760
        %799 = vmatpush1.msra.mxu0 %v798
        %v800 = vand.u32 %v268, 4294901760
        %801 = vmatprep.subr.mxu0 %v800
        %v802 = vand.u32 %v267, 4294901760
        %803 = vmatpush1.msra.mxu0 %v802
        %v804 = vand.u32 %v270, 4294901760
        %805 = vmatprep.subr.mxu0 %v804
        %v806 = vand.u32 %v269, 4294901760
        %807 = vmatpush1.msra.mxu0 %v806
        %v808 = vand.u32 %v272, 4294901760
        %809 = vmatprep.subr.mxu0 %v808
        %v810 = vand.u32 %v271, 4294901760
        %811 = vmatpush1.msra.mxu0 %v810
        %v812 = vand.u32 %v274, 4294901760
        %813 = vmatprep.subr.mxu0 %v812
        %v814 = vand.u32 %v273, 4294901760
        %815 = vmatpush1.msra.mxu0 %v814
        %816 = vmatprep.subr.mxu0 0.0
        %817 = vmatpush1.msra.mxu0 0.0
        %818 = vmatprep.subr.mxu0 0.0
        %819 = vmatpush1.msra.mxu0 0.0
        %820 = vmatprep.subr.mxu0 0.0
        %821 = vmatpush1.msra.mxu0 0.0
        %822 = vmatprep.subr.mxu0 0.0
        %823 = vmatpush1.msra.mxu0 0.0
        %824 = vmatprep.subr.mxu0 0.0
        %825 = vmatpush1.msra.mxu0 0.0
        %826 = vmatprep.subr.mxu0 0.0
        %827 = vmatpush1.msra.mxu0 0.0
        %828 = vmatprep.subr.mxu0 0.0
        %829 = vmatpush1.msra.mxu0 0.0
        %830 = vmatprep.subr.mxu0 0.0
        %831 = vmatpush1.msra.mxu0 0.0
        %832 = vmatprep.subr.mxu0 0.0
        %833 = vmatpush1.msra.mxu0 0.0
        %834 = vmatprep.subr.mxu0 0.0
        %835 = vmatpush1.msra.mxu0 0.0
        %836 = vmatprep.subr.mxu0 0.0
        %837 = vmatpush1.msra.mxu0 0.0
        %838 = vmatprep.subr.mxu0 0.0
        %839 = vmatpush1.msra.mxu0 0.0
        %840 = vmatprep.subr.mxu0 0.0
        %841 = vmatpush1.msra.mxu0 0.0
        %842 = vmatprep.subr.mxu0 0.0
        %843 = vmatpush1.msra.mxu0 0.0
        %844 = vmatprep.subr.mxu0 0.0
        %845 = vmatpush1.msra.mxu0 0.0
        %846 = vmatprep.subr.mxu0 0.0
        %847 = vmatpush1.msra.mxu0 0.0
        %848 = vmatprep.mubr.f32.mxu0 0.0
        %v849 = vand.u32 %v242, 4294901760
        %v850 = vsub.f32 %v242, %v849
        %v851 = vand.u32 %v850, 4294901760
        %852 = vmatmul.mubr.f32.gmra.mrb[0].mxu0 %v851
        %v853 = vpop.f32.mrb[0].mxu0
        %v854 = vadd.f32 %v748, %v853
        %v855 = vpop.f32.mrb[0].mxu0
        %v856 = vadd.f32 %v750, %v855
        %857 = vdwg.mxu0
        %v858 = vand.u32 %v244, 4294901760
        %v859 = vsub.f32 %v244, %v858
        %v860 = vand.u32 %v859, 4294901760
        %861 = vmatprep.subr.mxu0 %v860
        %v862 = vand.u32 %v243, 4294901760
        %v863 = vsub.f32 %v243, %v862
        %v864 = vand.u32 %v863, 4294901760
        %865 = vmatpush1.msra.mxu0 %v864
        %v866 = vand.u32 %v246, 4294901760
        %v867 = vsub.f32 %v246, %v866
        %v868 = vand.u32 %v867, 4294901760
        %869 = vmatprep.subr.mxu0 %v868
        %v870 = vand.u32 %v245, 4294901760
        %v871 = vsub.f32 %v245, %v870
        %v872 = vand.u32 %v871, 4294901760
        %873 = vmatpush1.msra.mxu0 %v872
        %v874 = vand.u32 %v248, 4294901760
        %v875 = vsub.f32 %v248, %v874
        %v876 = vand.u32 %v875, 4294901760
        %877 = vmatprep.subr.mxu0 %v876
        %v878 = vand.u32 %v247, 4294901760
        %v879 = vsub.f32 %v247, %v878
        %v880 = vand.u32 %v879, 4294901760
        %881 = vmatpush1.msra.mxu0 %v880
        %v882 = vand.u32 %v250, 4294901760
        %v883 = vsub.f32 %v250, %v882
        %v884 = vand.u32 %v883, 4294901760
        %885 = vmatprep.subr.mxu0 %v884
        %v886 = vand.u32 %v249, 4294901760
        %v887 = vsub.f32 %v249, %v886
        %v888 = vand.u32 %v887, 4294901760
        %889 = vmatpush1.msra.mxu0 %v888
        %v890 = vand.u32 %v252, 4294901760
        %v891 = vsub.f32 %v252, %v890
        %v892 = vand.u32 %v891, 4294901760
        %893 = vmatprep.subr.mxu0 %v892
        %v894 = vand.u32 %v251, 4294901760
        %v895 = vsub.f32 %v251, %v894
        %v896 = vand.u32 %v895, 4294901760
        %897 = vmatpush1.msra.mxu0 %v896
        %v898 = vand.u32 %v254, 4294901760
        %v899 = vsub.f32 %v254, %v898
        %v900 = vand.u32 %v899, 4294901760
        %901 = vmatprep.subr.mxu0 %v900
        %v902 = vand.u32 %v253, 4294901760
        %v903 = vsub.f32 %v253, %v902
        %v904 = vand.u32 %v903, 4294901760
        %905 = vmatpush1.msra.mxu0 %v904
        %v906 = vand.u32 %v256, 4294901760
        %v907 = vsub.f32 %v256, %v906
        %v908 = vand.u32 %v907, 4294901760
        %909 = vmatprep.subr.mxu0 %v908
        %v910 = vand.u32 %v255, 4294901760
        %v911 = vsub.f32 %v255, %v910
        %v912 = vand.u32 %v911, 4294901760
        %913 = vmatpush1.msra.mxu0 %v912
        %v914 = vand.u32 %v258, 4294901760
        %v915 = vsub.f32 %v258, %v914
        %v916 = vand.u32 %v915, 4294901760
        %917 = vmatprep.subr.mxu0 %v916
        %v918 = vand.u32 %v257, 4294901760
        %v919 = vsub.f32 %v257, %v918
        %v920 = vand.u32 %v919, 4294901760
        %921 = vmatpush1.msra.mxu0 %v920
        %v922 = vand.u32 %v260, 4294901760
        %v923 = vsub.f32 %v260, %v922
        %v924 = vand.u32 %v923, 4294901760
        %925 = vmatprep.subr.mxu0 %v924
        %v926 = vand.u32 %v259, 4294901760
        %v927 = vsub.f32 %v259, %v926
        %v928 = vand.u32 %v927, 4294901760
        %929 = vmatpush1.msra.mxu0 %v928
        %v930 = vand.u32 %v262, 4294901760
        %v931 = vsub.f32 %v262, %v930
        %v932 = vand.u32 %v931, 4294901760
        %933 = vmatprep.subr.mxu0 %v932
        %v934 = vand.u32 %v261, 4294901760
        %v935 = vsub.f32 %v261, %v934
        %v936 = vand.u32 %v935, 4294901760
        %937 = vmatpush1.msra.mxu0 %v936
        %v938 = vand.u32 %v264, 4294901760
        %v939 = vsub.f32 %v264, %v938
        %v940 = vand.u32 %v939, 4294901760
        %941 = vmatprep.subr.mxu0 %v940
        %v942 = vand.u32 %v263, 4294901760
        %v943 = vsub.f32 %v263, %v942
        %v944 = vand.u32 %v943, 4294901760
        %945 = vmatpush1.msra.mxu0 %v944
        %v946 = vand.u32 %v266, 4294901760
        %v947 = vsub.f32 %v266, %v946
        %v948 = vand.u32 %v947, 4294901760
        %949 = vmatprep.subr.mxu0 %v948
        %v950 = vand.u32 %v265, 4294901760
        %v951 = vsub.f32 %v265, %v950
        %v952 = vand.u32 %v951, 4294901760
        %953 = vmatpush1.msra.mxu0 %v952
        %v954 = vand.u32 %v268, 4294901760
        %v955 = vsub.f32 %v268, %v954
        %v956 = vand.u32 %v955, 4294901760
        %957 = vmatprep.subr.mxu0 %v956
        %v958 = vand.u32 %v267, 4294901760
        %v959 = vsub.f32 %v267, %v958
        %v960 = vand.u32 %v959, 4294901760
        %961 = vmatpush1.msra.mxu0 %v960
        %v962 = vand.u32 %v270, 4294901760
        %v963 = vsub.f32 %v270, %v962
        %v964 = vand.u32 %v963, 4294901760
        %965 = vmatprep.subr.mxu0 %v964
        %v966 = vand.u32 %v269, 4294901760
        %v967 = vsub.f32 %v269, %v966
        %v968 = vand.u32 %v967, 4294901760
        %969 = vmatpush1.msra.mxu0 %v968
        %v970 = vand.u32 %v272, 4294901760
        %v971 = vsub.f32 %v272, %v970
        %v972 = vand.u32 %v971, 4294901760
        %973 = vmatprep.subr.mxu0 %v972
        %v974 = vand.u32 %v271, 4294901760
        %v975 = vsub.f32 %v271, %v974
        %v976 = vand.u32 %v975, 4294901760
        %977 = vmatpush1.msra.mxu0 %v976
        %v978 = vand.u32 %v274, 4294901760
        %v979 = vsub.f32 %v274, %v978
        %v980 = vand.u32 %v979, 4294901760
        %981 = vmatprep.subr.mxu0 %v980
        %v982 = vand.u32 %v273, 4294901760
        %v983 = vsub.f32 %v273, %v982
        %v984 = vand.u32 %v983, 4294901760
        %985 = vmatpush1.msra.mxu0 %v984
        %986 = vmatprep.subr.mxu0 0.0
        %987 = vmatpush1.msra.mxu0 0.0
        %988 = vmatprep.subr.mxu0 0.0
        %989 = vmatpush1.msra.mxu0 0.0
        %990 = vmatprep.subr.mxu0 0.0
        %991 = vmatpush1.msra.mxu0 0.0
        %992 = vmatprep.subr.mxu0 0.0
        %993 = vmatpush1.msra.mxu0 0.0
        %994 = vmatprep.subr.mxu0 0.0
        %995 = vmatpush1.msra.mxu0 0.0
        %996 = vmatprep.subr.mxu0 0.0
        %997 = vmatpush1.msra.mxu0 0.0
        %998 = vmatprep.subr.mxu0 0.0
        %999 = vmatpush1.msra.mxu0 0.0
        %1000 = vmatprep.subr.mxu0 0.0
        %1001 = vmatpush1.msra.mxu0 0.0
        %1002 = vmatprep.subr.mxu0 0.0
        %1003 = vmatpush1.msra.mxu0 0.0
        %1004 = vmatprep.subr.mxu0 0.0
        %1005 = vmatpush1.msra.mxu0 0.0
        %1006 = vmatprep.subr.mxu0 0.0
        %1007 = vmatpush1.msra.mxu0 0.0
        %1008 = vmatprep.subr.mxu0 0.0
        %1009 = vmatpush1.msra.mxu0 0.0
        %1010 = vmatprep.subr.mxu0 0.0
        %1011 = vmatpush1.msra.mxu0 0.0
        %1012 = vmatprep.subr.mxu0 0.0
        %1013 = vmatpush1.msra.mxu0 0.0
        %1014 = vmatprep.subr.mxu0 0.0
        %1015 = vmatpush1.msra.mxu0 0.0
        %1016 = vmatprep.subr.mxu0 0.0
        %1017 = vmatpush1.msra.mxu0 0.0
        %1018 = vmatprep.mubr.f32.mxu0 0.0
        %v1019 = vand.u32 %v242, 4294901760
        %1020 = vmatmul.mubr.f32.gmra.mrb[0].mxu0 %v1019
        %v1021 = vpop.f32.mrb[0].mxu0
        %v1022 = vadd.f32 %v854, %v1021
        %v1023 = vpop.f32.mrb[0].mxu0
        %v1024 = vadd.f32 %v856, %v1023
        %1025 = vdwg.mxu0
        %v1026 = vand.u32 %v244, 4294901760
        %1027 = vmatprep.subr.mxu0 %v1026
        %v1028 = vand.u32 %v243, 4294901760
        %1029 = vmatpush1.msra.mxu0 %v1028
        %v1030 = vand.u32 %v246, 4294901760
        %1031 = vmatprep.subr.mxu0 %v1030
        %v1032 = vand.u32 %v245, 4294901760
        %1033 = vmatpush1.msra.mxu0 %v1032
        %v1034 = vand.u32 %v248, 4294901760
        %1035 = vmatprep.subr.mxu0 %v1034
        %v1036 = vand.u32 %v247, 4294901760
        %1037 = vmatpush1.msra.mxu0 %v1036
        %v1038 = vand.u32 %v250, 4294901760
        %1039 = vmatprep.subr.mxu0 %v1038
        %v1040 = vand.u32 %v249, 4294901760
        %1041 = vmatpush1.msra.mxu0 %v1040
        %v1042 = vand.u32 %v252, 4294901760
        %1043 = vmatprep.subr.mxu0 %v1042
        %v1044 = vand.u32 %v251, 4294901760
        %1045 = vmatpush1.msra.mxu0 %v1044
        %v1046 = vand.u32 %v254, 4294901760
        %1047 = vmatprep.subr.mxu0 %v1046
        %v1048 = vand.u32 %v253, 4294901760
        %1049 = vmatpush1.msra.mxu0 %v1048
        %v1050 = vand.u32 %v256, 4294901760
        %1051 = vmatprep.subr.mxu0 %v1050
        %v1052 = vand.u32 %v255, 4294901760
        %1053 = vmatpush1.msra.mxu0 %v1052
        %v1054 = vand.u32 %v258, 4294901760
        %1055 = vmatprep.subr.mxu0 %v1054
        %v1056 = vand.u32 %v257, 4294901760
        %1057 = vmatpush1.msra.mxu0 %v1056
        %v1058 = vand.u32 %v260, 4294901760
        %1059 = vmatprep.subr.mxu0 %v1058
        %v1060 = vand.u32 %v259, 4294901760
        %1061 = vmatpush1.msra.mxu0 %v1060
        %v1062 = vand.u32 %v262, 4294901760
        %1063 = vmatprep.subr.mxu0 %v1062
        %v1064 = vand.u32 %v261, 4294901760
        %1065 = vmatpush1.msra.mxu0 %v1064
        %v1066 = vand.u32 %v264, 4294901760
        %1067 = vmatprep.subr.mxu0 %v1066
        %v1068 = vand.u32 %v263, 4294901760
        %1069 = vmatpush1.msra.mxu0 %v1068
        %v1070 = vand.u32 %v266, 4294901760
        %1071 = vmatprep.subr.mxu0 %v1070
        %v1072 = vand.u32 %v265, 4294901760
        %1073 = vmatpush1.msra.mxu0 %v1072
        %v1074 = vand.u32 %v268, 4294901760
        %1075 = vmatprep.subr.mxu0 %v1074
        %v1076 = vand.u32 %v267, 4294901760
        %1077 = vmatpush1.msra.mxu0 %v1076
        %v1078 = vand.u32 %v270, 4294901760
        %1079 = vmatprep.subr.mxu0 %v1078
        %v1080 = vand.u32 %v269, 4294901760
        %1081 = vmatpush1.msra.mxu0 %v1080
        %v1082 = vand.u32 %v272, 4294901760
        %1083 = vmatprep.subr.mxu0 %v1082
        %v1084 = vand.u32 %v271, 4294901760
        %1085 = vmatpush1.msra.mxu0 %v1084
        %v1086 = vand.u32 %v274, 4294901760
        %1087 = vmatprep.subr.mxu0 %v1086
        %v1088 = vand.u32 %v273, 4294901760
        %1089 = vmatpush1.msra.mxu0 %v1088
        %1090 = vmatprep.subr.mxu0 0.0
        %1091 = vmatpush1.msra.mxu0 0.0
        %1092 = vmatprep.subr.mxu0 0.0
        %1093 = vmatpush1.msra.mxu0 0.0
        %1094 = vmatprep.subr.mxu0 0.0
        %1095 = vmatpush1.msra.mxu0 0.0
        %1096 = vmatprep.subr.mxu0 0.0
        %1097 = vmatpush1.msra.mxu0 0.0
        %1098 = vmatprep.subr.mxu0 0.0
        %1099 = vmatpush1.msra.mxu0 0.0
        %1100 = vmatprep.subr.mxu0 0.0
        %1101 = vmatpush1.msra.mxu0 0.0
        %1102 = vmatprep.subr.mxu0 0.0
        %1103 = vmatpush1.msra.mxu0 0.0
        %1104 = vmatprep.subr.mxu0 0.0
        %1105 = vmatpush1.msra.mxu0 0.0
        %1106 = vmatprep.subr.mxu0 0.0
        %1107 = vmatpush1.msra.mxu0 0.0
        %1108 = vmatprep.subr.mxu0 0.0
        %1109 = vmatpush1.msra.mxu0 0.0
        %1110 = vmatprep.subr.mxu0 0.0
        %1111 = vmatpush1.msra.mxu0 0.0
        %1112 = vmatprep.subr.mxu0 0.0
        %1113 = vmatpush1.msra.mxu0 0.0
        %1114 = vmatprep.subr.mxu0 0.0
        %1115 = vmatpush1.msra.mxu0 0.0
        %1116 = vmatprep.subr.mxu0 0.0
        %1117 = vmatpush1.msra.mxu0 0.0
        %1118 = vmatprep.subr.mxu0 0.0
        %1119 = vmatpush1.msra.mxu0 0.0
        %1120 = vmatprep.subr.mxu0 0.0
        %1121 = vmatpush1.msra.mxu0 0.0
        %1122 = vmatprep.mubr.f32.mxu0 0.0
        %v1123 = vand.u32 %v242, 4294901760
        %1124 = vmatmul.mubr.f32.gmra.mrb[0].mxu0 %v1123
        %v1125 = vpop.f32.mrb[0].mxu0
        %v1126 = vadd.f32 %v1022, %v1125
        %v1127 = vpop.f32.mrb[0].mxu0
        %v1128 = vadd.f32 %v1024, %v1127
        %1129 = vdwg.mxu0
        %v1130 = vld [vmem:[%s3 + $0x4] sm:$0x1]
        %v1131 = vlaneseq
        %v1132 = vshrl.u32 %v1131, 7
        %v1133 = vsub.s32 0, %v1132
        %v1134 = vrot.slane %v1130, %v1133
        %v1135 = vmul.f32 %v1126, %v1134
        %v1136 = vld [vmem:[%s3] sm:$0x1]
        %v1137 = vlaneseq
        %v1138 = vshrl.u32 %v1137, 7
        %v1139 = vsub.s32 0, %v1138
        %v1140 = vrot.slane %v1136, %v1139
        %v1141 = vadd.f32 %v1135, %v1140
        %vm1142 = vcmp.ge.f32.partialorder %v1141, 0.0
        %v1143 = vmul.f32 %v1141, 0.1
        %v1144 = vsel %vm1142, %v1141, %v1143
        %v1145 = vld [vmem:[%s3 + $0x6] sm:$0x1]
        %v1146 = vlaneseq
        %v1147 = vshrl.u32 %v1146, 7
        %v1148 = vsub.s32 0, %v1147
        %v1149 = vrot.slane %v1145, %v1148
        %v1150 = vmul.f32 %v1128, %v1149
        %v1151 = vld [vmem:[%s3 + $0x2] sm:$0x1]
        %v1152 = vlaneseq
        %v1153 = vshrl.u32 %v1152, 7
        %v1154 = vsub.s32 0, %v1153
        %v1155 = vrot.slane %v1151, %v1154
        %v1156 = vadd.f32 %v1150, %v1155
        %v1157 = vld [vmem:[#allocation7] sm:$0xff]
        %v1158 = vld [vmem:[#allocation7 + $0x8] sm:$0xff]
        %v1159 = vld [vmem:[#allocation7 + $0x10] sm:$0xff]
        %v1160 = vld [vmem:[#allocation7 + $0x18] sm:$0xff]
        %v1161 = vld [vmem:[#allocation7 + $0x20] sm:$0xff]
        %v1162 = vld [vmem:[#allocation7 + $0x28] sm:$0xff]
        %v1163 = vld [vmem:[#allocation7 + $0x30] sm:$0xff]
        %v1164 = vld [vmem:[#allocation7 + $0x38] sm:$0xff]
        %v1165 = vld [vmem:[#allocation7 + $0x40] sm:$0xff]
        %v1166 = vld [vmem:[#allocation7 + $0x48] sm:$0xff]
        %v1167 = vld [vmem:[#allocation7 + $0x50] sm:$0xff]
        %v1168 = vld [vmem:[#allocation7 + $0x58] sm:$0xff]
        %v1169 = vld [vmem:[#allocation7 + $0x60] sm:$0xff]
        %v1170 = vld [vmem:[#allocation7 + $0x68] sm:$0xff]
        %v1171 = vld [vmem:[#allocation7 + $0x70] sm:$0xff]
        %v1172 = vld [vmem:[#allocation7 + $0x78] sm:$0xff]
        %1173 = vmatprep.subr.mxu0 0.0
        %v1174 = vand.u32 %v1157, 4294901760
        %1175 = vmatpush1.msra.mxu0 %v1174
        %1176 = vmatprep.subr.mxu0 0.0
        %v1177 = vand.u32 %v1158, 4294901760
        %1178 = vmatpush1.msra.mxu0 %v1177
        %1179 = vmatprep.subr.mxu0 0.0
        %v1180 = vand.u32 %v1159, 4294901760
        %1181 = vmatpush1.msra.mxu0 %v1180
        %1182 = vmatprep.subr.mxu0 0.0
        %v1183 = vand.u32 %v1160, 4294901760
        %1184 = vmatpush1.msra.mxu0 %v1183
        %1185 = vmatprep.subr.mxu0 0.0
        %v1186 = vand.u32 %v1161, 4294901760
        %1187 = vmatpush1.msra.mxu0 %v1186
        %1188 = vmatprep.subr.mxu0 0.0
        %v1189 = vand.u32 %v1162, 4294901760
        %1190 = vmatpush1.msra.mxu0 %v1189
        %1191 = vmatprep.subr.mxu0 0.0
        %v1192 = vand.u32 %v1163, 4294901760
        %1193 = vmatpush1.msra.mxu0 %v1192
        %1194 = vmatprep.subr.mxu0 0.0
        %v1195 = vand.u32 %v1164, 4294901760
        %1196 = vmatpush1.msra.mxu0 %v1195
        %1197 = vmatprep.subr.mxu0 0.0
        %v1198 = vand.u32 %v1165, 4294901760
        %1199 = vmatpush1.msra.mxu0 %v1198
        %1200 = vmatprep.subr.mxu0 0.0
        %v1201 = vand.u32 %v1166, 4294901760
        %1202 = vmatpush1.msra.mxu0 %v1201
        %1203 = vmatprep.subr.mxu0 0.0
        %v1204 = vand.u32 %v1167, 4294901760
        %1205 = vmatpush1.msra.mxu0 %v1204
        %1206 = vmatprep.subr.mxu0 0.0
        %v1207 = vand.u32 %v1168, 4294901760
        %1208 = vmatpush1.msra.mxu0 %v1207
        %1209 = vmatprep.subr.mxu0 0.0
        %v1210 = vand.u32 %v1169, 4294901760
        %1211 = vmatpush1.msra.mxu0 %v1210
        %1212 = vmatprep.subr.mxu0 0.0
        %v1213 = vand.u32 %v1170, 4294901760
        %1214 = vmatpush1.msra.mxu0 %v1213
        %1215 = vmatprep.subr.mxu0 0.0
        %v1216 = vand.u32 %v1171, 4294901760
        %1217 = vmatpush1.msra.mxu0 %v1216
        %1218 = vmatprep.subr.mxu0 0.0
        %v1219 = vand.u32 %v1172, 4294901760
        %1220 = vmatpush1.msra.mxu0 %v1219
        %1221 = vmatprep.subr.mxu0 0.0
        %1222 = vmatpush1.msra.mxu0 0.0
        %1223 = vmatprep.subr.mxu0 0.0
        %1224 = vmatpush1.msra.mxu0 0.0
        %1225 = vmatprep.subr.mxu0 0.0
        %1226 = vmatpush1.msra.mxu0 0.0
        %1227 = vmatprep.subr.mxu0 0.0
        %1228 = vmatpush1.msra.mxu0 0.0
        %1229 = vmatprep.subr.mxu0 0.0
        %1230 = vmatpush1.msra.mxu0 0.0
        %1231 = vmatprep.subr.mxu0 0.0
        %1232 = vmatpush1.msra.mxu0 0.0
        %1233 = vmatprep.subr.mxu0 0.0
        %1234 = vmatpush1.msra.mxu0 0.0
        %1235 = vmatprep.subr.mxu0 0.0
        %1236 = vmatpush1.msra.mxu0 0.0
        %1237 = vmatprep.subr.mxu0 0.0
        %1238 = vmatpush1.msra.mxu0 0.0
        %1239 = vmatprep.subr.mxu0 0.0
        %1240 = vmatpush1.msra.mxu0 0.0
        %1241 = vmatprep.subr.mxu0 0.0
        %1242 = vmatpush1.msra.mxu0 0.0
        %1243 = vmatprep.subr.mxu0 0.0
        %1244 = vmatpush1.msra.mxu0 0.0
        %1245 = vmatprep.subr.mxu0 0.0
        %1246 = vmatpush1.msra.mxu0 0.0
        %1247 = vmatprep.subr.mxu0 0.0
        %1248 = vmatpush1.msra.mxu0 0.0
        %1249 = vmatprep.subr.mxu0 0.0
        %1250 = vmatpush1.msra.mxu0 0.0
        %1251 = vmatprep.subr.mxu0 0.0
        %1252 = vmatpush1.msra.mxu0 0.0
        %1253 = vmatprep.mubr.f32.mxu0 0.0
        %v1254 = vand.u32 %v1144, 4294901760
        %v1255 = vsub.f32 %v1144, %v1254
        %v1256 = vand.u32 %v1255, 4294901760
        %v1257 = vsub.f32 %v1255, %v1256
        %v1258 = vand.u32 %v1257, 4294901760
        %1259 = vmatmul.mubr.f32.gmra.mrb[0].mxu0 %v1258
        %v1260 = vpop.f32.mrb[0].mxu0
        %v1261 = vadd.f32 0.0, %v1260
        %v1262 = vpop.f32.mrb[0].mxu0
        %1263 = vdwg.mxu0
        %1264 = vmatprep.subr.mxu0 0.0
        %v1265 = vand.u32 %v1157, 4294901760
        %v1266 = vsub.f32 %v1157, %v1265
        %v1267 = vand.u32 %v1266, 4294901760
        %v1268 = vsub.f32 %v1266, %v1267
        %v1269 = vand.u32 %v1268, 4294901760
        %1270 = vmatpush1.msra.mxu0 %v1269
        %1271 = vmatprep.subr.mxu0 0.0
        %v1272 = vand.u32 %v1158, 4294901760
        %v1273 = vsub.f32 %v1158, %v1272
        %v1274 = vand.u32 %v1273, 4294901760
        %v1275 = vsub.f32 %v1273, %v1274
        %v1276 = vand.u32 %v1275, 4294901760
        %1277 = vmatpush1.msra.mxu0 %v1276
        %1278 = vmatprep.subr.mxu0 0.0
        %v1279 = vand.u32 %v1159, 4294901760
        %v1280 = vsub.f32 %v1159, %v1279
        %v1281 = vand.u32 %v1280, 4294901760
        %v1282 = vsub.f32 %v1280, %v1281
        %v1283 = vand.u32 %v1282, 4294901760
        %1284 = vmatpush1.msra.mxu0 %v1283
        %1285 = vmatprep.subr.mxu0 0.0
        %v1286 = vand.u32 %v1160, 4294901760
        %v1287 = vsub.f32 %v1160, %v1286
        %v1288 = vand.u32 %v1287, 4294901760
        %v1289 = vsub.f32 %v1287, %v1288
        %v1290 = vand.u32 %v1289, 4294901760
        %1291 = vmatpush1.msra.mxu0 %v1290
        %1292 = vmatprep.subr.mxu0 0.0
        %v1293 = vand.u32 %v1161, 4294901760
        %v1294 = vsub.f32 %v1161, %v1293
        %v1295 = vand.u32 %v1294, 4294901760
        %v1296 = vsub.f32 %v1294, %v1295
        %v1297 = vand.u32 %v1296, 4294901760
        %1298 = vmatpush1.msra.mxu0 %v1297
        %1299 = vmatprep.subr.mxu0 0.0
        %v1300 = vand.u32 %v1162, 4294901760
        %v1301 = vsub.f32 %v1162, %v1300
        %v1302 = vand.u32 %v1301, 4294901760
        %v1303 = vsub.f32 %v1301, %v1302
        %v1304 = vand.u32 %v1303, 4294901760
        %1305 = vmatpush1.msra.mxu0 %v1304
        %1306 = vmatprep.subr.mxu0 0.0
        %v1307 = vand.u32 %v1163, 4294901760
        %v1308 = vsub.f32 %v1163, %v1307
        %v1309 = vand.u32 %v1308, 4294901760
        %v1310 = vsub.f32 %v1308, %v1309
        %v1311 = vand.u32 %v1310, 4294901760
        %1312 = vmatpush1.msra.mxu0 %v1311
        %1313 = vmatprep.subr.mxu0 0.0
        %v1314 = vand.u32 %v1164, 4294901760
        %v1315 = vsub.f32 %v1164, %v1314
        %v1316 = vand.u32 %v1315, 4294901760
        %v1317 = vsub.f32 %v1315, %v1316
        %v1318 = vand.u32 %v1317, 4294901760
        %1319 = vmatpush1.msra.mxu0 %v1318
        %1320 = vmatprep.subr.mxu0 0.0
        %v1321 = vand.u32 %v1165, 4294901760
        %v1322 = vsub.f32 %v1165, %v1321
        %v1323 = vand.u32 %v1322, 4294901760
        %v1324 = vsub.f32 %v1322, %v1323
        %v1325 = vand.u32 %v1324, 4294901760
        %1326 = vmatpush1.msra.mxu0 %v1325
        %1327 = vmatprep.subr.mxu0 0.0
        %v1328 = vand.u32 %v1166, 4294901760
        %v1329 = vsub.f32 %v1166, %v1328
        %v1330 = vand.u32 %v1329, 4294901760
        %v1331 = vsub.f32 %v1329, %v1330
        %v1332 = vand.u32 %v1331, 4294901760
        %1333 = vmatpush1.msra.mxu0 %v1332
        %1334 = vmatprep.subr.mxu0 0.0
        %v1335 = vand.u32 %v1167, 4294901760
        %v1336 = vsub.f32 %v1167, %v1335
        %v1337 = vand.u32 %v1336, 4294901760
        %v1338 = vsub.f32 %v1336, %v1337
        %v1339 = vand.u32 %v1338, 4294901760
        %1340 = vmatpush1.msra.mxu0 %v1339
        %1341 = vmatprep.subr.mxu0 0.0
        %v1342 = vand.u32 %v1168, 4294901760
        %v1343 = vsub.f32 %v1168, %v1342
        %v1344 = vand.u32 %v1343, 4294901760
        %v1345 = vsub.f32 %v1343, %v1344
        %v1346 = vand.u32 %v1345, 4294901760
        %1347 = vmatpush1.msra.mxu0 %v1346
        %1348 = vmatprep.subr.mxu0 0.0
        %v1349 = vand.u32 %v1169, 4294901760
        %v1350 = vsub.f32 %v1169, %v1349
        %v1351 = vand.u32 %v1350, 4294901760
        %v1352 = vsub.f32 %v1350, %v1351
        %v1353 = vand.u32 %v1352, 4294901760
        %1354 = vmatpush1.msra.mxu0 %v1353
        %1355 = vmatprep.subr.mxu0 0.0
        %v1356 = vand.u32 %v1170, 4294901760
        %v1357 = vsub.f32 %v1170, %v1356
        %v1358 = vand.u32 %v1357, 4294901760
        %v1359 = vsub.f32 %v1357, %v1358
        %v1360 = vand.u32 %v1359, 4294901760
        %1361 = vmatpush1.msra.mxu0 %v1360
        %1362 = vmatprep.subr.mxu0 0.0
        %v1363 = vand.u32 %v1171, 4294901760
        %v1364 = vsub.f32 %v1171, %v1363
        %v1365 = vand.u32 %v1364, 4294901760
        %v1366 = vsub.f32 %v1364, %v1365
        %v1367 = vand.u32 %v1366, 4294901760
        %1368 = vmatpush1.msra.mxu0 %v1367
        %1369 = vmatprep.subr.mxu0 0.0
        %v1370 = vand.u32 %v1172, 4294901760
        %v1371 = vsub.f32 %v1172, %v1370
        %v1372 = vand.u32 %v1371, 4294901760
        %v1373 = vsub.f32 %v1371, %v1372
        %v1374 = vand.u32 %v1373, 4294901760
        %1375 = vmatpush1.msra.mxu0 %v1374
        %1376 = vmatprep.subr.mxu0 0.0
        %1377 = vmatpush1.msra.mxu0 0.0
        %1378 = vmatprep.subr.mxu0 0.0
        %1379 = vmatpush1.msra.mxu0 0.0
        %1380 = vmatprep.subr.mxu0 0.0
        %1381 = vmatpush1.msra.mxu0 0.0
        %1382 = vmatprep.subr.mxu0 0.0
        %1383 = vmatpush1.msra.mxu0 0.0
        %1384 = vmatprep.subr.mxu0 0.0
        %1385 = vmatpush1.msra.mxu0 0.0
        %1386 = vmatprep.subr.mxu0 0.0
        %1387 = vmatpush1.msra.mxu0 0.0
        %1388 = vmatprep.subr.mxu0 0.0
        %1389 = vmatpush1.msra.mxu0 0.0
        %1390 = vmatprep.subr.mxu0 0.0
        %1391 = vmatpush1.msra.mxu0 0.0
        %1392 = vmatprep.subr.mxu0 0.0
        %1393 = vmatpush1.msra.mxu0 0.0
        %1394 = vmatprep.subr.mxu0 0.0
        %1395 = vmatpush1.msra.mxu0 0.0
        %1396 = vmatprep.subr.mxu0 0.0
        %1397 = vmatpush1.msra.mxu0 0.0
        %1398 = vmatprep.subr.mxu0 0.0
        %1399 = vmatpush1.msra.mxu0 0.0
        %1400 = vmatprep.subr.mxu0 0.0
        %1401 = vmatpush1.msra.mxu0 0.0
        %1402 = vmatprep.subr.mxu0 0.0
        %1403 = vmatpush1.msra.mxu0 0.0
        %1404 = vmatprep.subr.mxu0 0.0
        %1405 = vmatpush1.msra.mxu0 0.0
        %1406 = vmatprep.subr.mxu0 0.0
        %1407 = vmatpush1.msra.mxu0 0.0
        %1408 = vmatprep.mubr.f32.mxu0 0.0
        %v1409 = vand.u32 %v1144, 4294901760
        %1410 = vmatmul.mubr.f32.gmra.mrb[0].mxu0 %v1409
        %v1411 = vpop.f32.mrb[0].mxu0
        %v1412 = vadd.f32 %v1261, %v1411
        %v1413 = vpop.f32.mrb[0].mxu0
        %1414 = vdwg.mxu0
        %1415 = vmatprep.subr.mxu0 0.0
        %v1416 = vand.u32 %v1157, 4294901760
        %v1417 = vsub.f32 %v1157, %v1416
        %1418 = vmatpush1.msra.mxu0 %v1417
        %1419 = vmatprep.subr.mxu0 0.0
        %v1420 = vand.u32 %v1158, 4294901760
        %v1421 = vsub.f32 %v1158, %v1420
        %1422 = vmatpush1.msra.mxu0 %v1421
        %1423 = vmatprep.subr.mxu0 0.0
        %v1424 = vand.u32 %v1159, 4294901760
        %v1425 = vsub.f32 %v1159, %v1424
        %1426 = vmatpush1.msra.mxu0 %v1425
        %1427 = vmatprep.subr.mxu0 0.0
        %v1428 = vand.u32 %v1160, 4294901760
        %v1429 = vsub.f32 %v1160, %v1428
        %1430 = vmatpush1.msra.mxu0 %v1429
        %1431 = vmatprep.subr.mxu0 0.0
        %v1432 = vand.u32 %v1161, 4294901760
        %v1433 = vsub.f32 %v1161, %v1432
        %1434 = vmatpush1.msra.mxu0 %v1433
        %1435 = vmatprep.subr.mxu0 0.0
        %v1436 = vand.u32 %v1162, 4294901760
        %v1437 = vsub.f32 %v1162, %v1436
        %1438 = vmatpush1.msra.mxu0 %v1437
        %1439 = vmatprep.subr.mxu0 0.0
        %v1440 = vand.u32 %v1163, 4294901760
        %v1441 = vsub.f32 %v1163, %v1440
        %1442 = vmatpush1.msra.mxu0 %v1441
        %1443 = vmatprep.subr.mxu0 0.0
        %v1444 = vand.u32 %v1164, 4294901760
        %v1445 = vsub.f32 %v1164, %v1444
        %1446 = vmatpush1.msra.mxu0 %v1445
        %1447 = vmatprep.subr.mxu0 0.0
        %v1448 = vand.u32 %v1165, 4294901760
        %v1449 = vsub.f32 %v1165, %v1448
        %1450 = vmatpush1.msra.mxu0 %v1449
        %1451 = vmatprep.subr.mxu0 0.0
        %v1452 = vand.u32 %v1166, 4294901760
        %v1453 = vsub.f32 %v1166, %v1452
        %1454 = vmatpush1.msra.mxu0 %v1453
        %1455 = vmatprep.subr.mxu0 0.0
        %v1456 = vand.u32 %v1167, 4294901760
        %v1457 = vsub.f32 %v1167, %v1456
        %1458 = vmatpush1.msra.mxu0 %v1457
        %1459 = vmatprep.subr.mxu0 0.0
        %v1460 = vand.u32 %v1168, 4294901760
        %v1461 = vsub.f32 %v1168, %v1460
        %1462 = vmatpush1.msra.mxu0 %v1461
        %1463 = vmatprep.subr.mxu0 0.0
        %v1464 = vand.u32 %v1169, 4294901760
        %v1465 = vsub.f32 %v1169, %v1464
        %1466 = vmatpush1.msra.mxu0 %v1465
        %1467 = vmatprep.subr.mxu0 0.0
        %v1468 = vand.u32 %v1170, 4294901760
        %v1469 = vsub.f32 %v1170, %v1468
        %1470 = vmatpush1.msra.mxu0 %v1469
        %1471 = vmatprep.subr.mxu0 0.0
        %v1472 = vand.u32 %v1171, 4294901760
        %v1473 = vsub.f32 %v1171, %v1472
        %1474 = vmatpush1.msra.mxu0 %v1473
        %1475 = vmatprep.subr.mxu0 0.0
        %v1476 = vand.u32 %v1172, 4294901760
        %v1477 = vsub.f32 %v1172, %v1476
        %1478 = vmatpush1.msra.mxu0 %v1477
        %1479 = vmatprep.subr.mxu0 0.0
        %1480 = vmatpush1.msra.mxu0 0.0
        %1481 = vmatprep.subr.mxu0 0.0
        %1482 = vmatpush1.msra.mxu0 0.0
        %1483 = vmatprep.subr.mxu0 0.0
        %1484 = vmatpush1.msra.mxu0 0.0
        %1485 = vmatprep.subr.mxu0 0.0
        %1486 = vmatpush1.msra.mxu0 0.0
        %1487 = vmatprep.subr.mxu0 0.0
        %1488 = vmatpush1.msra.mxu0 0.0
        %1489 = vmatprep.subr.mxu0 0.0
        %1490 = vmatpush1.msra.mxu0 0.0
        %1491 = vmatprep.subr.mxu0 0.0
        %1492 = vmatpush1.msra.mxu0 0.0
        %1493 = vmatprep.subr.mxu0 0.0
        %1494 = vmatpush1.msra.mxu0 0.0
        %1495 = vmatprep.subr.mxu0 0.0
        %1496 = vmatpush1.msra.mxu0 0.0
        %1497 = vmatprep.subr.mxu0 0.0
        %1498 = vmatpush1.msra.mxu0 0.0
        %1499 = vmatprep.subr.mxu0 0.0
        %1500 = vmatpush1.msra.mxu0 0.0
        %1501 = vmatprep.subr.mxu0 0.0
        %1502 = vmatpush1.msra.mxu0 0.0
        %1503 = vmatprep.subr.mxu0 0.0
        %1504 = vmatpush1.msra.mxu0 0.0
        %1505 = vmatprep.subr.mxu0 0.0
        %1506 = vmatpush1.msra.mxu0 0.0
        %1507 = vmatprep.subr.mxu0 0.0
        %1508 = vmatpush1.msra.mxu0 0.0
        %1509 = vmatprep.subr.mxu0 0.0
        %1510 = vmatpush1.msra.mxu0 0.0
        %1511 = vmatprep.mubr.f32.mxu0 0.0
        %v1512 = vand.u32 %v1144, 4294901760
        %v1513 = vsub.f32 %v1144, %v1512
        %1514 = vmatmul.mubr.f32.gmra.mrb[0].mxu0 %v1513
        %v1515 = vpop.f32.mrb[0].mxu0
        %v1516 = vadd.f32 %v1412, %v1515
        %v1517 = vpop.f32.mrb[0].mxu0
        %1518 = vdwg.mxu0
        %1519 = vmatprep.subr.mxu0 0.0
        %v1520 = vand.u32 %v1157, 4294901760
        %1521 = vmatpush1.msra.mxu0 %v1520
        %1522 = vmatprep.subr.mxu0 0.0
        %v1523 = vand.u32 %v1158, 4294901760
        %1524 = vmatpush1.msra.mxu0 %v1523
        %1525 = vmatprep.subr.mxu0 0.0
        %v1526 = vand.u32 %v1159, 4294901760
        %1527 = vmatpush1.msra.mxu0 %v1526
        %1528 = vmatprep.subr.mxu0 0.0
        %v1529 = vand.u32 %v1160, 4294901760
        %1530 = vmatpush1.msra.mxu0 %v1529
        %1531 = vmatprep.subr.mxu0 0.0
        %v1532 = vand.u32 %v1161, 4294901760
        %1533 = vmatpush1.msra.mxu0 %v1532
        %1534 = vmatprep.subr.mxu0 0.0
        %v1535 = vand.u32 %v1162, 4294901760
        %1536 = vmatpush1.msra.mxu0 %v1535
        %1537 = vmatprep.subr.mxu0 0.0
        %v1538 = vand.u32 %v1163, 4294901760
        %1539 = vmatpush1.msra.mxu0 %v1538
        %1540 = vmatprep.subr.mxu0 0.0
        %v1541 = vand.u32 %v1164, 4294901760
        %1542 = vmatpush1.msra.mxu0 %v1541
        %1543 = vmatprep.subr.mxu0 0.0
        %v1544 = vand.u32 %v1165, 4294901760
        %1545 = vmatpush1.msra.mxu0 %v1544
        %1546 = vmatprep.subr.mxu0 0.0
        %v1547 = vand.u32 %v1166, 4294901760
        %1548 = vmatpush1.msra.mxu0 %v1547
        %1549 = vmatprep.subr.mxu0 0.0
        %v1550 = vand.u32 %v1167, 4294901760
        %1551 = vmatpush1.msra.mxu0 %v1550
        %1552 = vmatprep.subr.mxu0 0.0
        %v1553 = vand.u32 %v1168, 4294901760
        %1554 = vmatpush1.msra.mxu0 %v1553
        %1555 = vmatprep.subr.mxu0 0.0
        %v1556 = vand.u32 %v1169, 4294901760
        %1557 = vmatpush1.msra.mxu0 %v1556
        %1558 = vmatprep.subr.mxu0 0.0
        %v1559 = vand.u32 %v1170, 4294901760
        %1560 = vmatpush1.msra.mxu0 %v1559
        %1561 = vmatprep.subr.mxu0 0.0
        %v1562 = vand.u32 %v1171, 4294901760
        %1563 = vmatpush1.msra.mxu0 %v1562
        %1564 = vmatprep.subr.mxu0 0.0
        %v1565 = vand.u32 %v1172, 4294901760
        %1566 = vmatpush1.msra.mxu0 %v1565
        %1567 = vmatprep.subr.mxu0 0.0
        %1568 = vmatpush1.msra.mxu0 0.0
        %1569 = vmatprep.subr.mxu0 0.0
        %1570 = vmatpush1.msra.mxu0 0.0
        %1571 = vmatprep.subr.mxu0 0.0
        %1572 = vmatpush1.msra.mxu0 0.0
        %1573 = vmatprep.subr.mxu0 0.0
        %1574 = vmatpush1.msra.mxu0 0.0
        %1575 = vmatprep.subr.mxu0 0.0
        %1576 = vmatpush1.msra.mxu0 0.0
        %1577 = vmatprep.subr.mxu0 0.0
        %1578 = vmatpush1.msra.mxu0 0.0
        %1579 = vmatprep.subr.mxu0 0.0
        %1580 = vmatpush1.msra.mxu0 0.0
        %1581 = vmatprep.subr.mxu0 0.0
        %1582 = vmatpush1.msra.mxu0 0.0
        %1583 = vmatprep.subr.mxu0 0.0
        %1584 = vmatpush1.msra.mxu0 0.0
        %1585 = vmatprep.subr.mxu0 0.0
        %1586 = vmatpush1.msra.mxu0 0.0
        %1587 = vmatprep.subr.mxu0 0.0
        %1588 = vmatpush1.msra.mxu0 0.0
        %1589 = vmatprep.subr.mxu0 0.0
        %1590 = vmatpush1.msra.mxu0 0.0
        %1591 = vmatprep.subr.mxu0 0.0
        %1592 = vmatpush1.msra.mxu0 0.0
        %1593 = vmatprep.subr.mxu0 0.0
        %1594 = vmatpush1.msra.mxu0 0.0
        %1595 = vmatprep.subr.mxu0 0.0
        %1596 = vmatpush1.msra.mxu0 0.0
        %1597 = vmatprep.subr.mxu0 0.0
        %1598 = vmatpush1.msra.mxu0 0.0
        %1599 = vmatprep.mubr.f32.mxu0 0.0
        %v1600 = vand.u32 %v1144, 4294901760
        %v1601 = vsub.f32 %v1144, %v1600
        %v1602 = vand.u32 %v1601, 4294901760
        %1603 = vmatmul.mubr.f32.gmra.mrb[0].mxu0 %v1602
        %v1604 = vpop.f32.mrb[0].mxu0
        %v1605 = vadd.f32 %v1516, %v1604
        %v1606 = vpop.f32.mrb[0].mxu0
        %1607 = vdwg.mxu0
        %1608 = vmatprep.subr.mxu0 0.0
        %v1609 = vand.u32 %v1157, 4294901760
        %v1610 = vsub.f32 %v1157, %v1609
        %v1611 = vand.u32 %v1610, 4294901760
        %1612 = vmatpush1.msra.mxu0 %v1611
        %1613 = vmatprep.subr.mxu0 0.0
        %v1614 = vand.u32 %v1158, 4294901760
        %v1615 = vsub.f32 %v1158, %v1614
        %v1616 = vand.u32 %v1615, 4294901760
        %1617 = vmatpush1.msra.mxu0 %v1616
        %1618 = vmatprep.subr.mxu0 0.0
        %v1619 = vand.u32 %v1159, 4294901760
        %v1620 = vsub.f32 %v1159, %v1619
        %v1621 = vand.u32 %v1620, 4294901760
        %1622 = vmatpush1.msra.mxu0 %v1621
        %1623 = vmatprep.subr.mxu0 0.0
        %v1624 = vand.u32 %v1160, 4294901760
        %v1625 = vsub.f32 %v1160, %v1624
        %v1626 = vand.u32 %v1625, 4294901760
        %1627 = vmatpush1.msra.mxu0 %v1626
        %1628 = vmatprep.subr.mxu0 0.0
        %v1629 = vand.u32 %v1161, 4294901760
        %v1630 = vsub.f32 %v1161, %v1629
        %v1631 = vand.u32 %v1630, 4294901760
        %1632 = vmatpush1.msra.mxu0 %v1631
        %1633 = vmatprep.subr.mxu0 0.0
        %v1634 = vand.u32 %v1162, 4294901760
        %v1635 = vsub.f32 %v1162, %v1634
        %v1636 = vand.u32 %v1635, 4294901760
        %1637 = vmatpush1.msra.mxu0 %v1636
        %1638 = vmatprep.subr.mxu0 0.0
        %v1639 = vand.u32 %v1163, 4294901760
        %v1640 = vsub.f32 %v1163, %v1639
        %v1641 = vand.u32 %v1640, 4294901760
        %1642 = vmatpush1.msra.mxu0 %v1641
        %1643 = vmatprep.subr.mxu0 0.0
        %v1644 = vand.u32 %v1164, 4294901760
        %v1645 = vsub.f32 %v1164, %v1644
        %v1646 = vand.u32 %v1645, 4294901760
        %1647 = vmatpush1.msra.mxu0 %v1646
        %1648 = vmatprep.subr.mxu0 0.0
        %v1649 = vand.u32 %v1165, 4294901760
        %v1650 = vsub.f32 %v1165, %v1649
        %v1651 = vand.u32 %v1650, 4294901760
        %1652 = vmatpush1.msra.mxu0 %v1651
        %1653 = vmatprep.subr.mxu0 0.0
        %v1654 = vand.u32 %v1166, 4294901760
        %v1655 = vsub.f32 %v1166, %v1654
        %v1656 = vand.u32 %v1655, 4294901760
        %1657 = vmatpush1.msra.mxu0 %v1656
        %1658 = vmatprep.subr.mxu0 0.0
        %v1659 = vand.u32 %v1167, 4294901760
        %v1660 = vsub.f32 %v1167, %v1659
        %v1661 = vand.u32 %v1660, 4294901760
        %1662 = vmatpush1.msra.mxu0 %v1661
        %1663 = vmatprep.subr.mxu0 0.0
        %v1664 = vand.u32 %v1168, 4294901760
        %v1665 = vsub.f32 %v1168, %v1664
        %v1666 = vand.u32 %v1665, 4294901760
        %1667 = vmatpush1.msra.mxu0 %v1666
        %1668 = vmatprep.subr.mxu0 0.0
        %v1669 = vand.u32 %v1169, 4294901760
        %v1670 = vsub.f32 %v1169, %v1669
        %v1671 = vand.u32 %v1670, 4294901760
        %1672 = vmatpush1.msra.mxu0 %v1671
        %1673 = vmatprep.subr.mxu0 0.0
        %v1674 = vand.u32 %v1170, 4294901760
        %v1675 = vsub.f32 %v1170, %v1674
        %v1676 = vand.u32 %v1675, 4294901760
        %1677 = vmatpush1.msra.mxu0 %v1676
        %1678 = vmatprep.subr.mxu0 0.0
        %v1679 = vand.u32 %v1171, 4294901760
        %v1680 = vsub.f32 %v1171, %v1679
        %v1681 = vand.u32 %v1680, 4294901760
        %1682 = vmatpush1.msra.mxu0 %v1681
        %1683 = vmatprep.subr.mxu0 0.0
        %v1684 = vand.u32 %v1172, 4294901760
        %v1685 = vsub.f32 %v1172, %v1684
        %v1686 = vand.u32 %v1685, 4294901760
        %1687 = vmatpush1.msra.mxu0 %v1686
        %1688 = vmatprep.subr.mxu0 0.0
        %1689 = vmatpush1.msra.mxu0 0.0
        %1690 = vmatprep.subr.mxu0 0.0
        %1691 = vmatpush1.msra.mxu0 0.0
        %1692 = vmatprep.subr.mxu0 0.0
        %1693 = vmatpush1.msra.mxu0 0.0
        %1694 = vmatprep.subr.mxu0 0.0
        %1695 = vmatpush1.msra.mxu0 0.0
        %1696 = vmatprep.subr.mxu0 0.0
        %1697 = vmatpush1.msra.mxu0 0.0
        %1698 = vmatprep.subr.mxu0 0.0
        %1699 = vmatpush1.msra.mxu0 0.0
        %1700 = vmatprep.subr.mxu0 0.0
        %1701 = vmatpush1.msra.mxu0 0.0
        %1702 = vmatprep.subr.mxu0 0.0
        %1703 = vmatpush1.msra.mxu0 0.0
        %1704 = vmatprep.subr.mxu0 0.0
        %1705 = vmatpush1.msra.mxu0 0.0
        %1706 = vmatprep.subr.mxu0 0.0
        %1707 = vmatpush1.msra.mxu0 0.0
        %1708 = vmatprep.subr.mxu0 0.0
        %1709 = vmatpush1.msra.mxu0 0.0
        %1710 = vmatprep.subr.mxu0 0.0
        %1711 = vmatpush1.msra.mxu0 0.0
        %1712 = vmatprep.subr.mxu0 0.0
        %1713 = vmatpush1.msra.mxu0 0.0
        %1714 = vmatprep.subr.mxu0 0.0
        %1715 = vmatpush1.msra.mxu0 0.0
        %1716 = vmatprep.subr.mxu0 0.0
        %1717 = vmatpush1.msra.mxu0 0.0
        %1718 = vmatprep.subr.mxu0 0.0
        %1719 = vmatpush1.msra.mxu0 0.0
        %1720 = vmatprep.mubr.f32.mxu0 0.0
        %v1721 = vand.u32 %v1144, 4294901760
        %1722 = vmatmul.mubr.f32.gmra.mrb[0].mxu0 %v1721
        %v1723 = vpop.f32.mrb[0].mxu0
        %v1724 = vadd.f32 %v1605, %v1723
        %v1725 = vpop.f32.mrb[0].mxu0
        %1726 = vdwg.mxu0
        %1727 = vmatprep.subr.mxu0 0.0
        %v1728 = vand.u32 %v1157, 4294901760
        %1729 = vmatpush1.msra.mxu0 %v1728
        %1730 = vmatprep.subr.mxu0 0.0
        %v1731 = vand.u32 %v1158, 4294901760
        %1732 = vmatpush1.msra.mxu0 %v1731
        %1733 = vmatprep.subr.mxu0 0.0
        %v1734 = vand.u32 %v1159, 4294901760
        %1735 = vmatpush1.msra.mxu0 %v1734
        %1736 = vmatprep.subr.mxu0 0.0
        %v1737 = vand.u32 %v1160, 4294901760
        %1738 = vmatpush1.msra.mxu0 %v1737
        %1739 = vmatprep.subr.mxu0 0.0
        %v1740 = vand.u32 %v1161, 4294901760
        %1741 = vmatpush1.msra.mxu0 %v1740
        %1742 = vmatprep.subr.mxu0 0.0
        %v1743 = vand.u32 %v1162, 4294901760
        %1744 = vmatpush1.msra.mxu0 %v1743
        %1745 = vmatprep.subr.mxu0 0.0
        %v1746 = vand.u32 %v1163, 4294901760
        %1747 = vmatpush1.msra.mxu0 %v1746
        %1748 = vmatprep.subr.mxu0 0.0
        %v1749 = vand.u32 %v1164, 4294901760
        %1750 = vmatpush1.msra.mxu0 %v1749
        %1751 = vmatprep.subr.mxu0 0.0
        %v1752 = vand.u32 %v1165, 4294901760
        %1753 = vmatpush1.msra.mxu0 %v1752
        %1754 = vmatprep.subr.mxu0 0.0
        %v1755 = vand.u32 %v1166, 4294901760
        %1756 = vmatpush1.msra.mxu0 %v1755
        %1757 = vmatprep.subr.mxu0 0.0
        %v1758 = vand.u32 %v1167, 4294901760
        %1759 = vmatpush1.msra.mxu0 %v1758
        %1760 = vmatprep.subr.mxu0 0.0
        %v1761 = vand.u32 %v1168, 4294901760
        %1762 = vmatpush1.msra.mxu0 %v1761
        %1763 = vmatprep.subr.mxu0 0.0
        %v1764 = vand.u32 %v1169, 4294901760
        %1765 = vmatpush1.msra.mxu0 %v1764
        %1766 = vmatprep.subr.mxu0 0.0
        %v1767 = vand.u32 %v1170, 4294901760
        %1768 = vmatpush1.msra.mxu0 %v1767
        %1769 = vmatprep.subr.mxu0 0.0
        %v1770 = vand.u32 %v1171, 4294901760
        %1771 = vmatpush1.msra.mxu0 %v1770
        %1772 = vmatprep.subr.mxu0 0.0
        %v1773 = vand.u32 %v1172, 4294901760
        %1774 = vmatpush1.msra.mxu0 %v1773
        %1775 = vmatprep.subr.mxu0 0.0
        %1776 = vmatpush1.msra.mxu0 0.0
        %1777 = vmatprep.subr.mxu0 0.0
        %1778 = vmatpush1.msra.mxu0 0.0
        %1779 = vmatprep.subr.mxu0 0.0
        %1780 = vmatpush1.msra.mxu0 0.0
        %1781 = vmatprep.subr.mxu0 0.0
        %1782 = vmatpush1.msra.mxu0 0.0
        %1783 = vmatprep.subr.mxu0 0.0
        %1784 = vmatpush1.msra.mxu0 0.0
        %1785 = vmatprep.subr.mxu0 0.0
        %1786 = vmatpush1.msra.mxu0 0.0
        %1787 = vmatprep.subr.mxu0 0.0
        %1788 = vmatpush1.msra.mxu0 0.0
        %1789 = vmatprep.subr.mxu0 0.0
        %1790 = vmatpush1.msra.mxu0 0.0
        %1791 = vmatprep.subr.mxu0 0.0
        %1792 = vmatpush1.msra.mxu0 0.0
        %1793 = vmatprep.subr.mxu0 0.0
        %1794 = vmatpush1.msra.mxu0 0.0
        %1795 = vmatprep.subr.mxu0 0.0
        %1796 = vmatpush1.msra.mxu0 0.0
        %1797 = vmatprep.subr.mxu0 0.0
        %1798 = vmatpush1.msra.mxu0 0.0
        %1799 = vmatprep.subr.mxu0 0.0
        %1800 = vmatpush1.msra.mxu0 0.0
        %1801 = vmatprep.subr.mxu0 0.0
        %1802 = vmatpush1.msra.mxu0 0.0
        %1803 = vmatprep.subr.mxu0 0.0
        %1804 = vmatpush1.msra.mxu0 0.0
        %1805 = vmatprep.subr.mxu0 0.0
        %1806 = vmatpush1.msra.mxu0 0.0
        %1807 = vmatprep.mubr.f32.mxu0 0.0
        %v1808 = vand.u32 %v1144, 4294901760
        %1809 = vmatmul.mubr.f32.gmra.mrb[0].mxu0 %v1808
        %v1810 = vpop.f32.mrb[0].mxu0
        %v1811 = vadd.f32 %v1724, %v1810
        %v1812 = vpop.f32.mrb[0].mxu0
        %1813 = vdwg.mxu0
        %v1814 = vld [vmem:[%s3 + $0x5] sm:$0x1]
        %v1815 = vlaneseq
        %v1816 = vshrl.u32 %v1815, 7
        %v1817 = vsub.s32 0, %v1816
        %v1818 = vrot.slane %v1814, %v1817
        %v1819 = vmul.f32 %v1811, %v1818
        %v1820 = vld [vmem:[%s3 + $0x1] sm:$0x1]
        %v1821 = vlaneseq
        %v1822 = vshrl.u32 %v1821, 7
        %v1823 = vsub.s32 0, %v1822
        %v1824 = vrot.slane %v1820, %v1823
        %v1825 = vadd.f32 %v1819, %v1824
        %vm1826 = vcmp.ge.f32.partialorder %v1825, 0.0
        %v1827 = vmul.f32 %v1825, 0.1
        %v1828 = vsel %vm1826, %v1825, %v1827
        %v1829 = vadd.f32 %v1828, %v1156
        %1830 = vst [vmem:[%s241] sm:$0xff] %v1829
        %s1831 = sand.u32 %s119, 1
        %s1832 = scalar_lea.sflag [#allocation4], %s1831
        %s1833 = sand.u32 %s119, 1
        %s1834 = smul.addr %s1833, 8
        %s1835 = scalar_lea.vmem [#allocation8], %s1834
        // Predicated region
        $region49: #{tpu_custom_call.1} parent=35 // pred_check
          %p1836 = pneg %p129
        $region50: #{tpu_custom_call.1} parent=35 // pred_check_branch
          %1838 = sbr.rel (%p1836) target = $region52
        $region51: #{tpu_custom_call.1} parent=35 // pred_region
          %s1840 = ssub.s32 128, 128
          %1841 = vsyncadd %s1832, %s1840
          %s1842 = smul.addr %s22, 128
          %s1843 = scalar_lea.hbm %s4, %s1842
          %s1845 = sshll.u32 %s1835, 4
          %s1846 = int_to_ptr.vmem [resolvable:$true] %s1845
          %1848 = dma.vmem_to_hbm [thread:$0]  %s1846, 128, %s1843, %s1832
        $region52: #{tpu_custom_call.1} parent=35 // pred_fallthru
          _
      $region36: #{tpu_custom_call.1} parent=5 // pred_fallthru
        _
      %p1849 = scmp.le.s32.totalorder 2, %s17
      // Predicated region
      $region53: #{tpu_custom_call.1} parent=5 // pred_check
        %p1850 = pneg %p1849
      $region54: #{tpu_custom_call.1} parent=5 // pred_check_branch
        %1852 = sbr.rel (%p1850) target = $region56
      $region55: #{tpu_custom_call.1} parent=5 // pred_region
        %s1853 = ssub.s32 %s17, 2
        // Predicated region
        $region57: #{tpu_custom_call.1} parent=55 // pred_check
          %p1854 = pneg %p135
        $region58: #{tpu_custom_call.1} parent=55 // pred_check_branch
          %1856 = sbr.rel (%p1854) target = $region60
        $region59: #{tpu_custom_call.1} parent=55 // pred_region
          %s1857 = sand.u32 %s120, 1
          %s1858 = scalar_lea.sflag [#allocation4], %s1857
          %s1859 = sand.u32 %s120, 1
          %s1860 = smul.addr %s1859, 8
          %s1861 = scalar_lea.vmem [#allocation8], %s1860
          %1862 = dma.done %s1858, 128
        $region60: #{tpu_custom_call.1} parent=55 // pred_fallthru
          _
      $region56: #{tpu_custom_call.1} parent=5 // pred_fallthru
        _
    $region6: #{tpu_custom_call.1} parent=1 // loop_footer
      %s21 = sadd.s32 1, %s17
    $region7: #{tpu_custom_call.1} parent=1 // loop_footer_branch
      %16 = sbr.rel target = $region3
    $region8: #{tpu_custom_call.1} parent=1 // loop_exit
      _
    %1863 = vsyncpa [#allocation3], 1
    %s1864 = scalar_lea.sflag [#allocation3], 1
    %1865 = vsyncpa %s1864, 1
    %1866 = vsyncpa [#allocation6], 1
    %1867 = vsyncpa [#allocation4], 1
    %s1868 = scalar_lea.sflag [#allocation4], 1
    %1869 = vsyncpa %s1868, 1

// kernel: tpu_custom_call.1
$region0: #{tpu_custom_call.1}
  #allocation0 [shape = 'u32[]', space=smem, size = 0x4, offset = 0x4, fixed_abs, tag = 'smem constant byte address 0x4 - core index']
  #allocation1 [shape = 'u32[144,128]{1,0:T(1,128)}', space=vmem, size = 0x12000, scoped, tag = 'internal scratch']
  %s0 = inlined_call_operand.hbm [shape: f32[24,128], index: 0, kind: input, shape index: {}]
  %s1 = inlined_call_operand.hbm [shape: f32[128,256], index: 1, kind: input, shape index: {}]
  %s2 = inlined_call_operand.hbm [shape: f32[128,128], index: 2, kind: input, shape index: {}]
  %s3 = inlined_call_operand.vmem [shape: f32[8,128], index: 3, kind: input, shape index: {}]
  %s4 = inlined_call_operand.hbm [shape: f32[24,128], index: 4, kind: output, shape index: {}]
  %s5 = sld [smem:[#allocation0]]
  $region61: #{tpu_custom_call.1} parent=0
    _
  %s7 = ssub.s32 1, %s5
  %s8 = scalar_select 0, %s7, %s5
  $region1: #{tpu_custom_call.1} parent=0
    #allocation2 [shape = 'u8[8192]{0}', space=vmem, size = 0x2000, scoped, tag = 'input window, operand 0']
    #allocation3 [shape = 's32[2]{0}', space=sflag, size = 0x8, scoped, tag = 'scoped memory for tpu_custom_call.1']
    #allocation4 [shape = 's32[2]{0}', space=sflag, size = 0x8, scoped, tag = 'scoped memory for tpu_custom_call.1']
    #allocation5 [shape = 'u8[131072]{0}', space=vmem, size = 0x20000, scoped, tag = 'input window, operand 1, single buffered']
    #allocation6 [shape = 's32[1]{0}', space=sflag, size = 0x4, scoped, tag = 'scoped memory for tpu_custom_call.1']
    #allocation7 [shape = 'u8[65536]{0}', space=vmem, size = 0x10000, scoped, tag = 'input window, operand 2, single buffered']
    #allocation8 [shape = 'u8[8192]{0}', space=vmem, size = 0x2000, scoped, tag = 'output window, operand 0']
    %9 = vsyncpa [#allocation3], 0
    %s10 = scalar_lea.sflag [#allocation3], 1
    %11 = vsyncpa %s10, 0
    %12 = vsyncpa [#allocation6], 0
    %13 = vsyncpa [#allocation4], 0
    %s14 = scalar_lea.sflag [#allocation4], 1
    %15 = vsyncpa %s14, 0
    loop: start=0, step=1, limit=5
    $region2: #{tpu_custom_call.1} parent=1 // loop_pre_header
      _
    $region3: #{tpu_custom_call.1} parent=1 // loop_header
      %s17 = sphi 0, %s21
      %p18 = scmp.ge.s32.totalorder %s17, 5
      %s27 = sphi 0, %s29
      %s30 = sphi 0, %s27
      %s31 = sphi 0, %s30
      %s47 = sphi 0, %s31
      %s51 = sphi 0, %s51
      %s53 = sphi 0, %s51
      %s54 = sphi 0, %s53
      %s68 = sphi 0, %s54
      %s72 = sphi 0, %s72
      %s74 = sphi 0, %s72
      %s75 = sphi 0, %s74
      %s89 = sphi 0, %s75
      %s93 = sphi 0, %s93
      %s95 = sphi 0, %s93
      %s96 = sphi 0, %s95
      %s110 = sphi 0, %s96
      %s116 = sphi 0, %s118
      %s119 = sphi 0, %s116
      %s120 = sphi 0, %s119
      %s136 = sphi 0, %s120
    $region4: #{tpu_custom_call.1} parent=1 // loop_header_branch
      %20 = sbr.rel (%p18) target = $region8
    $region5: #{tpu_custom_call.1} parent=1 // loop_body
      %s22 = ssub.s32 %s17, 1
      %s23 = ssub.s32 %s17, 2
      %s24 = sadd.s32 %s17, 1
      %s25 = ssub.s32 %s17, %s24
      %p26 = scmp.eq.s32.totalorder %s25, 0
      %s28 = sadd.s32 %s27, 1
      %s29 = scalar_select %p26, %s27, %s28
      %p32 = pneg %p26
      %p33 = scmp.eq.s32.totalorder %s17, 2
      %p34 = por %p32, %p33
      %p35 = scmp.ne.s32.totalorder %s27, %s30
      %p36 = scmp.eq.s32.totalorder %s17, 0
      %p37 = por %p35, %p36
      %p38 = scmp.ne.s32.totalorder %s27, %s30
      %p39 = scmp.eq.s32.totalorder %s22, 2
      %p40 = por %p38, %p39
      %p41 = scmp.ne.s32.totalorder %s30, %s31
      %p42 = scmp.eq.s32.totalorder %s22, 0
      %p43 = por %p41, %p42
      %p44 = scmp.ne.s32.totalorder %s30, %s31
      %p45 = scmp.eq.s32.totalorder %s23, 2
      %p46 = por %p44, %p45
      %p48 = scmp.ne.s32.totalorder %s31, %s47
      %p49 = scmp.eq.s32.totalorder %s23, 0
      %p50 = por %p48, %p49
      %s52 = sadd.s32 %s51, 1
      %p55 = scmp.eq.s32.totalorder %s17, 2
      %p56 = scmp.ne.s32.totalorder %s51, %s53
      %p57 = scmp.eq.s32.totalorder %s17, 0
      %p58 = por %p56, %p57
      %p59 = scmp.ne.s32.totalorder %s51, %s53
      %p60 = scmp.eq.s32.totalorder %s22, 2
      %p61 = por %p59, %p60
      %p62 = scmp.ne.s32.totalorder %s53, %s54
      %p63 = scmp.eq.s32.totalorder %s22, 0
      %p64 = por %p62, %p63
      %p65 = scmp.ne.s32.totalorder %s53, %s54
      %p66 = scmp.eq.s32.totalorder %s23, 2
      %p67 = por %p65, %p66
      %p69 = scmp.ne.s32.totalorder %s54, %s68
      %p70 = scmp.eq.s32.totalorder %s23, 0
      %p71 = por %p69, %p70
      %s73 = sadd.s32 %s72, 1
      %p76 = scmp.eq.s32.totalorder %s17, 2
      %p77 = scmp.ne.s32.totalorder %s72, %s74
      %p78 = scmp.eq.s32.totalorder %s17, 0
      %p79 = por %p77, %p78
      %p80 = scmp.ne.s32.totalorder %s72, %s74
      %p81 = scmp.eq.s32.totalorder %s22, 2
      %p82 = por %p80, %p81
      %p83 = scmp.ne.s32.totalorder %s74, %s75
      %p84 = scmp.eq.s32.totalorder %s22, 0
      %p85 = por %p83, %p84
      %p86 = scmp.ne.s32.totalorder %s74, %s75
      %p87 = scmp.eq.s32.totalorder %s23, 2
      %p88 = por %p86, %p87
      %p90 = scmp.ne.s32.totalorder %s75, %s89
      %p91 = scmp.eq.s32.totalorder %s23, 0
      %p92 = por %p90, %p91
      %s94 = sadd.s32 %s93, 1
      %p97 = scmp.eq.s32.totalorder %s17, 2
      %p98 = scmp.ne.s32.totalorder %s93, %s95
      %p99 = scmp.eq.s32.totalorder %s17, 0
      %p100 = por %p98, %p99
      %p101 = scmp.ne.s32.totalorder %s93, %s95
      %p102 = scmp.eq.s32.totalorder %s22, 2
      %p103 = por %p101, %p102
      %p104 = scmp.ne.s32.totalorder %s95, %s96
      %p105 = scmp.eq.s32.totalorder %s22, 0
      %p106 = por %p104, %p105
      %p107 = scmp.ne.s32.totalorder %s95, %s96
      %p108 = scmp.eq.s32.totalorder %s23, 2
      %p109 = por %p107, %p108
      %p111 = scmp.ne.s32.totalorder %s96, %s110
      %p112 = scmp.eq.s32.totalorder %s23, 0
      %p113 = por %p111, %p112
      %s114 = ssub.s32 %s17, %s24
      %p115 = scmp.eq.s32.totalorder %s114, 0
      %s117 = sadd.s32 %s116, 1
      %s118 = scalar_select %p115, %s116, %s117
      %p121 = pneg %p115
      %p122 = scmp.eq.s32.totalorder %s17, 2
      %p123 = por %p121, %p122
      %p124 = scmp.ne.s32.totalorder %s116, %s119
      %p125 = scmp.eq.s32.totalorder %s17, 0
      %p126 = por %p124, %p125
      %p127 = scmp.ne.s32.totalorder %s116, %s119
      %p128 = scmp.eq.s32.totalorder %s22, 2
      %p129 = por %p127, %p128
      %p130 = scmp.ne.s32.totalorder %s119, %s120
      %p131 = scmp.eq.s32.totalorder %s22, 0
      %p132 = por %p130, %p131
      %p133 = scmp.ne.s32.totalorder %s119, %s120
      %p134 = scmp.eq.s32.totalorder %s23, 2
      %p135 = por %p133, %p134
      %p137 = scmp.ne.s32.totalorder %s120, %s136
      %p138 = scmp.eq.s32.totalorder %s23, 0
      %p139 = por %p137, %p138
      %p140 = scmp.le.s32.totalorder 1, %s17
      %p141 = scmp.lt.s32.totalorder %s17, 4
      %p142 = pnand %p140, %p141
      %p143 = pneg %p142
      // Predicated region
      $region9: #{tpu_custom_call.1} parent=5 // pred_check
        _
      $region10: #{tpu_custom_call.1} parent=5 // pred_check_branch
        %145 = sbr.rel (%p142) target = $region12
      $region11: #{tpu_custom_call.1} parent=5 // pred_region
        %s146 = ssub.s32 %s17, 1
        // Predicated region
        $region13: #{tpu_custom_call.1} parent=11 // pred_check
          %p147 = pneg %p64
        $region14: #{tpu_custom_call.1} parent=11 // pred_check_branch
          %149 = sbr.rel (%p147) target = $region16
        $region15: #{tpu_custom_call.1} parent=11 // pred_region
          %s151 = ssub.s32 4096, 4096
          %152 = vsyncadd [#allocation6], %s151
          %s153 = sshll.u32 [#allocation5], 4
          %s154 = int_to_ptr.vmem [resolvable:$true] %s153
          %159 = dma.hbm_to_vmem [thread:$0]  %s1, 4096, %s154, [#allocation6], 256, 256, 16
        $region16: #{tpu_custom_call.1} parent=11 // pred_fallthru
          _
        // Predicated region
        $region17: #{tpu_custom_call.1} parent=11 // pred_check
          %p160 = pneg %p85
        $region18: #{tpu_custom_call.1} parent=11 // pred_check_branch
          %162 = sbr.rel (%p160) target = $region20
        $region19: #{tpu_custom_call.1} parent=11 // pred_region
          %s164 = ssub.s32 2048, 2048
          %165 = vsyncadd [#allocation6], %s164
          %s166 = sshll.u32 [#allocation7], 4
          %s167 = int_to_ptr.vmem [resolvable:$true] %s166
          %172 = dma.hbm_to_vmem [thread:$0]  %s2, 2048, %s167, [#allocation6], 128, 128, 8
        $region20: #{tpu_custom_call.1} parent=11 // pred_fallthru
          _
        // Predicated region
        $region21: #{tpu_custom_call.1} parent=11 // pred_check
          %p173 = pneg %p106
        $region22: #{tpu_custom_call.1} parent=11 // pred_check_branch
          %175 = sbr.rel (%p173) target = $region24
        $region23: #{tpu_custom_call.1} parent=11 // pred_region
          _
        $region24: #{tpu_custom_call.1} parent=11 // pred_fallthru
          _
      $region12: #{tpu_custom_call.1} parent=5 // pred_fallthru
        _
      %p176 = scmp.lt.s32.totalorder %s17, 3
      // Predicated region
      $region25: #{tpu_custom_call.1} parent=5 // pred_check
        %p177 = pneg %p176
      $region26: #{tpu_custom_call.1} parent=5 // pred_check_branch
        %179 = sbr.rel (%p177) target = $region28
      $region27: #{tpu_custom_call.1} parent=5 // pred_region
        // Predicated region
        $region29: #{tpu_custom_call.1} parent=27 // pred_check
          %p180 = pneg %p37
        $region30: #{tpu_custom_call.1} parent=27 // pred_check_branch
          %182 = sbr.rel (%p180) target = $region32
        $region31: #{tpu_custom_call.1} parent=27 // pred_region
          %s183 = sand.u32 %s27, 1
          %s184 = scalar_lea.sflag [#allocation3], %s183
          %s185 = sand.u32 %s27, 1
          %s186 = smul.addr %s185, 8
          %s187 = scalar_lea.vmem [#allocation2], %s186
          %s189 = ssub.s32 128, 128
          %190 = vsyncadd %s184, %s189
          %s191 = smul.addr %s17, 128
          %s192 = scalar_lea.hbm %s0, %s191
          %s194 = sshll.u32 %s187, 4
          %s195 = int_to_ptr.vmem [resolvable:$true] %s194
          %197 = dma.hbm_to_vmem [thread:$0]  %s192, 128, %s195, %s184
        $region32: #{tpu_custom_call.1} parent=27 // pred_fallthru
          _
      $region28: #{tpu_custom_call.1} parent=5 // pred_fallthru
        _
      %p198 = scmp.le.s32.totalorder 1, %s17
      %p199 = scmp.lt.s32.totalorder %s17, 4
      %p200 = pnand %p198, %p199
      %p201 = pneg %p200
      // Predicated region
      $region33: #{tpu_custom_call.1} parent=5 // pred_check
        _
      $region34: #{tpu_custom_call.1} parent=5 // pred_check_branch
        %203 = sbr.rel (%p200) target = $region36
      $region35: #{tpu_custom_call.1} parent=5 // pred_region
        %s204 = ssub.s32 %s17, 1
        %s205 = sand.u32 %s30, 1
        %s206 = scalar_lea.sflag [#allocation3], %s205
        %s207 = sand.u32 %s30, 1
        %s208 = smul.addr %s207, 8
        %s209 = scalar_lea.vmem [#allocation2], %s208
        // Predicated region
        $region37: #{tpu_custom_call.1} parent=35 // pred_check
          %p210 = pneg %p43
        $region38: #{tpu_custom_call.1} parent=35 // pred_check_branch
          %212 = sbr.rel (%p210) target = $region40
        $region39: #{tpu_custom_call.1} parent=35 // pred_region
          %213 = dma.done %s206, 128
        $region40: #{tpu_custom_call.1} parent=35 // pred_fallthru
          _
        // Predicated region
        $region41: #{tpu_custom_call.1} parent=35 // pred_check
          %p214 = pneg %p64
        $region42: #{tpu_custom_call.1} parent=35 // pred_check_branch
          %216 = sbr.rel (%p214) target = $region44
        $region43: #{tpu_custom_call.1} parent=35 // pred_region
          %217 = dma.done [#allocation6], 4096
        $region44: #{tpu_custom_call.1} parent=35 // pred_fallthru
          _
        // Predicated region
        $region45: #{tpu_custom_call.1} parent=35 // pred_check
          %p218 = pneg %p85
        $region46: #{tpu_custom_call.1} parent=35 // pred_check_branch
          %220 = sbr.rel (%p218) target = $region48
        $region47: #{tpu_custom_call.1} parent=35 // pred_region
          %221 = dma.done [#allocation6], 2048
        $region48: #{tpu_custom_call.1} parent=35 // pred_fallthru
          _
        %s222 = sand.u32 %s30, 1
        %s223 = scalar_lea.sflag [#allocation3], %s222
        %s224 = sand.u32 %s30, 1
        %s225 = smul.addr %s224, 8
        %s226 = scalar_lea.vmem [#allocation2], %s225
        %p227 = pneg %p43
        %p228 = pneg %p40
        %p229 = pneg %p64
        %p230 = pneg %p61
        %p231 = pneg %p85
        %p232 = pneg %p82
        %p233 = pneg %p106
        %p234 = pneg %p103
        %p235 = pneg %p132
        %p236 = pneg %p129
        %s237 = sand.u32 %s119, 1
        %s238 = scalar_lea.sflag [#allocation4], %s237
        %s239 = sand.u32 %s119, 1
        %s240 = smul.addr %s239, 8
        %s241 = scalar_lea.vmem [#allocation8], %s240
        %v242 = vld [vmem:[%s209] sm:$0xff]
        %v243 = vld [vmem:[#allocation5] sm:$0xff]
        %v244 = vld [vmem:[#allocation5 + $0x8] sm:$0xff]
        %v245 = vld [vmem:[#allocation5 + $0x10] sm:$0xff]
        %v246 = vld [vmem:[#allocation5 + $0x18] sm:$0xff]
        %v247 = vld [vmem:[#allocation5 + $0x20] sm:$0xff]
        %v248 = vld [vmem:[#allocation5 + $0x28] sm:$0xff]
        %v249 = vld [vmem:[#allocation5 + $0x30] sm:$0xff]
        %v250 = vld [vmem:[#allocation5 + $0x38] sm:$0xff]
        %v251 = vld [vmem:[#allocation5 + $0x40] sm:$0xff]
        %v252 = vld [vmem:[#allocation5 + $0x48] sm:$0xff]
        %v253 = vld [vmem:[#allocation5 + $0x50] sm:$0xff]
        %v254 = vld [vmem:[#allocation5 + $0x58] sm:$0xff]
        %v255 = vld [vmem:[#allocation5 + $0x60] sm:$0xff]
        %v256 = vld [vmem:[#allocation5 + $0x68] sm:$0xff]
        %v257 = vld [vmem:[#allocation5 + $0x70] sm:$0xff]
        %v258 = vld [vmem:[#allocation5 + $0x78] sm:$0xff]
        %v259 = vld [vmem:[#allocation5 + $0x80] sm:$0xff]
        %v260 = vld [vmem:[#allocation5 + $0x88] sm:$0xff]
        %v261 = vld [vmem:[#allocation5 + $0x90] sm:$0xff]
        %v262 = vld [vmem:[#allocation5 + $0x98] sm:$0xff]
        %v263 = vld [vmem:[#allocation5 + $0xa0] sm:$0xff]
        %v264 = vld [vmem:[#allocation5 + $0xa8] sm:$0xff]
        %v265 = vld [vmem:[#allocation5 + $0xb0] sm:$0xff]
        %v266 = vld [vmem:[#allocation5 + $0xb8] sm:$0xff]
        %v267 = vld [vmem:[#allocation5 + $0xc0] sm:$0xff]
        %v268 = vld [vmem:[#allocation5 + $0xc8] sm:$0xff]
        %v269 = vld [vmem:[#allocation5 + $0xd0] sm:$0xff]
        %v270 = vld [vmem:[#allocation5 + $0xd8] sm:$0xff]
        %v271 = vld [vmem:[#allocation5 + $0xe0] sm:$0xff]
        %v272 = vld [vmem:[#allocation5 + $0xe8] sm:$0xff]
        %v273 = vld [vmem:[#allocation5 + $0xf0] sm:$0xff]
        %v274 = vld [vmem:[#allocation5 + $0xf8] sm:$0xff]
        %v275 = vand.u32 %v244, 4294901760
        %276 = vmatprep.subr.mxu0 %v275
        %v277 = vand.u32 %v243, 4294901760
        %278 = vmatpush1.msra.mxu0 %v277
        %v279 = vand.u32 %v246, 4294901760
        %280 = vmatprep.subr.mxu0 %v279
        %v281 = vand.u32 %v245, 4294901760
        %282 = vmatpush1.msra.mxu0 %v281
        %v283 = vand.u32 %v248, 4294901760
        %284 = vmatprep.subr.mxu0 %v283
        %v285 = vand.u32 %v247, 4294901760
        %286 = vmatpush1.msra.mxu0 %v285
        %v287 = vand.u32 %v250, 4294901760
        %288 = vmatprep.subr.mxu0 %v287
        %v289 = vand.u32 %v249, 4294901760
        %290 = vmatpush1.msra.mxu0 %v289
        %v291 = vand.u32 %v252, 4294901760
        %292 = vmatprep.subr.mxu0 %v291
        %v293 = vand.u32 %v251, 4294901760
        %294 = vmatpush1.msra.mxu0 %v293
        %v295 = vand.u32 %v254, 4294901760
        %296 = vmatprep.subr.mxu0 %v295
        %v297 = vand.u32 %v253, 4294901760
        %298 = vmatpush1.msra.mxu0 %v297
        %v299 = vand.u32 %v256, 4294901760
        %300 = vmatprep.subr.mxu0 %v299
        %v301 = vand.u32 %v255, 4294901760
        %302 = vmatpush1.msra.mxu0 %v301
        %v303 = vand.u32 %v258, 4294901760
        %304 = vmatprep.subr.mxu0 %v303
        %v305 = vand.u32 %v257, 4294901760
        %306 = vmatpush1.msra.mxu0 %v305
        %v307 = vand.u32 %v260, 4294901760
        %308 = vmatprep.subr.mxu0 %v307
        %v309 = vand.u32 %v259, 4294901760
        %310 = vmatpush1.msra.mxu0 %v309
        %v311 = vand.u32 %v262, 4294901760
        %312 = vmatprep.subr.mxu0 %v311
        %v313 = vand.u32 %v261, 4294901760
        %314 = vmatpush1.msra.mxu0 %v313
        %v315 = vand.u32 %v264, 4294901760
        %316 = vmatprep.subr.mxu0 %v315
        %v317 = vand.u32 %v263, 4294901760
        %318 = vmatpush1.msra.mxu0 %v317
        %v319 = vand.u32 %v266, 4294901760
        %320 = vmatprep.subr.mxu0 %v319
        %v321 = vand.u32 %v265, 4294901760
        %322 = vmatpush1.msra.mxu0 %v321
        %v323 = vand.u32 %v268, 4294901760
        %324 = vmatprep.subr.mxu0 %v323
        %v325 = vand.u32 %v267, 4294901760
        %326 = vmatpush1.msra.mxu0 %v325
        %v327 = vand.u32 %v270, 4294901760
        %328 = vmatprep.subr.mxu0 %v327
        %v329 = vand.u32 %v269, 4294901760
        %330 = vmatpush1.msra.mxu0 %v329
        %v331 = vand.u32 %v272, 4294901760
        %332 = vmatprep.subr.mxu0 %v331
        %v333 = vand.u32 %v271, 4294901760
        %334 = vmatpush1.msra.mxu0 %v333
        %v335 = vand.u32 %v274, 4294901760
        %336 = vmatprep.subr.mxu0 %v335
        %v337 = vand.u32 %v273, 4294901760
        %338 = vmatpush1.msra.mxu0 %v337
        %339 = vmatprep.subr.mxu0 0.0
        %340 = vmatpush1.msra.mxu0 0.0
        %341 = vmatprep.subr.mxu0 0.0
        %342 = vmatpush1.msra.mxu0 0.0
        %343 = vmatprep.subr.mxu0 0.0
        %344 = vmatpush1.msra.mxu0 0.0
        %345 = vmatprep.subr.mxu0 0.0
        %346 = vmatpush1.msra.mxu0 0.0
        %347 = vmatprep.subr.mxu0 0.0
        %348 = vmatpush1.msra.mxu0 0.0
        %349 = vmatprep.subr.mxu0 0.0
        %350 = vmatpush1.msra.mxu0 0.0
        %351 = vmatprep.subr.mxu0 0.0
        %352 = vmatpush1.msra.mxu0 0.0
        %353 = vmatprep.subr.mxu0 0.0
        %354 = vmatpush1.msra.mxu0 0.0
        %355 = vmatprep.subr.mxu0 0.0
        %356 = vmatpush1.msra.mxu0 0.0
        %357 = vmatprep.subr.mxu0 0.0
        %358 = vmatpush1.msra.mxu0 0.0
        %359 = vmatprep.subr.mxu0 0.0
        %360 = vmatpush1.msra.mxu0 0.0
        %361 = vmatprep.subr.mxu0 0.0
        %362 = vmatpush1.msra.mxu0 0.0
        %363 = vmatprep.subr.mxu0 0.0
        %364 = vmatpush1.msra.mxu0 0.0
        %365 = vmatprep.subr.mxu0 0.0
        %366 = vmatpush1.msra.mxu0 0.0
        %367 = vmatprep.subr.mxu0 0.0
        %368 = vmatpush1.msra.mxu0 0.0
        %369 = vmatprep.subr.mxu0 0.0
        %370 = vmatpush1.msra.mxu0 0.0
        %371 = vmatprep.mubr.f32.mxu0 0.0
        %v372 = vand.u32 %v242, 4294901760
        %v373 = vsub.f32 %v242, %v372
        %v374 = vand.u32 %v373, 4294901760
        %v375 = vsub.f32 %v373, %v374
        %v376 = vand.u32 %v375, 4294901760
        %377 = vmatmul.mubr.f32.gmra.mrb[0].mxu0 %v376
        %v378 = vpop.f32.mrb[0].mxu0
        %v379 = vadd.f32 0.0, %v378
        %v380 = vpop.f32.mrb[0].mxu0
        %v381 = vadd.f32 0.0, %v380
        %382 = vdwg.mxu0
        %v383 = vand.u32 %v244, 4294901760
        %v384 = vsub.f32 %v244, %v383
        %v385 = vand.u32 %v384, 4294901760
        %v386 = vsub.f32 %v384, %v385
        %v387 = vand.u32 %v386, 4294901760
        %388 = vmatprep.subr.mxu0 %v387
        %v389 = vand.u32 %v243, 4294901760
        %v390 = vsub.f32 %v243, %v389
        %v391 = vand.u32 %v390, 4294901760
        %v392 = vsub.f32 %v390, %v391
        %v393 = vand.u32 %v392, 4294901760
        %394 = vmatpush1.msra.mxu0 %v393
        %v395 = vand.u32 %v246, 4294901760
        %v396 = vsub.f32 %v246, %v395
        %v397 = vand.u32 %v396, 4294901760
        %v398 = vsub.f32 %v396, %v397
        %v399 = vand.u32 %v398, 4294901760
        %400 = vmatprep.subr.mxu0 %v399
        %v401 = vand.u32 %v245, 4294901760
        %v402 = vsub.f32 %v245, %v401
        %v403 = vand.u32 %v402, 4294901760
        %v404 = vsub.f32 %v402, %v403
        %v405 = vand.u32 %v404, 4294901760
        %406 = vmatpush1.msra.mxu0 %v405
        %v407 = vand.u32 %v248, 4294901760
        %v408 = vsub.f32 %v248, %v407
        %v409 = vand.u32 %v408, 4294901760
        %v410 = vsub.f32 %v408, %v409
        %v411 = vand.u32 %v410, 4294901760
        %412 = vmatprep.subr.mxu0 %v411
        %v413 = vand.u32 %v247, 4294901760
        %v414 = vsub.f32 %v247, %v413
        %v415 = vand.u32 %v414, 4294901760
        %v416 = vsub.f32 %v414, %v415
        %v417 = vand.u32 %v416, 4294901760
        %418 = vmatpush1.msra.mxu0 %v417
        %v419 = vand.u32 %v250, 4294901760
        %v420 = vsub.f32 %v250, %v419
        %v421 = vand.u32 %v420, 4294901760
        %v422 = vsub.f32 %v420, %v421
        %v423 = vand.u32 %v422, 4294901760
        %424 = vmatprep.subr.mxu0 %v423
        %v425 = vand.u32 %v249, 4294901760
        %v426 = vsub.f32 %v249, %v425
        %v427 = vand.u32 %v426, 4294901760
        %v428 = vsub.f32 %v426, %v427
        %v429 = vand.u32 %v428, 4294901760
        %430 = vmatpush1.msra.mxu0 %v429
        %v431 = vand.u32 %v252, 4294901760
        %v432 = vsub.f32 %v252, %v431
        %v433 = vand.u32 %v432, 4294901760
        %v434 = vsub.f32 %v432, %v433
        %v435 = vand.u32 %v434, 4294901760
        %436 = vmatprep.subr.mxu0 %v435
        %v437 = vand.u32 %v251, 4294901760
        %v438 = vsub.f32 %v251, %v437
        %v439 = vand.u32 %v438, 4294901760
        %v440 = vsub.f32 %v438, %v439
        %v441 = vand.u32 %v440, 4294901760
        %442 = vmatpush1.msra.mxu0 %v441
        %v443 = vand.u32 %v254, 4294901760
        %v444 = vsub.f32 %v254, %v443
        %v445 = vand.u32 %v444, 4294901760
        %v446 = vsub.f32 %v444, %v445
        %v447 = vand.u32 %v446, 4294901760
        %448 = vmatprep.subr.mxu0 %v447
        %v449 = vand.u32 %v253, 4294901760
        %v450 = vsub.f32 %v253, %v449
        %v451 = vand.u32 %v450, 4294901760
        %v452 = vsub.f32 %v450, %v451
        %v453 = vand.u32 %v452, 4294901760
        %454 = vmatpush1.msra.mxu0 %v453
        %v455 = vand.u32 %v256, 4294901760
        %v456 = vsub.f32 %v256, %v455
        %v457 = vand.u32 %v456, 4294901760
        %v458 = vsub.f32 %v456, %v457
        %v459 = vand.u32 %v458, 4294901760
        %460 = vmatprep.subr.mxu0 %v459
        %v461 = vand.u32 %v255, 4294901760
        %v462 = vsub.f32 %v255, %v461
        %v463 = vand.u32 %v462, 4294901760
        %v464 = vsub.f32 %v462, %v463
        %v465 = vand.u32 %v464, 4294901760
        %466 = vmatpush1.msra.mxu0 %v465
        %v467 = vand.u32 %v258, 4294901760
        %v468 = vsub.f32 %v258, %v467
        %v469 = vand.u32 %v468, 4294901760
        %v470 = vsub.f32 %v468, %v469
        %v471 = vand.u32 %v470, 4294901760
        %472 = vmatprep.subr.mxu0 %v471
        %v473 = vand.u32 %v257, 4294901760
        %v474 = vsub.f32 %v257, %v473
        %v475 = vand.u32 %v474, 4294901760
        %v476 = vsub.f32 %v474, %v475
        %v477 = vand.u32 %v476, 4294901760
        %478 = vmatpush1.msra.mxu0 %v477
        %v479 = vand.u32 %v260, 4294901760
        %v480 = vsub.f32 %v260, %v479
        %v481 = vand.u32 %v480, 4294901760
        %v482 = vsub.f32 %v480, %v481
        %v483 = vand.u32 %v482, 4294901760
        %484 = vmatprep.subr.mxu0 %v483
        %v485 = vand.u32 %v259, 4294901760
        %v486 = vsub.f32 %v259, %v485
        %v487 = vand.u32 %v486, 4294901760
        %v488 = vsub.f32 %v486, %v487
        %v489 = vand.u32 %v488, 4294901760
        %490 = vmatpush1.msra.mxu0 %v489
        %v491 = vand.u32 %v262, 4294901760
        %v492 = vsub.f32 %v262, %v491
        %v493 = vand.u32 %v492, 4294901760
        %v494 = vsub.f32 %v492, %v493
        %v495 = vand.u32 %v494, 4294901760
        %496 = vmatprep.subr.mxu0 %v495
        %v497 = vand.u32 %v261, 4294901760
        %v498 = vsub.f32 %v261, %v497
        %v499 = vand.u32 %v498, 4294901760
        %v500 = vsub.f32 %v498, %v499
        %v501 = vand.u32 %v500, 4294901760
        %502 = vmatpush1.msra.mxu0 %v501
        %v503 = vand.u32 %v264, 4294901760
        %v504 = vsub.f32 %v264, %v503
        %v505 = vand.u32 %v504, 4294901760
        %v506 = vsub.f32 %v504, %v505
        %v507 = vand.u32 %v506, 4294901760
        %508 = vmatprep.subr.mxu0 %v507
        %v509 = vand.u32 %v263, 4294901760
        %v510 = vsub.f32 %v263, %v509
        %v511 = vand.u32 %v510, 4294901760
        %v512 = vsub.f32 %v510, %v511
        %v513 = vand.u32 %v512, 4294901760
        %514 = vmatpush1.msra.mxu0 %v513
        %v515 = vand.u32 %v266, 4294901760
        %v516 = vsub.f32 %v266, %v515
        %v517 = vand.u32 %v516, 4294901760
        %v518 = vsub.f32 %v516, %v517
        %v519 = vand.u32 %v518, 4294901760
        %520 = vmatprep.subr.mxu0 %v519
        %v521 = vand.u32 %v265, 4294901760
        %v522 = vsub.f32 %v265, %v521
        %v523 = vand.u32 %v522, 4294901760
        %v524 = vsub.f32 %v522, %v523
        %v525 = vand.u32 %v524, 4294901760
        %526 = vmatpush1.msra.mxu0 %v525
        %v527 = vand.u32 %v268, 4294901760
        %v528 = vsub.f32 %v268, %v527
        %v529 = vand.u32 %v528, 4294901760
        %v530 = vsub.f32 %v528, %v529
        %v531 = vand.u32 %v530, 4294901760
        %532 = vmatprep.subr.mxu0 %v531
        %v533 = vand.u32 %v267, 4294901760
        %v534 = vsub.f32 %v267, %v533
        %v535 = vand.u32 %v534, 4294901760
        %v536 = vsub.f32 %v534, %v535
        %v537 = vand.u32 %v536, 4294901760
        %538 = vmatpush1.msra.mxu0 %v537
        %v539 = vand.u32 %v270, 4294901760
        %v540 = vsub.f32 %v270, %v539
        %v541 = vand.u32 %v540, 4294901760
        %v542 = vsub.f32 %v540, %v541
        %v543 = vand.u32 %v542, 4294901760
        %544 = vmatprep.subr.mxu0 %v543
        %v545 = vand.u32 %v269, 4294901760
        %v546 = vsub.f32 %v269, %v545
        %v547 = vand.u32 %v546, 4294901760
        %v548 = vsub.f32 %v546, %v547
        %v549 = vand.u32 %v548, 4294901760
        %550 = vmatpush1.msra.mxu0 %v549
        %v551 = vand.u32 %v272, 4294901760
        %v552 = vsub.f32 %v272, %v551
        %v553 = vand.u32 %v552, 4294901760
        %v554 = vsub.f32 %v552, %v553
        %v555 = vand.u32 %v554, 4294901760
        %556 = vmatprep.subr.mxu0 %v555
        %v557 = vand.u32 %v271, 4294901760
        %v558 = vsub.f32 %v271, %v557
        %v559 = vand.u32 %v558, 4294901760
        %v560 = vsub.f32 %v558, %v559
        %v561 = vand.u32 %v560, 4294901760
        %562 = vmatpush1.msra.mxu0 %v561
        %v563 = vand.u32 %v274, 4294901760
        %v564 = vsub.f32 %v274, %v563
        %v565 = vand.u32 %v564, 4294901760
        %v566 = vsub.f32 %v564, %v565
        %v567 = vand.u32 %v566, 4294901760
        %568 = vmatprep.subr.mxu0 %v567
        %v569 = vand.u32 %v273, 4294901760
        %v570 = vsub.f32 %v273, %v569
        %v571 = vand.u32 %v570, 4294901760
        %v572 = vsub.f32 %v570, %v571
        %v573 = vand.u32 %v572, 4294901760
        %574 = vmatpush1.msra.mxu0 %v573
        %575 = vmatprep.subr.mxu0 0.0
        %576 = vmatpush1.msra.mxu0 0.0
        %577 = vmatprep.subr.mxu0 0.0
        %578 = vmatpush1.msra.mxu0 0.0
        %579 = vmatprep.subr.mxu0 0.0
        %580 = vmatpush1.msra.mxu0 0.0
        %581 = vmatprep.subr.mxu0 0.0
        %582 = vmatpush1.msra.mxu0 0.0
        %583 = vmatprep.subr.mxu0 0.0
        %584 = vmatpush1.msra.mxu0 0.0
        %585 = vmatprep.subr.mxu0 0.0
        %586 = vmatpush1.msra.mxu0 0.0
        %587 = vmatprep.subr.mxu0 0.0
        %588 = vmatpush1.msra.mxu0 0.0
        %589 = vmatprep.subr.mxu0 0.0
        %590 = vmatpush1.msra.mxu0 0.0
        %591 = vmatprep.subr.mxu0 0.0
        %592 = vmatpush1.msra.mxu0 0.0
        %593 = vmatprep.subr.mxu0 0.0
        %594 = vmatpush1.msra.mxu0 0.0
        %595 = vmatprep.subr.mxu0 0.0
        %596 = vmatpush1.msra.mxu0 0.0
        %597 = vmatprep.subr.mxu0 0.0
        %598 = vmatpush1.msra.mxu0 0.0
        %599 = vmatprep.subr.mxu0 0.0
        %600 = vmatpush1.msra.mxu0 0.0
        %601 = vmatprep.subr.mxu0 0.0
        %602 = vmatpush1.msra.mxu0 0.0
        %603 = vmatprep.subr.mxu0 0.0
        %604 = vmatpush1.msra.mxu0 0.0
        %605 = vmatprep.subr.mxu0 0.0
        %606 = vmatpush1.msra.mxu0 0.0
        %607 = vmatprep.mubr.f32.mxu0 0.0
        %v608 = vand.u32 %v242, 4294901760
        %609 = vmatmul.mubr.f32.gmra.mrb[0].mxu0 %v608
        %v610 = vpop.f32.mrb[0].mxu0
        %v611 = vadd.f32 %v379, %v610
        %v612 = vpop.f32.mrb[0].mxu0
        %v613 = vadd.f32 %v381, %v612
        %614 = vdwg.mxu0
        %v615 = vand.u32 %v244, 4294901760
        %v616 = vsub.f32 %v244, %v615
        %617 = vmatprep.subr.mxu0 %v616
        %v618 = vand.u32 %v243, 4294901760
        %v619 = vsub.f32 %v243, %v618
        %620 = vmatpush1.msra.mxu0 %v619
        %v621 = vand.u32 %v246, 4294901760
        %v622 = vsub.f32 %v246, %v621
        %623 = vmatprep.subr.mxu0 %v622
        %v624 = vand.u32 %v245, 4294901760
        %v625 = vsub.f32 %v245, %v624
        %626 = vmatpush1.msra.mxu0 %v625
        %v627 = vand.u32 %v248, 4294901760
        %v628 = vsub.f32 %v248, %v627
        %629 = vmatprep.subr.mxu0 %v628
        %v630 = vand.u32 %v247, 4294901760
        %v631 = vsub.f32 %v247, %v630
        %632 = vmatpush1.msra.mxu0 %v631
        %v633 = vand.u32 %v250, 4294901760
        %v634 = vsub.f32 %v250, %v633
        %635 = vmatprep.subr.mxu0 %v634
        %v636 = vand.u32 %v249, 4294901760
        %v637 = vsub.f32 %v249, %v636
        %638 = vmatpush1.msra.mxu0 %v637
        %v639 = vand.u32 %v252, 4294901760
        %v640 = vsub.f32 %v252, %v639
        %641 = vmatprep.subr.mxu0 %v640
        %v642 = vand.u32 %v251, 4294901760
        %v643 = vsub.f32 %v251, %v642
        %644 = vmatpush1.msra.mxu0 %v643
        %v645 = vand.u32 %v254, 4294901760
        %v646 = vsub.f32 %v254, %v645
        %647 = vmatprep.subr.mxu0 %v646
        %v648 = vand.u32 %v253, 4294901760
        %v649 = vsub.f32 %v253, %v648
        %650 = vmatpush1.msra.mxu0 %v649
        %v651 = vand.u32 %v256, 4294901760
        %v652 = vsub.f32 %v256, %v651
        %653 = vmatprep.subr.mxu0 %v652
        %v654 = vand.u32 %v255, 4294901760
        %v655 = vsub.f32 %v255, %v654
        %656 = vmatpush1.msra.mxu0 %v655
        %v657 = vand.u32 %v258, 4294901760
        %v658 = vsub.f32 %v258, %v657
        %659 = vmatprep.subr.mxu0 %v658
        %v660 = vand.u32 %v257, 4294901760
        %v661 = vsub.f32 %v257, %v660
        %662 = vmatpush1.msra.mxu0 %v661
        %v663 = vand.u32 %v260, 4294901760
        %v664 = vsub.f32 %v260, %v663
        %665 = vmatprep.subr.mxu0 %v664
        %v666 = vand.u32 %v259, 4294901760
        %v667 = vsub.f32 %v259, %v666
        %668 = vmatpush1.msra.mxu0 %v667
        %v669 = vand.u32 %v262, 4294901760
        %v670 = vsub.f32 %v262, %v669
        %671 = vmatprep.subr.mxu0 %v670
        %v672 = vand.u32 %v261, 4294901760
        %v673 = vsub.f32 %v261, %v672
        %674 = vmatpush1.msra.mxu0 %v673
        %v675 = vand.u32 %v264, 4294901760
        %v676 = vsub.f32 %v264, %v675
        %677 = vmatprep.subr.mxu0 %v676
        %v678 = vand.u32 %v263, 4294901760
        %v679 = vsub.f32 %v263, %v678
        %680 = vmatpush1.msra.mxu0 %v679
        %v681 = vand.u32 %v266, 4294901760
        %v682 = vsub.f32 %v266, %v681
        %683 = vmatprep.subr.mxu0 %v682
        %v684 = vand.u32 %v265, 4294901760
        %v685 = vsub.f32 %v265, %v684
        %686 = vmatpush1.msra.mxu0 %v685
        %v687 = vand.u32 %v268, 4294901760
        %v688 = vsub.f32 %v268, %v687
        %689 = vmatprep.subr.mxu0 %v688
        %v690 = vand.u32 %v267, 4294901760
        %v691 = vsub.f32 %v267, %v690
        %692 = vmatpush1.msra.mxu0 %v691
        %v693 = vand.u32 %v270, 4294901760
        %v694 = vsub.f32 %v270, %v693
        %695 = vmatprep.subr.mxu0 %v694
        %v696 = vand.u32 %v269, 4294901760
        %v697 = vsub.f32 %v269, %v696
        %698 = vmatpush1.msra.mxu0 %v697
        %v699 = vand.u32 %v272, 4294901760
        %v700 = vsub.f32 %v272, %v699
        %701 = vmatprep.subr.mxu0 %v700
        %v702 = vand.u32 %v271, 4294901760
        %v703 = vsub.f32 %v271, %v702
        %704 = vmatpush1.msra.mxu0 %v703
        %v705 = vand.u32 %v274, 4294901760
        %v706 = vsub.f32 %v274, %v705
        %707 = vmatprep.subr.mxu0 %v706
        %v708 = vand.u32 %v273, 4294901760
        %v709 = vsub.f32 %v273, %v708
        %710 = vmatpush1.msra.mxu0 %v709
        %711 = vmatprep.subr.mxu0 0.0
        %712 = vmatpush1.msra.mxu0 0.0
        %713 = vmatprep.subr.mxu0 0.0
        %714 = vmatpush1.msra.mxu0 0.0
        %715 = vmatprep.subr.mxu0 0.0
        %716 = vmatpush1.msra.mxu0 0.0
        %717 = vmatprep.subr.mxu0 0.0
        %718 = vmatpush1.msra.mxu0 0.0
        %719 = vmatprep.subr.mxu0 0.0
        %720 = vmatpush1.msra.mxu0 0.0
        %721 = vmatprep.subr.mxu0 0.0
        %722 = vmatpush1.msra.mxu0 0.0
        %723 = vmatprep.subr.mxu0 0.0
        %724 = vmatpush1.msra.mxu0 0.0
        %725 = vmatprep.subr.mxu0 0.0
        %726 = vmatpush1.msra.mxu0 0.0
        %727 = vmatprep.subr.mxu0 0.0
        %728 = vmatpush1.msra.mxu0 0.0
        %729 = vmatprep.subr.mxu0 0.0
        %730 = vmatpush1.msra.mxu0 0.0
        %731 = vmatprep.subr.mxu0 0.0
        %732 = vmatpush1.msra.mxu0 0.0
        %733 = vmatprep.subr.mxu0 0.0
        %734 = vmatpush1.msra.mxu0 0.0
        %735 = vmatprep.subr.mxu0 0.0
        %736 = vmatpush1.msra.mxu0 0.0
        %737 = vmatprep.subr.mxu0 0.0
        %738 = vmatpush1.msra.mxu0 0.0
        %739 = vmatprep.subr.mxu0 0.0
        %740 = vmatpush1.msra.mxu0 0.0
        %741 = vmatprep.subr.mxu0 0.0
        %742 = vmatpush1.msra.mxu0 0.0
        %743 = vmatprep.mubr.f32.mxu0 0.0
        %v744 = vand.u32 %v242, 4294901760
        %v745 = vsub.f32 %v242, %v744
        %746 = vmatmul.mubr.f32.gmra.mrb[0].mxu0 %v745
        %v747 = vpop.f32.mrb[0].mxu0
        %v748 = vadd.f32 %v611, %v747
        %v749 = vpop.f32.mrb[0].mxu0
        %v750 = vadd.f32 %v613, %v749
        %751 = vdwg.mxu0
        %v752 = vand.u32 %v244, 4294901760
        %753 = vmatprep.subr.mxu0 %v752
        %v754 = vand.u32 %v243, 4294901760
        %755 = vmatpush1.msra.mxu0 %v754
        %v756 = vand.u32 %v246, 4294901760
        %757 = vmatprep.subr.mxu0 %v756
        %v758 = vand.u32 %v245, 4294901760
        %759 = vmatpush1.msra.mxu0 %v758
        %v760 = vand.u32 %v248, 4294901760
        %761 = vmatprep.subr.mxu0 %v760
        %v762 = vand.u32 %v247, 4294901760
        %763 = vmatpush1.msra.mxu0 %v762
        %v764 = vand.u32 %v250, 4294901760
        %765 = vmatprep.subr.mxu0 %v764
        %v766 = vand.u32 %v249, 4294901760
        %767 = vmatpush1.msra.mxu0 %v766
        %v768 = vand.u32 %v252, 4294901760
        %769 = vmatprep.subr.mxu0 %v768
        %v770 = vand.u32 %v251, 4294901760
        %771 = vmatpush1.msra.mxu0 %v770
        %v772 = vand.u32 %v254, 4294901760
        %773 = vmatprep.subr.mxu0 %v772
        %v774 = vand.u32 %v253, 4294901760
        %775 = vmatpush1.msra.mxu0 %v774
        %v776 = vand.u32 %v256, 4294901760
        %777 = vmatprep.subr.mxu0 %v776
        %v778 = vand.u32 %v255, 4294901760
        %779 = vmatpush1.msra.mxu0 %v778
        %v780 = vand.u32 %v258, 4294901760
        %781 = vmatprep.subr.mxu0 %v780
        %v782 = vand.u32 %v257, 4294901760
        %783 = vmatpush1.msra.mxu0 %v782
        %v784 = vand.u32 %v260, 4294901760
        %785 = vmatprep.subr.mxu0 %v784
        %v786 = vand.u32 %v259, 4294901760
        %787 = vmatpush1.msra.mxu0 %v786
        %v788 = vand.u32 %v262, 4294901760
        %789 = vmatprep.subr.mxu0 %v788
        %v790 = vand.u32 %v261, 4294901760
        %791 = vmatpush1.msra.mxu0 %v790
        %v792 = vand.u32 %v264, 4294901760
        %793 = vmatprep.subr.mxu0 %v792
        %v794 = vand.u32 %v263, 4294901760
        %795 = vmatpush1.msra.mxu0 %v794
        %v796 = vand.u32 %v266, 4294901760
        %797 = vmatprep.subr.mxu0 %v796
        %v798 = vand.u32 %v265, 4294901760
        %799 = vmatpush1.msra.mxu0 %v798
        %v800 = vand.u32 %v268, 4294901760
        %801 = vmatprep.subr.mxu0 %v800
        %v802 = vand.u32 %v267, 4294901760
        %803 = vmatpush1.msra.mxu0 %v802
        %v804 = vand.u32 %v270, 4294901760
        %805 = vmatprep.subr.mxu0 %v804
        %v806 = vand.u32 %v269, 4294901760
        %807 = vmatpush1.msra.mxu0 %v806
        %v808 = vand.u32 %v272, 4294901760
        %809 = vmatprep.subr.mxu0 %v808
        %v810 = vand.u32 %v271, 4294901760
        %811 = vmatpush1.msra.mxu0 %v810
        %v812 = vand.u32 %v274, 4294901760
        %813 = vmatprep.subr.mxu0 %v812
        %v814 = vand.u32 %v273, 4294901760
        %815 = vmatpush1.msra.mxu0 %v814
        %816 = vmatprep.subr.mxu0 0.0
        %817 = vmatpush1.msra.mxu0 0.0
        %818 = vmatprep.subr.mxu0 0.0
        %819 = vmatpush1.msra.mxu0 0.0
        %820 = vmatprep.subr.mxu0 0.0
        %821 = vmatpush1.msra.mxu0 0.0
        %822 = vmatprep.subr.mxu0 0.0
        %823 = vmatpush1.msra.mxu0 0.0
        %824 = vmatprep.subr.mxu0 0.0
        %825 = vmatpush1.msra.mxu0 0.0
        %826 = vmatprep.subr.mxu0 0.0
        %827 = vmatpush1.msra.mxu0 0.0
        %828 = vmatprep.subr.mxu0 0.0
        %829 = vmatpush1.msra.mxu0 0.0
        %830 = vmatprep.subr.mxu0 0.0
        %831 = vmatpush1.msra.mxu0 0.0
        %832 = vmatprep.subr.mxu0 0.0
        %833 = vmatpush1.msra.mxu0 0.0
        %834 = vmatprep.subr.mxu0 0.0
        %835 = vmatpush1.msra.mxu0 0.0
        %836 = vmatprep.subr.mxu0 0.0
        %837 = vmatpush1.msra.mxu0 0.0
        %838 = vmatprep.subr.mxu0 0.0
        %839 = vmatpush1.msra.mxu0 0.0
        %840 = vmatprep.subr.mxu0 0.0
        %841 = vmatpush1.msra.mxu0 0.0
        %842 = vmatprep.subr.mxu0 0.0
        %843 = vmatpush1.msra.mxu0 0.0
        %844 = vmatprep.subr.mxu0 0.0
        %845 = vmatpush1.msra.mxu0 0.0
        %846 = vmatprep.subr.mxu0 0.0
        %847 = vmatpush1.msra.mxu0 0.0
        %848 = vmatprep.mubr.f32.mxu0 0.0
        %v849 = vand.u32 %v242, 4294901760
        %v850 = vsub.f32 %v242, %v849
        %v851 = vand.u32 %v850, 4294901760
        %852 = vmatmul.mubr.f32.gmra.mrb[0].mxu0 %v851
        %v853 = vpop.f32.mrb[0].mxu0
        %v854 = vadd.f32 %v748, %v853
        %v855 = vpop.f32.mrb[0].mxu0
        %v856 = vadd.f32 %v750, %v855
        %857 = vdwg.mxu0
        %v858 = vand.u32 %v244, 4294901760
        %v859 = vsub.f32 %v244, %v858
        %v860 = vand.u32 %v859, 4294901760
        %861 = vmatprep.subr.mxu0 %v860
        %v862 = vand.u32 %v243, 4294901760
        %v863 = vsub.f32 %v243, %v862
        %v864 = vand.u32 %v863, 4294901760
        %865 = vmatpush1.msra.mxu0 %v864
        %v866 = vand.u32 %v246, 4294901760
        %v867 = vsub.f32 %v246, %v866
        %v868 = vand.u32 %v867, 4294901760
        %869 = vmatprep.subr.mxu0 %v868
        %v870 = vand.u32 %v245, 4294901760
        %v871 = vsub.f32 %v245, %v870
        %v872 = vand.u32 %v871, 4294901760
        %873 = vmatpush1.msra.mxu0 %v872
        %v874 = vand.u32 %v248, 4294901760
        %v875 = vsub.f32 %v248, %v874
        %v876 = vand.u32 %v875, 4294901760
        %877 = vmatprep.subr.mxu0 %v876
        %v878 = vand.u32 %v247, 4294901760
        %v879 = vsub.f32 %v247, %v878
        %v880 = vand.u32 %v879, 4294901760
        %881 = vmatpush1.msra.mxu0 %v880
        %v882 = vand.u32 %v250, 4294901760
        %v883 = vsub.f32 %v250, %v882
        %v884 = vand.u32 %v883, 4294901760
        %885 = vmatprep.subr.mxu0 %v884
        %v886 = vand.u32 %v249, 4294901760
        %v887 = vsub.f32 %v249, %v886
        %v888 = vand.u32 %v887, 4294901760
        %889 = vmatpush1.msra.mxu0 %v888
        %v890 = vand.u32 %v252, 4294901760
        %v891 = vsub.f32 %v252, %v890
        %v892 = vand.u32 %v891, 4294901760
        %893 = vmatprep.subr.mxu0 %v892
        %v894 = vand.u32 %v251, 4294901760
        %v895 = vsub.f32 %v251, %v894
        %v896 = vand.u32 %v895, 4294901760
        %897 = vmatpush1.msra.mxu0 %v896
        %v898 = vand.u32 %v254, 4294901760
        %v899 = vsub.f32 %v254, %v898
        %v900 = vand.u32 %v899, 4294901760
        %901 = vmatprep.subr.mxu0 %v900
        %v902 = vand.u32 %v253, 4294901760
        %v903 = vsub.f32 %v253, %v902
        %v904 = vand.u32 %v903, 4294901760
        %905 = vmatpush1.msra.mxu0 %v904
        %v906 = vand.u32 %v256, 4294901760
        %v907 = vsub.f32 %v256, %v906
        %v908 = vand.u32 %v907, 4294901760
        %909 = vmatprep.subr.mxu0 %v908
        %v910 = vand.u32 %v255, 4294901760
        %v911 = vsub.f32 %v255, %v910
        %v912 = vand.u32 %v911, 4294901760
        %913 = vmatpush1.msra.mxu0 %v912
        %v914 = vand.u32 %v258, 4294901760
        %v915 = vsub.f32 %v258, %v914
        %v916 = vand.u32 %v915, 4294901760
        %917 = vmatprep.subr.mxu0 %v916
        %v918 = vand.u32 %v257, 4294901760
        %v919 = vsub.f32 %v257, %v918
        %v920 = vand.u32 %v919, 4294901760
        %921 = vmatpush1.msra.mxu0 %v920
        %v922 = vand.u32 %v260, 4294901760
        %v923 = vsub.f32 %v260, %v922
        %v924 = vand.u32 %v923, 4294901760
        %925 = vmatprep.subr.mxu0 %v924
        %v926 = vand.u32 %v259, 4294901760
        %v927 = vsub.f32 %v259, %v926
        %v928 = vand.u32 %v927, 4294901760
        %929 = vmatpush1.msra.mxu0 %v928
        %v930 = vand.u32 %v262, 4294901760
        %v931 = vsub.f32 %v262, %v930
        %v932 = vand.u32 %v931, 4294901760
        %933 = vmatprep.subr.mxu0 %v932
        %v934 = vand.u32 %v261, 4294901760
        %v935 = vsub.f32 %v261, %v934
        %v936 = vand.u32 %v935, 4294901760
        %937 = vmatpush1.msra.mxu0 %v936
        %v938 = vand.u32 %v264, 4294901760
        %v939 = vsub.f32 %v264, %v938
        %v940 = vand.u32 %v939, 4294901760
        %941 = vmatprep.subr.mxu0 %v940
        %v942 = vand.u32 %v263, 4294901760
        %v943 = vsub.f32 %v263, %v942
        %v944 = vand.u32 %v943, 4294901760
        %945 = vmatpush1.msra.mxu0 %v944
        %v946 = vand.u32 %v266, 4294901760
        %v947 = vsub.f32 %v266, %v946
        %v948 = vand.u32 %v947, 4294901760
        %949 = vmatprep.subr.mxu0 %v948
        %v950 = vand.u32 %v265, 4294901760
        %v951 = vsub.f32 %v265, %v950
        %v952 = vand.u32 %v951, 4294901760
        %953 = vmatpush1.msra.mxu0 %v952
        %v954 = vand.u32 %v268, 4294901760
        %v955 = vsub.f32 %v268, %v954
        %v956 = vand.u32 %v955, 4294901760
        %957 = vmatprep.subr.mxu0 %v956
        %v958 = vand.u32 %v267, 4294901760
        %v959 = vsub.f32 %v267, %v958
        %v960 = vand.u32 %v959, 4294901760
        %961 = vmatpush1.msra.mxu0 %v960
        %v962 = vand.u32 %v270, 4294901760
        %v963 = vsub.f32 %v270, %v962
        %v964 = vand.u32 %v963, 4294901760
        %965 = vmatprep.subr.mxu0 %v964
        %v966 = vand.u32 %v269, 4294901760
        %v967 = vsub.f32 %v269, %v966
        %v968 = vand.u32 %v967, 4294901760
        %969 = vmatpush1.msra.mxu0 %v968
        %v970 = vand.u32 %v272, 4294901760
        %v971 = vsub.f32 %v272, %v970
        %v972 = vand.u32 %v971, 4294901760
        %973 = vmatprep.subr.mxu0 %v972
        %v974 = vand.u32 %v271, 4294901760
        %v975 = vsub.f32 %v271, %v974
        %v976 = vand.u32 %v975, 4294901760
        %977 = vmatpush1.msra.mxu0 %v976
        %v978 = vand.u32 %v274, 4294901760
        %v979 = vsub.f32 %v274, %v978
        %v980 = vand.u32 %v979, 4294901760
        %981 = vmatprep.subr.mxu0 %v980
        %v982 = vand.u32 %v273, 4294901760
        %v983 = vsub.f32 %v273, %v982
        %v984 = vand.u32 %v983, 4294901760
        %985 = vmatpush1.msra.mxu0 %v984
        %986 = vmatprep.subr.mxu0 0.0
        %987 = vmatpush1.msra.mxu0 0.0
        %988 = vmatprep.subr.mxu0 0.0
        %989 = vmatpush1.msra.mxu0 0.0
        %990 = vmatprep.subr.mxu0 0.0
        %991 = vmatpush1.msra.mxu0 0.0
        %992 = vmatprep.subr.mxu0 0.0
        %993 = vmatpush1.msra.mxu0 0.0
        %994 = vmatprep.subr.mxu0 0.0
        %995 = vmatpush1.msra.mxu0 0.0
        %996 = vmatprep.subr.mxu0 0.0
        %997 = vmatpush1.msra.mxu0 0.0
        %998 = vmatprep.subr.mxu0 0.0
        %999 = vmatpush1.msra.mxu0 0.0
        %1000 = vmatprep.subr.mxu0 0.0
        %1001 = vmatpush1.msra.mxu0 0.0
        %1002 = vmatprep.subr.mxu0 0.0
        %1003 = vmatpush1.msra.mxu0 0.0
        %1004 = vmatprep.subr.mxu0 0.0
        %1005 = vmatpush1.msra.mxu0 0.0
        %1006 = vmatprep.subr.mxu0 0.0
        %1007 = vmatpush1.msra.mxu0 0.0
        %1008 = vmatprep.subr.mxu0 0.0
        %1009 = vmatpush1.msra.mxu0 0.0
        %1010 = vmatprep.subr.mxu0 0.0
        %1011 = vmatpush1.msra.mxu0 0.0
        %1012 = vmatprep.subr.mxu0 0.0
        %1013 = vmatpush1.msra.mxu0 0.0
        %1014 = vmatprep.subr.mxu0 0.0
        %1015 = vmatpush1.msra.mxu0 0.0
        %1016 = vmatprep.subr.mxu0 0.0
        %1017 = vmatpush1.msra.mxu0 0.0
        %1018 = vmatprep.mubr.f32.mxu0 0.0
        %v1019 = vand.u32 %v242, 4294901760
        %1020 = vmatmul.mubr.f32.gmra.mrb[0].mxu0 %v1019
        %v1021 = vpop.f32.mrb[0].mxu0
        %v1022 = vadd.f32 %v854, %v1021
        %v1023 = vpop.f32.mrb[0].mxu0
        %v1024 = vadd.f32 %v856, %v1023
        %1025 = vdwg.mxu0
        %v1026 = vand.u32 %v244, 4294901760
        %1027 = vmatprep.subr.mxu0 %v1026
        %v1028 = vand.u32 %v243, 4294901760
        %1029 = vmatpush1.msra.mxu0 %v1028
        %v1030 = vand.u32 %v246, 4294901760
        %1031 = vmatprep.subr.mxu0 %v1030
        %v1032 = vand.u32 %v245, 4294901760
        %1033 = vmatpush1.msra.mxu0 %v1032
        %v1034 = vand.u32 %v248, 4294901760
        %1035 = vmatprep.subr.mxu0 %v1034
        %v1036 = vand.u32 %v247, 4294901760
        %1037 = vmatpush1.msra.mxu0 %v1036
        %v1038 = vand.u32 %v250, 4294901760
        %1039 = vmatprep.subr.mxu0 %v1038
        %v1040 = vand.u32 %v249, 4294901760
        %1041 = vmatpush1.msra.mxu0 %v1040
        %v1042 = vand.u32 %v252, 4294901760
        %1043 = vmatprep.subr.mxu0 %v1042
        %v1044 = vand.u32 %v251, 4294901760
        %1045 = vmatpush1.msra.mxu0 %v1044
        %v1046 = vand.u32 %v254, 4294901760
        %1047 = vmatprep.subr.mxu0 %v1046
        %v1048 = vand.u32 %v253, 4294901760
        %1049 = vmatpush1.msra.mxu0 %v1048
        %v1050 = vand.u32 %v256, 4294901760
        %1051 = vmatprep.subr.mxu0 %v1050
        %v1052 = vand.u32 %v255, 4294901760
        %1053 = vmatpush1.msra.mxu0 %v1052
        %v1054 = vand.u32 %v258, 4294901760
        %1055 = vmatprep.subr.mxu0 %v1054
        %v1056 = vand.u32 %v257, 4294901760
        %1057 = vmatpush1.msra.mxu0 %v1056
        %v1058 = vand.u32 %v260, 4294901760
        %1059 = vmatprep.subr.mxu0 %v1058
        %v1060 = vand.u32 %v259, 4294901760
        %1061 = vmatpush1.msra.mxu0 %v1060
        %v1062 = vand.u32 %v262, 4294901760
        %1063 = vmatprep.subr.mxu0 %v1062
        %v1064 = vand.u32 %v261, 4294901760
        %1065 = vmatpush1.msra.mxu0 %v1064
        %v1066 = vand.u32 %v264, 4294901760
        %1067 = vmatprep.subr.mxu0 %v1066
        %v1068 = vand.u32 %v263, 4294901760
        %1069 = vmatpush1.msra.mxu0 %v1068
        %v1070 = vand.u32 %v266, 4294901760
        %1071 = vmatprep.subr.mxu0 %v1070
        %v1072 = vand.u32 %v265, 4294901760
        %1073 = vmatpush1.msra.mxu0 %v1072
        %v1074 = vand.u32 %v268, 4294901760
        %1075 = vmatprep.subr.mxu0 %v1074
        %v1076 = vand.u32 %v267, 4294901760
        %1077 = vmatpush1.msra.mxu0 %v1076
        %v1078 = vand.u32 %v270, 4294901760
        %1079 = vmatprep.subr.mxu0 %v1078
        %v1080 = vand.u32 %v269, 4294901760
        %1081 = vmatpush1.msra.mxu0 %v1080
        %v1082 = vand.u32 %v272, 4294901760
        %1083 = vmatprep.subr.mxu0 %v1082
        %v1084 = vand.u32 %v271, 4294901760
        %1085 = vmatpush1.msra.mxu0 %v1084
        %v1086 = vand.u32 %v274, 4294901760
        %1087 = vmatprep.subr.mxu0 %v1086
        %v1088 = vand.u32 %v273, 4294901760
        %1089 = vmatpush1.msra.mxu0 %v1088
        %1090 = vmatprep.subr.mxu0 0.0
        %1091 = vmatpush1.msra.mxu0 0.0
        %1092 = vmatprep.subr.mxu0 0.0
        %1093 = vmatpush1.msra.mxu0 0.0
        %1094 = vmatprep.subr.mxu0 0.0
        %1095 = vmatpush1.msra.mxu0 0.0
        %1096 = vmatprep.subr.mxu0 0.0
        %1097 = vmatpush1.msra.mxu0 0.0
        %1098 = vmatprep.subr.mxu0 0.0
        %1099 = vmatpush1.msra.mxu0 0.0
        %1100 = vmatprep.subr.mxu0 0.0
        %1101 = vmatpush1.msra.mxu0 0.0
        %1102 = vmatprep.subr.mxu0 0.0
        %1103 = vmatpush1.msra.mxu0 0.0
        %1104 = vmatprep.subr.mxu0 0.0
        %1105 = vmatpush1.msra.mxu0 0.0
        %1106 = vmatprep.subr.mxu0 0.0
        %1107 = vmatpush1.msra.mxu0 0.0
        %1108 = vmatprep.subr.mxu0 0.0
        %1109 = vmatpush1.msra.mxu0 0.0
        %1110 = vmatprep.subr.mxu0 0.0
        %1111 = vmatpush1.msra.mxu0 0.0
        %1112 = vmatprep.subr.mxu0 0.0
        %1113 = vmatpush1.msra.mxu0 0.0
        %1114 = vmatprep.subr.mxu0 0.0
        %1115 = vmatpush1.msra.mxu0 0.0
        %1116 = vmatprep.subr.mxu0 0.0
        %1117 = vmatpush1.msra.mxu0 0.0
        %1118 = vmatprep.subr.mxu0 0.0
        %1119 = vmatpush1.msra.mxu0 0.0
        %1120 = vmatprep.subr.mxu0 0.0
        %1121 = vmatpush1.msra.mxu0 0.0
        %1122 = vmatprep.mubr.f32.mxu0 0.0
        %v1123 = vand.u32 %v242, 4294901760
        %1124 = vmatmul.mubr.f32.gmra.mrb[0].mxu0 %v1123
        %v1125 = vpop.f32.mrb[0].mxu0
        %v1126 = vadd.f32 %v1022, %v1125
        %v1127 = vpop.f32.mrb[0].mxu0
        %v1128 = vadd.f32 %v1024, %v1127
        %1129 = vdwg.mxu0
        %v1130 = vld [vmem:[%s3 + $0x4] sm:$0x1]
        %v1131 = vlaneseq
        %v1132 = vshrl.u32 %v1131, 7
        %v1133 = vsub.s32 0, %v1132
        %v1134 = vrot.slane %v1130, %v1133
        %v1135 = vmul.f32 %v1126, %v1134
        %v1136 = vld [vmem:[%s3] sm:$0x1]
        %v1137 = vlaneseq
        %v1138 = vshrl.u32 %v1137, 7
        %v1139 = vsub.s32 0, %v1138
        %v1140 = vrot.slane %v1136, %v1139
        %v1141 = vadd.f32 %v1135, %v1140
        %vm1142 = vcmp.ge.f32.partialorder %v1141, 0.0
        %v1143 = vmul.f32 %v1141, 0.1
        %v1144 = vsel %vm1142, %v1141, %v1143
        %v1145 = vld [vmem:[%s3 + $0x6] sm:$0x1]
        %v1146 = vlaneseq
        %v1147 = vshrl.u32 %v1146, 7
        %v1148 = vsub.s32 0, %v1147
        %v1149 = vrot.slane %v1145, %v1148
        %v1150 = vmul.f32 %v1128, %v1149
        %v1151 = vld [vmem:[%s3 + $0x2] sm:$0x1]
        %v1152 = vlaneseq
        %v1153 = vshrl.u32 %v1152, 7
        %v1154 = vsub.s32 0, %v1153
        %v1155 = vrot.slane %v1151, %v1154
        %v1156 = vadd.f32 %v1150, %v1155
        %v1157 = vld [vmem:[#allocation7] sm:$0xff]
        %v1158 = vld [vmem:[#allocation7 + $0x8] sm:$0xff]
        %v1159 = vld [vmem:[#allocation7 + $0x10] sm:$0xff]
        %v1160 = vld [vmem:[#allocation7 + $0x18] sm:$0xff]
        %v1161 = vld [vmem:[#allocation7 + $0x20] sm:$0xff]
        %v1162 = vld [vmem:[#allocation7 + $0x28] sm:$0xff]
        %v1163 = vld [vmem:[#allocation7 + $0x30] sm:$0xff]
        %v1164 = vld [vmem:[#allocation7 + $0x38] sm:$0xff]
        %v1165 = vld [vmem:[#allocation7 + $0x40] sm:$0xff]
        %v1166 = vld [vmem:[#allocation7 + $0x48] sm:$0xff]
        %v1167 = vld [vmem:[#allocation7 + $0x50] sm:$0xff]
        %v1168 = vld [vmem:[#allocation7 + $0x58] sm:$0xff]
        %v1169 = vld [vmem:[#allocation7 + $0x60] sm:$0xff]
        %v1170 = vld [vmem:[#allocation7 + $0x68] sm:$0xff]
        %v1171 = vld [vmem:[#allocation7 + $0x70] sm:$0xff]
        %v1172 = vld [vmem:[#allocation7 + $0x78] sm:$0xff]
        %1173 = vmatprep.subr.mxu0 0.0
        %v1174 = vand.u32 %v1157, 4294901760
        %1175 = vmatpush1.msra.mxu0 %v1174
        %1176 = vmatprep.subr.mxu0 0.0
        %v1177 = vand.u32 %v1158, 4294901760
        %1178 = vmatpush1.msra.mxu0 %v1177
        %1179 = vmatprep.subr.mxu0 0.0
        %v1180 = vand.u32 %v1159, 4294901760
        %1181 = vmatpush1.msra.mxu0 %v1180
        %1182 = vmatprep.subr.mxu0 0.0
        %v1183 = vand.u32 %v1160, 4294901760
        %1184 = vmatpush1.msra.mxu0 %v1183
        %1185 = vmatprep.subr.mxu0 0.0
        %v1186 = vand.u32 %v1161, 4294901760
        %1187 = vmatpush1.msra.mxu0 %v1186
        %1188 = vmatprep.subr.mxu0 0.0
        %v1189 = vand.u32 %v1162, 4294901760
        %1190 = vmatpush1.msra.mxu0 %v1189
        %1191 = vmatprep.subr.mxu0 0.0
        %v1192 = vand.u32 %v1163, 4294901760
        %1193 = vmatpush1.msra.mxu0 %v1192
        %1194 = vmatprep.subr.mxu0 0.0
        %v1195 = vand.u32 %v1164, 4294901760
        %1196 = vmatpush1.msra.mxu0 %v1195
        %1197 = vmatprep.subr.mxu0 0.0
        %v1198 = vand.u32 %v1165, 4294901760
        %1199 = vmatpush1.msra.mxu0 %v1198
        %1200 = vmatprep.subr.mxu0 0.0
        %v1201 = vand.u32 %v1166, 4294901760
        %1202 = vmatpush1.msra.mxu0 %v1201
        %1203 = vmatprep.subr.mxu0 0.0
        %v1204 = vand.u32 %v1167, 4294901760
        %1205 = vmatpush1.msra.mxu0 %v1204
        %1206 = vmatprep.subr.mxu0 0.0
        %v1207 = vand.u32 %v1168, 4294901760
        %1208 = vmatpush1.msra.mxu0 %v1207
        %1209 = vmatprep.subr.mxu0 0.0
        %v1210 = vand.u32 %v1169, 4294901760
        %1211 = vmatpush1.msra.mxu0 %v1210
        %1212 = vmatprep.subr.mxu0 0.0
        %v1213 = vand.u32 %v1170, 4294901760
        %1214 = vmatpush1.msra.mxu0 %v1213
        %1215 = vmatprep.subr.mxu0 0.0
        %v1216 = vand.u32 %v1171, 4294901760
        %1217 = vmatpush1.msra.mxu0 %v1216
        %1218 = vmatprep.subr.mxu0 0.0
        %v1219 = vand.u32 %v1172, 4294901760
        %1220 = vmatpush1.msra.mxu0 %v1219
        %1221 = vmatprep.subr.mxu0 0.0
        %1222 = vmatpush1.msra.mxu0 0.0
        %1223 = vmatprep.subr.mxu0 0.0
        %1224 = vmatpush1.msra.mxu0 0.0
        %1225 = vmatprep.subr.mxu0 0.0
        %1226 = vmatpush1.msra.mxu0 0.0
        %1227 = vmatprep.subr.mxu0 0.0
        %1228 = vmatpush1.msra.mxu0 0.0
        %1229 = vmatprep.subr.mxu0 0.0
        %1230 = vmatpush1.msra.mxu0 0.0
        %1231 = vmatprep.subr.mxu0 0.0
        %1232 = vmatpush1.msra.mxu0 0.0
        %1233 = vmatprep.subr.mxu0 0.0
        %1234 = vmatpush1.msra.mxu0 0.0
        %1235 = vmatprep.subr.mxu0 0.0
        %1236 = vmatpush1.msra.mxu0 0.0
        %1237 = vmatprep.subr.mxu0 0.0
        %1238 = vmatpush1.msra.mxu0 0.0
        %1239 = vmatprep.subr.mxu0 0.0
        %1240 = vmatpush1.msra.mxu0 0.0
        %1241 = vmatprep.subr.mxu0 0.0
        %1242 = vmatpush1.msra.mxu0 0.0
        %1243 = vmatprep.subr.mxu0 0.0
        %1244 = vmatpush1.msra.mxu0 0.0
        %1245 = vmatprep.subr.mxu0 0.0
        %1246 = vmatpush1.msra.mxu0 0.0
        %1247 = vmatprep.subr.mxu0 0.0
        %1248 = vmatpush1.msra.mxu0 0.0
        %1249 = vmatprep.subr.mxu0 0.0
        %1250 = vmatpush1.msra.mxu0 0.0
        %1251 = vmatprep.subr.mxu0 0.0
        %1252 = vmatpush1.msra.mxu0 0.0
        %1253 = vmatprep.mubr.f32.mxu0 0.0
        %v1254 = vand.u32 %v1144, 4294901760
        %v1255 = vsub.f32 %v1144, %v1254
        %v1256 = vand.u32 %v1255, 4294901760
        %v1257 = vsub.f32 %v1255, %v1256
        %v1258 = vand.u32 %v1257, 4294901760
        %1259 = vmatmul.mubr.f32.gmra.mrb[0].mxu0 %v1258
        %v1260 = vpop.f32.mrb[0].mxu0
        %v1261 = vadd.f32 0.0, %v1260
        %v1262 = vpop.f32.mrb[0].mxu0
        %1263 = vdwg.mxu0
        %1264 = vmatprep.subr.mxu0 0.0
        %v1265 = vand.u32 %v1157, 4294901760
        %v1266 = vsub.f32 %v1157, %v1265
        %v1267 = vand.u32 %v1266, 4294901760
        %v1268 = vsub.f32 %v1266, %v1267
        %v1269 = vand.u32 %v1268, 4294901760
        %1270 = vmatpush1.msra.mxu0 %v1269
        %1271 = vmatprep.subr.mxu0 0.0
        %v1272 = vand.u32 %v1158, 4294901760
        %v1273 = vsub.f32 %v1158, %v1272
        %v1274 = vand.u32 %v1273, 4294901760
        %v1275 = vsub.f32 %v1273, %v1274
        %v1276 = vand.u32 %v1275, 4294901760
        %1277 = vmatpush1.msra.mxu0 %v1276
        %1278 = vmatprep.subr.mxu0 0.0
        %v1279 = vand.u32 %v1159, 4294901760
        %v1280 = vsub.f32 %v1159, %v1279
        %v1281 = vand.u32 %v1280, 4294901760
        %v1282 = vsub.f32 %v1280, %v1281
        %v1283 = vand.u32 %v1282, 4294901760
        %1284 = vmatpush1.msra.mxu0 %v1283
        %1285 = vmatprep.subr.mxu0 0.0
        %v1286 = vand.u32 %v1160, 4294901760
        %v1287 = vsub.f32 %v1160, %v1286
        %v1288 = vand.u32 %v1287, 4294901760
        %v1289 = vsub.f32 %v1287, %v1288
        %v1290 = vand.u32 %v1289, 4294901760
        %1291 = vmatpush1.msra.mxu0 %v1290
        %1292 = vmatprep.subr.mxu0 0.0
        %v1293 = vand.u32 %v1161, 4294901760
        %v1294 = vsub.f32 %v1161, %v1293
        %v1295 = vand.u32 %v1294, 4294901760
        %v1296 = vsub.f32 %v1294, %v1295
        %v1297 = vand.u32 %v1296, 4294901760
        %1298 = vmatpush1.msra.mxu0 %v1297
        %1299 = vmatprep.subr.mxu0 0.0
        %v1300 = vand.u32 %v1162, 4294901760
        %v1301 = vsub.f32 %v1162, %v1300
        %v1302 = vand.u32 %v1301, 4294901760
        %v1303 = vsub.f32 %v1301, %v1302
        %v1304 = vand.u32 %v1303, 4294901760
        %1305 = vmatpush1.msra.mxu0 %v1304
        %1306 = vmatprep.subr.mxu0 0.0
        %v1307 = vand.u32 %v1163, 4294901760
        %v1308 = vsub.f32 %v1163, %v1307
        %v1309 = vand.u32 %v1308, 4294901760
        %v1310 = vsub.f32 %v1308, %v1309
        %v1311 = vand.u32 %v1310, 4294901760
        %1312 = vmatpush1.msra.mxu0 %v1311
        %1313 = vmatprep.subr.mxu0 0.0
        %v1314 = vand.u32 %v1164, 4294901760
        %v1315 = vsub.f32 %v1164, %v1314
        %v1316 = vand.u32 %v1315, 4294901760
        %v1317 = vsub.f32 %v1315, %v1316
        %v1318 = vand.u32 %v1317, 4294901760
        %1319 = vmatpush1.msra.mxu0 %v1318
        %1320 = vmatprep.subr.mxu0 0.0
        %v1321 = vand.u32 %v1165, 4294901760
        %v1322 = vsub.f32 %v1165, %v1321
        %v1323 = vand.u32 %v1322, 4294901760
        %v1324 = vsub.f32 %v1322, %v1323
        %v1325 = vand.u32 %v1324, 4294901760
        %1326 = vmatpush1.msra.mxu0 %v1325
        %1327 = vmatprep.subr.mxu0 0.0
        %v1328 = vand.u32 %v1166, 4294901760
        %v1329 = vsub.f32 %v1166, %v1328
        %v1330 = vand.u32 %v1329, 4294901760
        %v1331 = vsub.f32 %v1329, %v1330
        %v1332 = vand.u32 %v1331, 4294901760
        %1333 = vmatpush1.msra.mxu0 %v1332
        %1334 = vmatprep.subr.mxu0 0.0
        %v1335 = vand.u32 %v1167, 4294901760
        %v1336 = vsub.f32 %v1167, %v1335
        %v1337 = vand.u32 %v1336, 4294901760
        %v1338 = vsub.f32 %v1336, %v1337
        %v1339 = vand.u32 %v1338, 4294901760
        %1340 = vmatpush1.msra.mxu0 %v1339
        %1341 = vmatprep.subr.mxu0 0.0
        %v1342 = vand.u32 %v1168, 4294901760
        %v1343 = vsub.f32 %v1168, %v1342
        %v1344 = vand.u32 %v1343, 4294901760
        %v1345 = vsub.f32 %v1343, %v1344
        %v1346 = vand.u32 %v1345, 4294901760
        %1347 = vmatpush1.msra.mxu0 %v1346
        %1348 = vmatprep.subr.mxu0 0.0
        %v1349 = vand.u32 %v1169, 4294901760
        %v1350 = vsub.f32 %v1169, %v1349
        %v1351 = vand.u32 %v1350, 4294901760
        %v1352 = vsub.f32 %v1350, %v1351
        %v1353 = vand.u32 %v1352, 4294901760
        %1354 = vmatpush1.msra.mxu0 %v1353
        %1355 = vmatprep.subr.mxu0 0.0
        %v1356 = vand.u32 %v1170, 4294901760
        %v1357 = vsub.f32 %v1170, %v1356
        %v1358 = vand.u32 %v1357, 4294901760
        %v1359 = vsub.f32 %v1357, %v1358
        %v1360 = vand.u32 %v1359, 4294901760
        %1361 = vmatpush1.msra.mxu0 %v1360
        %1362 = vmatprep.subr.mxu0 0.0
        %v1363 = vand.u32 %v1171, 4294901760
        %v1364 = vsub.f32 %v1171, %v1363
        %v1365 = vand.u32 %v1364, 4294901760
        %v1366 = vsub.f32 %v1364, %v1365
        %v1367 = vand.u32 %v1366, 4294901760
        %1368 = vmatpush1.msra.mxu0 %v1367
        %1369 = vmatprep.subr.mxu0 0.0
        %v1370 = vand.u32 %v1172, 4294901760
        %v1371 = vsub.f32 %v1172, %v1370
        %v1372 = vand.u32 %v1371, 4294901760
        %v1373 = vsub.f32 %v1371, %v1372
        %v1374 = vand.u32 %v1373, 4294901760
        %1375 = vmatpush1.msra.mxu0 %v1374
        %1376 = vmatprep.subr.mxu0 0.0
        %1377 = vmatpush1.msra.mxu0 0.0
        %1378 = vmatprep.subr.mxu0 0.0
        %1379 = vmatpush1.msra.mxu0 0.0
        %1380 = vmatprep.subr.mxu0 0.0
        %1381 = vmatpush1.msra.mxu0 0.0
        %1382 = vmatprep.subr.mxu0 0.0
        %1383 = vmatpush1.msra.mxu0 0.0
        %1384 = vmatprep.subr.mxu0 0.0
        %1385 = vmatpush1.msra.mxu0 0.0
        %1386 = vmatprep.subr.mxu0 0.0
        %1387 = vmatpush1.msra.mxu0 0.0
        %1388 = vmatprep.subr.mxu0 0.0
        %1389 = vmatpush1.msra.mxu0 0.0
        %1390 = vmatprep.subr.mxu0 0.0
        %1391 = vmatpush1.msra.mxu0 0.0
        %1392 = vmatprep.subr.mxu0 0.0
        %1393 = vmatpush1.msra.mxu0 0.0
        %1394 = vmatprep.subr.mxu0 0.0
        %1395 = vmatpush1.msra.mxu0 0.0
        %1396 = vmatprep.subr.mxu0 0.0
        %1397 = vmatpush1.msra.mxu0 0.0
        %1398 = vmatprep.subr.mxu0 0.0
        %1399 = vmatpush1.msra.mxu0 0.0
        %1400 = vmatprep.subr.mxu0 0.0
        %1401 = vmatpush1.msra.mxu0 0.0
        %1402 = vmatprep.subr.mxu0 0.0
        %1403 = vmatpush1.msra.mxu0 0.0
        %1404 = vmatprep.subr.mxu0 0.0
        %1405 = vmatpush1.msra.mxu0 0.0
        %1406 = vmatprep.subr.mxu0 0.0
        %1407 = vmatpush1.msra.mxu0 0.0
        %1408 = vmatprep.mubr.f32.mxu0 0.0
        %v1409 = vand.u32 %v1144, 4294901760
        %1410 = vmatmul.mubr.f32.gmra.mrb[0].mxu0 %v1409
        %v1411 = vpop.f32.mrb[0].mxu0
        %v1412 = vadd.f32 %v1261, %v1411
        %v1413 = vpop.f32.mrb[0].mxu0
        %1414 = vdwg.mxu0
        %1415 = vmatprep.subr.mxu0 0.0
        %v1416 = vand.u32 %v1157, 4294901760
        %v1417 = vsub.f32 %v1157, %v1416
        %1418 = vmatpush1.msra.mxu0 %v1417
        %1419 = vmatprep.subr.mxu0 0.0
        %v1420 = vand.u32 %v1158, 4294901760
        %v1421 = vsub.f32 %v1158, %v1420
        %1422 = vmatpush1.msra.mxu0 %v1421
        %1423 = vmatprep.subr.mxu0 0.0
        %v1424 = vand.u32 %v1159, 4294901760
        %v1425 = vsub.f32 %v1159, %v1424
        %1426 = vmatpush1.msra.mxu0 %v1425
        %1427 = vmatprep.subr.mxu0 0.0
        %v1428 = vand.u32 %v1160, 4294901760
        %v1429 = vsub.f32 %v1160, %v1428
        %1430 = vmatpush1.msra.mxu0 %v1429
        %1431 = vmatprep.subr.mxu0 0.0
        %v1432 = vand.u32 %v1161, 4294901760
        %v1433 = vsub.f32 %v1161, %v1432
        %1434 = vmatpush1.msra.mxu0 %v1433
        %1435 = vmatprep.subr.mxu0 0.0
        %v1436 = vand.u32 %v1162, 4294901760
        %v1437 = vsub.f32 %v1162, %v1436
        %1438 = vmatpush1.msra.mxu0 %v1437
        %1439 = vmatprep.subr.mxu0 0.0
        %v1440 = vand.u32 %v1163, 4294901760
        %v1441 = vsub.f32 %v1163, %v1440
        %1442 = vmatpush1.msra.mxu0 %v1441
        %1443 = vmatprep.subr.mxu0 0.0
        %v1444 = vand.u32 %v1164, 4294901760
        %v1445 = vsub.f32 %v1164, %v1444
        %1446 = vmatpush1.msra.mxu0 %v1445
        %1447 = vmatprep.subr.mxu0 0.0
        %v1448 = vand.u32 %v1165, 4294901760
        %v1449 = vsub.f32 %v1165, %v1448
        %1450 = vmatpush1.msra.mxu0 %v1449
        %1451 = vmatprep.subr.mxu0 0.0
        %v1452 = vand.u32 %v1166, 4294901760
        %v1453 = vsub.f32 %v1166, %v1452
        %1454 = vmatpush1.msra.mxu0 %v1453
        %1455 = vmatprep.subr.mxu0 0.0
        %v1456 = vand.u32 %v1167, 4294901760
        %v1457 = vsub.f32 %v1167, %v1456
        %1458 = vmatpush1.msra.mxu0 %v1457
        %1459 = vmatprep.subr.mxu0 0.0
        %v1460 = vand.u32 %v1168, 4294901760
        %v1461 = vsub.f32 %v1168, %v1460
        %1462 = vmatpush1.msra.mxu0 %v1461
        %1463 = vmatprep.subr.mxu0 0.0
        %v1464 = vand.u32 %v1169, 4294901760
        %v1465 = vsub.f32 %v1169, %v1464
        %1466 = vmatpush1.msra.mxu0 %v1465
        %1467 = vmatprep.subr.mxu0 0.0
        %v1468 = vand.u32 %v1170, 4294901760
        %v1469 = vsub.f32 %v1170, %v1468
        %1470 = vmatpush1.msra.mxu0 %v1469
        %1471 = vmatprep.subr.mxu0 0.0
        %v1472 = vand.u32 %v1171, 4294901760
        %v1473 = vsub.f32 %v1171, %v1472
        %1474 = vmatpush1.msra.mxu0 %v1473
        %1475 = vmatprep.subr.mxu0 0.0
        %v1476 = vand.u32 %v1172, 4294901760
        %v1477 = vsub.f32 %v1172, %v1476
        %1478 = vmatpush1.msra.mxu0 %v1477
        %1479 = vmatprep.subr.mxu0 0.0
        %1480 = vmatpush1.msra.mxu0 0.0
        %1481 = vmatprep.subr.mxu0 0.0
        %1482 = vmatpush1.msra.mxu0 0.0
        %1483 = vmatprep.subr.mxu0 0.0
        %1484 = vmatpush1.msra.mxu0 0.0
        %1485 = vmatprep.subr.mxu0 0.0
        %1486 = vmatpush1.msra.mxu0 0.0
        %1487 = vmatprep.subr.mxu0 0.0
        %1488 = vmatpush1.msra.mxu0 0.0
        %1489 = vmatprep.subr.mxu0 0.0
        %1490 = vmatpush1.msra.mxu0 0.0
        %1491 = vmatprep.subr.mxu0 0.0
        %1492 = vmatpush1.msra.mxu0 0.0
        %1493 = vmatprep.subr.mxu0 0.0
        %1494 = vmatpush1.msra.mxu0 0.0
        %1495 = vmatprep.subr.mxu0 0.0
        %1496 = vmatpush1.msra.mxu0 0.0
        %1497 = vmatprep.subr.mxu0 0.0
        %1498 = vmatpush1.msra.mxu0 0.0
        %1499 = vmatprep.subr.mxu0 0.0
        %1500 = vmatpush1.msra.mxu0 0.0
        %1501 = vmatprep.subr.mxu0 0.0
        %1502 = vmatpush1.msra.mxu0 0.0
        %1503 = vmatprep.subr.mxu0 0.0
        %1504 = vmatpush1.msra.mxu0 0.0
        %1505 = vmatprep.subr.mxu0 0.0
        %1506 = vmatpush1.msra.mxu0 0.0
        %1507 = vmatprep.subr.mxu0 0.0
        %1508 = vmatpush1.msra.mxu0 0.0
        %1509 = vmatprep.subr.mxu0 0.0
        %1510 = vmatpush1.msra.mxu0 0.0
        %1511 = vmatprep.mubr.f32.mxu0 0.0
        %v1512 = vand.u32 %v1144, 4294901760
        %v1513 = vsub.f32 %v1144, %v1512
        %1514 = vmatmul.mubr.f32.gmra.mrb[0].mxu0 %v1513
        %v1515 = vpop.f32.mrb[0].mxu0
        %v1516 = vadd.f32 %v1412, %v1515
        %v1517 = vpop.f32.mrb[0].mxu0
        %1518 = vdwg.mxu0
        %1519 = vmatprep.subr.mxu0 0.0
        %v1520 = vand.u32 %v1157, 4294901760
        %1521 = vmatpush1.msra.mxu0 %v1520
        %1522 = vmatprep.subr.mxu0 0.0
        %v1523 = vand.u32 %v1158, 4294901760
        %1524 = vmatpush1.msra.mxu0 %v1523
        %1525 = vmatprep.subr.mxu0 0.0
        %v1526 = vand.u32 %v1159, 4294901760
        %1527 = vmatpush1.msra.mxu0 %v1526
        %1528 = vmatprep.subr.mxu0 0.0
        %v1529 = vand.u32 %v1160, 4294901760
        %1530 = vmatpush1.msra.mxu0 %v1529
        %1531 = vmatprep.subr.mxu0 0.0
        %v1532 = vand.u32 %v1161, 4294901760
        %1533 = vmatpush1.msra.mxu0 %v1532
        %1534 = vmatprep.subr.mxu0 0.0
        %v1535 = vand.u32 %v1162, 4294901760
        %1536 = vmatpush1.msra.mxu0 %v1535
        %1537 = vmatprep.subr.mxu0 0.0
        %v1538 = vand.u32 %v1163, 4294901760
        %1539 = vmatpush1.msra.mxu0 %v1538
        %1540 = vmatprep.subr.mxu0 0.0
        %v1541 = vand.u32 %v1164, 4294901760
        %1542 = vmatpush1.msra.mxu0 %v1541
        %1543 = vmatprep.subr.mxu0 0.0
        %v1544 = vand.u32 %v1165, 4294901760
        %1545 = vmatpush1.msra.mxu0 %v1544
        %1546 = vmatprep.subr.mxu0 0.0
        %v1547 = vand.u32 %v1166, 4294901760
        %1548 = vmatpush1.msra.mxu0 %v1547
        %1549 = vmatprep.subr.mxu0 0.0
        %v1550 = vand.u32 %v1167, 4294901760
        %1551 = vmatpush1.msra.mxu0 %v1550
        %1552 = vmatprep.subr.mxu0 0.0
        %v1553 = vand.u32 %v1168, 4294901760
        %1554 = vmatpush1.msra.mxu0 %v1553
        %1555 = vmatprep.subr.mxu0 0.0
        %v1556 = vand.u32 %v1169, 4294901760
        %1557 = vmatpush1.msra.mxu0 %v1556
        %1558 = vmatprep.subr.mxu0 0.0
        %v1559 = vand.u32 %v1170, 4294901760
        %1560 = vmatpush1.msra.mxu0 %v1559
        %1561 = vmatprep.subr.mxu0 0.0
        %v1562 = vand.u32 %v1171, 4294901760
        %1563 = vmatpush1.msra.mxu0 %v1562
        %1564 = vmatprep.subr.mxu0 0.0
        %v1565 = vand.u32 %v1172, 4294901760
        %1566 = vmatpush1.msra.mxu0 %v1565
        %1567 = vmatprep.subr.mxu0 0.0
        %1568 = vmatpush1.msra.mxu0 0.0
        %1569 = vmatprep.subr.mxu0 0.0
        %1570 = vmatpush1.msra.mxu0 0.0
        %1571 = vmatprep.subr.mxu0 0.0
        %1572 = vmatpush1.msra.mxu0 0.0
        %1573 = vmatprep.subr.mxu0 0.0
        %1574 = vmatpush1.msra.mxu0 0.0
        %1575 = vmatprep.subr.mxu0 0.0
        %1576 = vmatpush1.msra.mxu0 0.0
        %1577 = vmatprep.subr.mxu0 0.0
        %1578 = vmatpush1.msra.mxu0 0.0
        %1579 = vmatprep.subr.mxu0 0.0
        %1580 = vmatpush1.msra.mxu0 0.0
        %1581 = vmatprep.subr.mxu0 0.0
        %1582 = vmatpush1.msra.mxu0 0.0
        %1583 = vmatprep.subr.mxu0 0.0
        %1584 = vmatpush1.msra.mxu0 0.0
        %1585 = vmatprep.subr.mxu0 0.0
        %1586 = vmatpush1.msra.mxu0 0.0
        %1587 = vmatprep.subr.mxu0 0.0
        %1588 = vmatpush1.msra.mxu0 0.0
        %1589 = vmatprep.subr.mxu0 0.0
        %1590 = vmatpush1.msra.mxu0 0.0
        %1591 = vmatprep.subr.mxu0 0.0
        %1592 = vmatpush1.msra.mxu0 0.0
        %1593 = vmatprep.subr.mxu0 0.0
        %1594 = vmatpush1.msra.mxu0 0.0
        %1595 = vmatprep.subr.mxu0 0.0
        %1596 = vmatpush1.msra.mxu0 0.0
        %1597 = vmatprep.subr.mxu0 0.0
        %1598 = vmatpush1.msra.mxu0 0.0
        %1599 = vmatprep.mubr.f32.mxu0 0.0
        %v1600 = vand.u32 %v1144, 4294901760
        %v1601 = vsub.f32 %v1144, %v1600
        %v1602 = vand.u32 %v1601, 4294901760
        %1603 = vmatmul.mubr.f32.gmra.mrb[0].mxu0 %v1602
        %v1604 = vpop.f32.mrb[0].mxu0
        %v1605 = vadd.f32 %v1516, %v1604
        %v1606 = vpop.f32.mrb[0].mxu0
        %1607 = vdwg.mxu0
        %1608 = vmatprep.subr.mxu0 0.0
        %v1609 = vand.u32 %v1157, 4294901760
        %v1610 = vsub.f32 %v1157, %v1609
        %v1611 = vand.u32 %v1610, 4294901760
        %1612 = vmatpush1.msra.mxu0 %v1611
        %1613 = vmatprep.subr.mxu0 0.0
        %v1614 = vand.u32 %v1158, 4294901760
        %v1615 = vsub.f32 %v1158, %v1614
        %v1616 = vand.u32 %v1615, 4294901760
        %1617 = vmatpush1.msra.mxu0 %v1616
        %1618 = vmatprep.subr.mxu0 0.0
        %v1619 = vand.u32 %v1159, 4294901760
        %v1620 = vsub.f32 %v1159, %v1619
        %v1621 = vand.u32 %v1620, 4294901760
        %1622 = vmatpush1.msra.mxu0 %v1621
        %1623 = vmatprep.subr.mxu0 0.0
        %v1624 = vand.u32 %v1160, 4294901760
        %v1625 = vsub.f32 %v1160, %v1624
        %v1626 = vand.u32 %v1625, 4294901760
        %1627 = vmatpush1.msra.mxu0 %v1626
        %1628 = vmatprep.subr.mxu0 0.0
        %v1629 = vand.u32 %v1161, 4294901760
        %v1630 = vsub.f32 %v1161, %v1629
        %v1631 = vand.u32 %v1630, 4294901760
        %1632 = vmatpush1.msra.mxu0 %v1631
        %1633 = vmatprep.subr.mxu0 0.0
        %v1634 = vand.u32 %v1162, 4294901760
        %v1635 = vsub.f32 %v1162, %v1634
        %v1636 = vand.u32 %v1635, 4294901760
        %1637 = vmatpush1.msra.mxu0 %v1636
        %1638 = vmatprep.subr.mxu0 0.0
        %v1639 = vand.u32 %v1163, 4294901760
        %v1640 = vsub.f32 %v1163, %v1639
        %v1641 = vand.u32 %v1640, 4294901760
        %1642 = vmatpush1.msra.mxu0 %v1641
        %1643 = vmatprep.subr.mxu0 0.0
        %v1644 = vand.u32 %v1164, 4294901760
        %v1645 = vsub.f32 %v1164, %v1644
        %v1646 = vand.u32 %v1645, 4294901760
        %1647 = vmatpush1.msra.mxu0 %v1646
        %1648 = vmatprep.subr.mxu0 0.0
        %v1649 = vand.u32 %v1165, 4294901760
        %v1650 = vsub.f32 %v1165, %v1649
        %v1651 = vand.u32 %v1650, 4294901760
        %1652 = vmatpush1.msra.mxu0 %v1651
        %1653 = vmatprep.subr.mxu0 0.0
        %v1654 = vand.u32 %v1166, 4294901760
        %v1655 = vsub.f32 %v1166, %v1654
        %v1656 = vand.u32 %v1655, 4294901760
        %1657 = vmatpush1.msra.mxu0 %v1656
        %1658 = vmatprep.subr.mxu0 0.0
        %v1659 = vand.u32 %v1167, 4294901760
        %v1660 = vsub.f32 %v1167, %v1659
        %v1661 = vand.u32 %v1660, 4294901760
        %1662 = vmatpush1.msra.mxu0 %v1661
        %1663 = vmatprep.subr.mxu0 0.0
        %v1664 = vand.u32 %v1168, 4294901760
        %v1665 = vsub.f32 %v1168, %v1664
        %v1666 = vand.u32 %v1665, 4294901760
        %1667 = vmatpush1.msra.mxu0 %v1666
        %1668 = vmatprep.subr.mxu0 0.0
        %v1669 = vand.u32 %v1169, 4294901760
        %v1670 = vsub.f32 %v1169, %v1669
        %v1671 = vand.u32 %v1670, 4294901760
        %1672 = vmatpush1.msra.mxu0 %v1671
        %1673 = vmatprep.subr.mxu0 0.0
        %v1674 = vand.u32 %v1170, 4294901760
        %v1675 = vsub.f32 %v1170, %v1674
        %v1676 = vand.u32 %v1675, 4294901760
        %1677 = vmatpush1.msra.mxu0 %v1676
        %1678 = vmatprep.subr.mxu0 0.0
        %v1679 = vand.u32 %v1171, 4294901760
        %v1680 = vsub.f32 %v1171, %v1679
        %v1681 = vand.u32 %v1680, 4294901760
        %1682 = vmatpush1.msra.mxu0 %v1681
        %1683 = vmatprep.subr.mxu0 0.0
        %v1684 = vand.u32 %v1172, 4294901760
        %v1685 = vsub.f32 %v1172, %v1684
        %v1686 = vand.u32 %v1685, 4294901760
        %1687 = vmatpush1.msra.mxu0 %v1686
        %1688 = vmatprep.subr.mxu0 0.0
        %1689 = vmatpush1.msra.mxu0 0.0
        %1690 = vmatprep.subr.mxu0 0.0
        %1691 = vmatpush1.msra.mxu0 0.0
        %1692 = vmatprep.subr.mxu0 0.0
        %1693 = vmatpush1.msra.mxu0 0.0
        %1694 = vmatprep.subr.mxu0 0.0
        %1695 = vmatpush1.msra.mxu0 0.0
        %1696 = vmatprep.subr.mxu0 0.0
        %1697 = vmatpush1.msra.mxu0 0.0
        %1698 = vmatprep.subr.mxu0 0.0
        %1699 = vmatpush1.msra.mxu0 0.0
        %1700 = vmatprep.subr.mxu0 0.0
        %1701 = vmatpush1.msra.mxu0 0.0
        %1702 = vmatprep.subr.mxu0 0.0
        %1703 = vmatpush1.msra.mxu0 0.0
        %1704 = vmatprep.subr.mxu0 0.0
        %1705 = vmatpush1.msra.mxu0 0.0
        %1706 = vmatprep.subr.mxu0 0.0
        %1707 = vmatpush1.msra.mxu0 0.0
        %1708 = vmatprep.subr.mxu0 0.0
        %1709 = vmatpush1.msra.mxu0 0.0
        %1710 = vmatprep.subr.mxu0 0.0
        %1711 = vmatpush1.msra.mxu0 0.0
        %1712 = vmatprep.subr.mxu0 0.0
        %1713 = vmatpush1.msra.mxu0 0.0
        %1714 = vmatprep.subr.mxu0 0.0
        %1715 = vmatpush1.msra.mxu0 0.0
        %1716 = vmatprep.subr.mxu0 0.0
        %1717 = vmatpush1.msra.mxu0 0.0
        %1718 = vmatprep.subr.mxu0 0.0
        %1719 = vmatpush1.msra.mxu0 0.0
        %1720 = vmatprep.mubr.f32.mxu0 0.0
        %v1721 = vand.u32 %v1144, 4294901760
        %1722 = vmatmul.mubr.f32.gmra.mrb[0].mxu0 %v1721
        %v1723 = vpop.f32.mrb[0].mxu0
        %v1724 = vadd.f32 %v1605, %v1723
        %v1725 = vpop.f32.mrb[0].mxu0
        %1726 = vdwg.mxu0
        %1727 = vmatprep.subr.mxu0 0.0
        %v1728 = vand.u32 %v1157, 4294901760
        %1729 = vmatpush1.msra.mxu0 %v1728
        %1730 = vmatprep.subr.mxu0 0.0
        %v1731 = vand.u32 %v1158, 4294901760
        %1732 = vmatpush1.msra.mxu0 %v1731
        %1733 = vmatprep.subr.mxu0 0.0
        %v1734 = vand.u32 %v1159, 4294901760
        %1735 = vmatpush1.msra.mxu0 %v1734
        %1736 = vmatprep.subr.mxu0 0.0
        %v1737 = vand.u32 %v1160, 4294901760
        %1738 = vmatpush1.msra.mxu0 %v1737
        %1739 = vmatprep.subr.mxu0 0.0
        %v1740 = vand.u32 %v1161, 4294901760
        %1741 = vmatpush1.msra.mxu0 %v1740
        %1742 = vmatprep.subr.mxu0 0.0
        %v1743 = vand.u32 %v1162, 4294901760
        %1744 = vmatpush1.msra.mxu0 %v1743
        %1745 = vmatprep.subr.mxu0 0.0
        %v1746 = vand.u32 %v1163, 4294901760
        %1747 = vmatpush1.msra.mxu0 %v1746
        %1748 = vmatprep.subr.mxu0 0.0
        %v1749 = vand.u32 %v1164, 4294901760
        %1750 = vmatpush1.msra.mxu0 %v1749
        %1751 = vmatprep.subr.mxu0 0.0
        %v1752 = vand.u32 %v1165, 4294901760
        %1753 = vmatpush1.msra.mxu0 %v1752
        %1754 = vmatprep.subr.mxu0 0.0
        %v1755 = vand.u32 %v1166, 4294901760
        %1756 = vmatpush1.msra.mxu0 %v1755
        %1757 = vmatprep.subr.mxu0 0.0
        %v1758 = vand.u32 %v1167, 4294901760
        %1759 = vmatpush1.msra.mxu0 %v1758
        %1760 = vmatprep.subr.mxu0 0.0
        %v1761 = vand.u32 %v1168, 4294901760
        %1762 = vmatpush1.msra.mxu0 %v1761
        %1763 = vmatprep.subr.mxu0 0.0
        %v1764 = vand.u32 %v1169, 4294901760
        %1765 = vmatpush1.msra.mxu0 %v1764
        %1766 = vmatprep.subr.mxu0 0.0
        %v1767 = vand.u32 %v1170, 4294901760
        %1768 = vmatpush1.msra.mxu0 %v1767
        %1769 = vmatprep.subr.mxu0 0.0
        %v1770 = vand.u32 %v1171, 4294901760
        %1771 = vmatpush1.msra.mxu0 %v1770
        %1772 = vmatprep.subr.mxu0 0.0
        %v1773 = vand.u32 %v1172, 4294901760
        %1774 = vmatpush1.msra.mxu0 %v1773
        %1775 = vmatprep.subr.mxu0 0.0
        %1776 = vmatpush1.msra.mxu0 0.0
        %1777 = vmatprep.subr.mxu0 0.0
        %1778 = vmatpush1.msra.mxu0 0.0
        %1779 = vmatprep.subr.mxu0 0.0
        %1780 = vmatpush1.msra.mxu0 0.0
        %1781 = vmatprep.subr.mxu0 0.0
        %1782 = vmatpush1.msra.mxu0 0.0
        %1783 = vmatprep.subr.mxu0 0.0
        %1784 = vmatpush1.msra.mxu0 0.0
        %1785 = vmatprep.subr.mxu0 0.0
        %1786 = vmatpush1.msra.mxu0 0.0
        %1787 = vmatprep.subr.mxu0 0.0
        %1788 = vmatpush1.msra.mxu0 0.0
        %1789 = vmatprep.subr.mxu0 0.0
        %1790 = vmatpush1.msra.mxu0 0.0
        %1791 = vmatprep.subr.mxu0 0.0
        %1792 = vmatpush1.msra.mxu0 0.0
        %1793 = vmatprep.subr.mxu0 0.0
        %1794 = vmatpush1.msra.mxu0 0.0
        %1795 = vmatprep.subr.mxu0 0.0
        %1796 = vmatpush1.msra.mxu0 0.0
        %1797 = vmatprep.subr.mxu0 0.0
        %1798 = vmatpush1.msra.mxu0 0.0
        %1799 = vmatprep.subr.mxu0 0.0
        %1800 = vmatpush1.msra.mxu0 0.0
        %1801 = vmatprep.subr.mxu0 0.0
        %1802 = vmatpush1.msra.mxu0 0.0
        %1803 = vmatprep.subr.mxu0 0.0
        %1804 = vmatpush1.msra.mxu0 0.0
        %1805 = vmatprep.subr.mxu0 0.0
        %1806 = vmatpush1.msra.mxu0 0.0
        %1807 = vmatprep.mubr.f32.mxu0 0.0
        %v1808 = vand.u32 %v1144, 4294901760
        %1809 = vmatmul.mubr.f32.gmra.mrb[0].mxu0 %v1808
        %v1810 = vpop.f32.mrb[0].mxu0
        %v1811 = vadd.f32 %v1724, %v1810
        %v1812 = vpop.f32.mrb[0].mxu0
        %1813 = vdwg.mxu0
        %v1814 = vld [vmem:[%s3 + $0x5] sm:$0x1]
        %v1815 = vlaneseq
        %v1816 = vshrl.u32 %v1815, 7
        %v1817 = vsub.s32 0, %v1816
        %v1818 = vrot.slane %v1814, %v1817
        %v1819 = vmul.f32 %v1811, %v1818
        %v1820 = vld [vmem:[%s3 + $0x1] sm:$0x1]
        %v1821 = vlaneseq
        %v1822 = vshrl.u32 %v1821, 7
        %v1823 = vsub.s32 0, %v1822
        %v1824 = vrot.slane %v1820, %v1823
        %v1825 = vadd.f32 %v1819, %v1824
        %vm1826 = vcmp.ge.f32.partialorder %v1825, 0.0
        %v1827 = vmul.f32 %v1825, 0.1
        %v1828 = vsel %vm1826, %v1825, %v1827
        %v1829 = vadd.f32 %v1828, %v1156
        %1830 = vst [vmem:[%s241] sm:$0xff] %v1829
        %s1831 = sand.u32 %s119, 1
        %s1832 = scalar_lea.sflag [#allocation4], %s1831
        %s1833 = sand.u32 %s119, 1
        %s1834 = smul.addr %s1833, 8
        %s1835 = scalar_lea.vmem [#allocation8], %s1834
        // Predicated region
        $region49: #{tpu_custom_call.1} parent=35 // pred_check
          %p1836 = pneg %p129
        $region50: #{tpu_custom_call.1} parent=35 // pred_check_branch
          %1838 = sbr.rel (%p1836) target = $region52
        $region51: #{tpu_custom_call.1} parent=35 // pred_region
          %s1840 = ssub.s32 128, 128
          %1841 = vsyncadd %s1832, %s1840
          %s1842 = smul.addr %s22, 128
          %s1843 = scalar_lea.hbm %s4, %s1842
          %s1845 = sshll.u32 %s1835, 4
          %s1846 = int_to_ptr.vmem [resolvable:$true] %s1845
          %1848 = dma.vmem_to_hbm [thread:$0]  %s1846, 128, %s1843, %s1832
        $region52: #{tpu_custom_call.1} parent=35 // pred_fallthru
          _
      $region36: #{tpu_custom_call.1} parent=5 // pred_fallthru
        _
      %p1849 = scmp.le.s32.totalorder 2, %s17
      // Predicated region
      $region53: #{tpu_custom_call.1} parent=5 // pred_check
        %p1850 = pneg %p1849
      $region54: #{tpu_custom_call.1} parent=5 // pred_check_branch
        %1852 = sbr.rel (%p1850) target = $region56
      $region55: #{tpu_custom_call.1} parent=5 // pred_region
        %s1853 = ssub.s32 %s17, 2
        // Predicated region
        $region57: #{tpu_custom_call.1} parent=55 // pred_check
          %p1854 = pneg %p135
        $region58: #{tpu_custom_call.1} parent=55 // pred_check_branch
          %1856 = sbr.rel (%p1854) target = $region60
        $region59: #{tpu_custom_call.1} parent=55 // pred_region
          %s1857 = sand.u32 %s120, 1
          %s1858 = scalar_lea.sflag [#allocation4], %s1857
          %s1859 = sand.u32 %s120, 1
          %s1860 = smul.addr %s1859, 8
          %s1861 = scalar_lea.vmem [#allocation8], %s1860
          %1862 = dma.done %s1858, 128
        $region60: #{tpu_custom_call.1} parent=55 // pred_fallthru
          _
      $region56: #{tpu_custom_call.1} parent=5 // pred_fallthru
        _
    $region6: #{tpu_custom_call.1} parent=1 // loop_footer
      %s21 = sadd.s32 1, %s17
    $region7: #{tpu_custom_call.1} parent=1 // loop_footer_branch
      %16 = sbr.rel target = $region3
    $region8: #{tpu_custom_call.1} parent=1 // loop_exit
      _
    %1863 = vsyncpa [#allocation3], 1
    %s1864 = scalar_lea.sflag [#allocation3], 1
    %1865 = vsyncpa %s1864, 1
    %1866 = vsyncpa [#allocation6], 1
    %1867 = vsyncpa [#allocation4], 1
    %s1868 = scalar_lea.sflag [#allocation4], 1
    %1869 = vsyncpa %s1868, 1

</llo_original>
